<compile_context>
chip_gen: v5e
topology: v5e:2x2
jax: 0.10.0
libtpu: 0.0.40
codegen_flags: <defaults>
</compile_context>

<pallas_src>
import functools

import jax
import jax.numpy as jnp
from jax import lax
from jax.experimental import pallas as pl
from jax.experimental.pallas import tpu as pltpu

NEG_SLOPE = 0.2          # nn.LeakyReLU(0.2)
_SCORE_LANES = 128       # lane padding of the attn_dot weight column (MXU score path)


def _leaky(x):
    return jnp.where(x >= 0, x, NEG_SLOPE * x)


def _mm(x, w):  # MXU matmul, f32 accumulation
    return jnp.dot(x, w, preferred_element_type=jnp.float32)


# ----------------------------------------------------------------------------
# Kernel: one grid step == G complete graphs.  PAGTN encoder + mean readout.
# ----------------------------------------------------------------------------
def gtn_kernel(node_ref, edge_ref,
               w_inp_ref, b_inp_ref,
               w_ncat_ref, b_ncat_ref,     # fused [a_src|m_src|a_dst|m_dst|w_n] per layer
               w_ecat_ref, b_ecat_ref,     # fused [a_edg|m_edg] per layer
               w_adot_ref, b_adot_ref,     # attn_dot, lane-padded to (H, 128)
               w_outx_ref, w_outh_ref, b_out_ref,
               out_ref,                    # (G, F_out) graph features (mean readout)
               hin_ref, h_ref, src_ref, dst_ref,   # VMEM scratch
               *, vc):
    G, N, Fin = node_ref.shape
    Ein = edge_ref.shape[-1]
    H = w_inp_ref.shape[1]
    depth = w_ncat_ref.shape[0]
    F_out = w_outx_ref.shape[1]
    VC = vc
    NC = N // VC

    node_flat = node_ref[...].reshape(G * N, Fin)                     # bf16

    # ---------------- input projection ----------------
    atom_input = _leaky(_mm(node_flat, w_inp_ref[...]) + b_inp_ref[...])   # (G*N, H) f32
    hin_ref[...] = atom_input.reshape(G, N, H)
    h_ref[...] = atom_input.reshape(G, N, H)

    # ---------------- PAGTN layers (fori_loop bounds live ranges) ----------------
    def layer_body(d, carry):
        wnc = w_ncat_ref[d]            # (H, 5H)  bf16
        bnc = b_ncat_ref[d]            # (1, 5H)  f32
        wec = w_ecat_ref[d]            # (Ein, 2H) bf16
        bec = b_ecat_ref[d]            # (1, 2H)  f32
        wad = w_adot_ref[d]            # (H, 128) bf16, column 0 = attn_dot weights
        bad = b_adot_ref[d]            # (1, 1)   f32

        # one fused matmul for all five node projections of this layer
        h_flat = h_ref[...].reshape(G * N, H).astype(jnp.bfloat16)
        proj = _mm(h_flat, wnc) + bnc                                  # (G*N, 5H) f32
        src_ref[...] = proj[:, :2 * H].reshape(G, N, 2 * H)            # [a_src | m_src]
        dst_ref[...] = proj[:, 2 * H:].reshape(G, N, 3 * H)            # [a_dst | m_dst | w_n]

        # destination-node chunking: every chunk's softmax (over sources) is
        # self-contained, so no online-softmax is needed.
        def chunk_body(c, carry_c):
            v0 = pl.multiple_of(c * VC, VC)

            p_src = src_ref[...]                                       # (G, N, 2H)
            a_src = p_src[..., :H]
            m_src = p_src[..., H:]
            p_dst = dst_ref[:, pl.ds(v0, VC), :]                       # (G, VC, 3H)
            a_dst = p_dst[..., :H]
            m_dst = p_dst[..., H:2 * H]
            wn_h = p_dst[..., 2 * H:]

            # per-layer, per-chunk edge projection straight from bf16 edges
            e_chunk = edge_ref[:, pl.ds(v0, VC), :, :]                 # (G, VC, N, Ein)
            ep = _mm(e_chunk.reshape(G * VC * N, Ein), wec) + bec      # (G*VC*N, 2H) f32
            ep = ep.reshape(G, VC, N, 2 * H)
            a_edg = ep[..., :H]
            m_edg = ep[..., H:]

            # attention scores per edge u -> v (dst = axis 1, src = axis 2)
            e = _leaky(a_dst[:, :, None, :] + a_src[:, None, :, :] + a_edg)   # (G,VC,N,H)
            # score reduce on the MXU: only column 0 of wad is nonzero, so the
            # 128-lane row-sum of the matmul result equals the dot product.
            s = _mm(e.reshape(G * VC * N, H).astype(jnp.bfloat16), wad)       # (G*VC*N,128)
            scores = jnp.sum(s.reshape(G, VC, N, _SCORE_LANES), axis=-1) + bad
            # edge softmax over incoming edges of each destination node
            scores = scores - jnp.max(scores, axis=-1, keepdims=True)
            p = jnp.exp(scores)
            alpha = p * pl.reciprocal(jnp.sum(p, axis=-1, keepdims=True), approx=True)

            # messages per edge u -> v, weighted sum over sources (no reshape)
            msg = _leaky(m_dst[:, :, None, :] + m_src[:, None, :, :] + m_edg)  # (G,VC,N,H)
            agg = jnp.sum(alpha[..., None] * msg, axis=2)                      # (G, VC, H)

            attn_h = _leaky(agg + wn_h)
            hin_c = hin_ref[:, pl.ds(v0, VC), :]
            h_ref[:, pl.ds(v0, VC), :] = jnp.maximum(attn_h + hin_c, 0.0)      # res + ReLU
            return carry_c

        return lax.fori_loop(0, NC, chunk_body, carry)

    lax.fori_loop(0, depth, layer_body, 0)

    # ---------------- atom_out(cat([node, h])) as split matmul + mean readout -----
    h_flat = h_ref[...].reshape(G * N, H).astype(jnp.bfloat16)
    node_out = _leaky(_mm(node_flat, w_outx_ref[...])
                      + _mm(h_flat, w_outh_ref[...])
                      + b_out_ref[...])                                # (G*N, F_out) f32
    out_ref[...] = jnp.sum(node_out.reshape(G, N, F_out), axis=1) * (1.0 / N)


# ----------------------------------------------------------------------------
# Wrapper
# ----------------------------------------------------------------------------
def _zero_index(ndim, i):
    return (0,) * ndim


def _full_spec(a):
    return pl.BlockSpec(a.shape, functools.partial(_zero_index, a.ndim))


def _pick_graphs_per_step(batch, max_graphs=8):
    """Largest layout-legal G (G == batch or G % 8 == 0) that divides the batch,
    preferring grid length >= 2 so both v7x TensorCores get work."""
    candidates = [g for g in range(1, min(batch, max_graphs) + 1)
                  if batch % g == 0 and (g % 8 == 0 or g == batch)]
    multi = [g for g in candidates if batch // g >= 2]
    pool = multi if multi else candidates
    return max(pool) if pool else batch


def _pick_dest_chunk(n, max_chunk=32):
    """Destination-node chunk size: bounds the (G, VC, N, H) intermediates."""
    if n <= max_chunk:
        return n
    for c in range(max_chunk, 0, -1):
        if n % c == 0 and c % 8 == 0:
            return c
    for c in range(max_chunk, 0, -1):
        if n % c == 0:
            return c
    return n


def _vmem_limit_bytes():
    cap = 128 * 1024 * 1024
    try:
        cap = int(getattr(pltpu.get_tpu_info(), "vmem_capacity_bytes", cap))
    except Exception:
        pass
    # ~96 MiB on v5e/v6e (128 MiB physical), ~48 MiB on v7x (64 MiB physical)
    return max(32 * 1024 * 1024, min(cap * 3 // 4, 100 * 1024 * 1024))


def _fuse_params(params, node_in):
    """Fused / split / bf16-cast parameter list fed to the kernel."""
    bf16 = jnp.bfloat16
    H = params["w_inp"].shape[1]

    # per-layer fused node projections, columns = [a_src | m_src | a_dst | m_dst | w_n]
    w_ncat = jnp.concatenate(
        [params["w_asrc"], params["w_msrc"], params["w_adst"],
         params["w_mdst"], params["w_wn"]], axis=2).astype(bf16)            # (D, H, 5H)
    b_ncat = jnp.concatenate(
        [params["b_asrc"], params["b_msrc"], params["b_adst"],
         params["b_mdst"], params["b_wn"]], axis=2)                         # (D, 1, 5H)

    # per-layer fused edge projections, columns = [a_edg | m_edg]
    w_ecat = jnp.concatenate([params["w_aedg"], params["w_medg"]], axis=2).astype(bf16)
    b_ecat = jnp.concatenate([params["b_aedg"], params["b_medg"]], axis=2)  # (D, 1, 2H)

    # attn_dot weights as a lane-padded (H, 128) column -> MXU score reduce
    w_adot = jnp.swapaxes(params["w_adot"], 1, 2)                           # (D, H, 1)
    w_adot = jnp.pad(w_adot, ((0, 0), (0, 0), (0, _SCORE_LANES - 1))).astype(bf16)

    return [
        params["w_inp"].astype(bf16), params["b_inp"],
        w_ncat, b_ncat,
        w_ecat, b_ecat,
        w_adot, params["b_adot"],
        params["w_out"][:node_in].astype(bf16),
        params["w_out"][node_in:].astype(bf16),
        params["b_out"],
    ]


def gtn_predictor_forward(node_feats, edge_feats, params,
                          graphs_per_step=None, dest_chunk=None):
    B, N, Fin = node_feats.shape
    Ein = edge_feats.shape[-1]
    H = params["w_inp"].shape[1]
    D = params["w_asrc"].shape[0]
    F_out = params["w_out"].shape[1]

    G = graphs_per_step or _pick_graphs_per_step(B)
    assert B % G == 0, "graphs_per_step must divide the batch"
    VC = dest_chunk or _pick_dest_chunk(N)
    assert N % VC == 0, "dest_chunk must divide the node count"

    node_bf = node_feats.astype(jnp.bfloat16)
    edge_bf = edge_feats.astype(jnp.bfloat16)          # (B, N, N, Ein)
    weights = _fuse_params(params, Fin)

    # TODO(synk): for very large N with small Ein on v7x, the (G, N, N, Ein)
    # edge block is lane-padded to 128; pre-pack edge rows lane-dense or DMA
    # per-destination-chunk slices manually (pl.ANY + make_async_copy).
    in_specs = [
        pl.BlockSpec((G, N, Fin), lambda i: (i, 0, 0)),
        pl.BlockSpec((G, N, N, Ein), lambda i: (i, 0, 0, 0)),
    ] + [_full_spec(w) for w in weights]

    # advisory cost estimate (MXU flops only)
    def mmf(m, k, n):
        return 2 * m * k * n
    flops_per_graph = (
        mmf(N, Fin, H)
        + D * (mmf(N, H, 5 * H) + mmf(N * N, Ein, 2 * H) + mmf(N * N, H, _SCORE_LANES))
        + mmf(N, Fin, F_out) + mmf(N, H, F_out))
    transcendentals = B * D * (N * N + N)               # exp + reciprocal
    bytes_in = sum(int(a.size) * a.dtype.itemsize for a in [node_bf, edge_bf] + weights)
    bytes_out = B * F_out * 4

    graph_feats = pl.pallas_call(
        functools.partial(gtn_kernel, vc=VC),
        out_shape=jax.ShapeDtypeStruct((B, F_out), jnp.float32),
        grid=(B // G,),
        in_specs=in_specs,
        out_specs=pl.BlockSpec((G, F_out), lambda i: (i, 0)),
        scratch_shapes=[
            pltpu.VMEM((G, N, H), jnp.float32),          # atom_input (residual)
            pltpu.VMEM((G, N, H), jnp.float32),          # atom_h (carried state)
            pltpu.VMEM((G, N, 2 * H), jnp.float32),      # [a_src | m_src]
            pltpu.VMEM((G, N, 3 * H), jnp.float32),      # [a_dst | m_dst | w_n]
        ],
        compiler_params=pltpu.CompilerParams(
            dimension_semantics=("parallel",),
            vmem_limit_bytes=_vmem_limit_bytes()),
        cost_estimate=pl.CostEstimate(
            flops=int(B * flops_per_graph),
            transcendentals=int(transcendentals),
            bytes_accessed=int(bytes_in + bytes_out)),
    )(node_bf, edge_bf, *weights)

    # ------------- decoder (Linear -> ReLU -> Linear) over the whole batch -------
    def dot(x, w):
        return jnp.dot(x.astype(jnp.bfloat16), w.astype(jnp.bfloat16),
                       preferred_element_type=jnp.float32)
    hdec = jax.nn.relu(dot(graph_feats, params["w_dec1"]) + params["b_dec1"])
    return dot(hdec, params["w_dec2"]) + params["b_dec2"]


# ----------------------------------------------------------------------------
# Parameter init (torch.nn.Linear-style uniform init; weights stored (in, out))
# ----------------------------------------------------------------------------
def init_params(key, node_in, edge_in, node_out, node_hid, depth,
                predictor_hidden, n_tasks):
    keys = iter(jax.random.split(key, 2 * (4 + 8 * depth)))

    def linear(fan_in, fan_out):
        kw, kb = next(keys), next(keys)
        bound = 1.0 / (fan_in ** 0.5)
        w = jax.random.uniform(kw, (fan_in, fan_out), jnp.float32, -bound, bound)
        b = jax.random.uniform(kb, (fan_out,), jnp.float32, -bound, bound)
        return w, b

    def stacked(fan_in, fan_out):
        ws, bs = zip(*(linear(fan_in, fan_out) for _ in range(depth)))
        return jnp.stack(ws), jnp.stack(bs)[:, None, :]   # (D, in, out), (D, 1, out)

    p = {}
    w, b = linear(node_in, node_hid)
    p["w_inp"], p["b_inp"] = w, b[None, :]
    p["w_asrc"], p["b_asrc"] = stacked(node_hid, node_hid)
    p["w_adst"], p["b_adst"] = stacked(node_hid, node_hid)
    p["w_aedg"], p["b_aedg"] = stacked(edge_in, node_hid)
    wdot, bdot = stacked(node_hid, 1)
    p["w_adot"] = wdot[:, :, 0][:, None, :]               # (D, 1, H)
    p["b_adot"] = bdot                                    # (D, 1, 1)
    p["w_msrc"], p["b_msrc"] = stacked(node_hid, node_hid)
    p["w_mdst"], p["b_mdst"] = stacked(node_hid, node_hid)
    p["w_medg"], p["b_medg"] = stacked(edge_in, node_hid)
    p["w_wn"], p["b_wn"] = stacked(node_hid, node_hid)
    w, b = linear(node_in + node_hid, node_out)
    p["w_out"], p["b_out"] = w, b[None, :]
    w, b = linear(node_out, predictor_hidden)
    p["w_dec1"], p["b_dec1"] = w, b[None, :]
    w, b = linear(predictor_hidden, n_tasks)
    p["w_dec2"], p["b_dec2"] = w, b[None, :]
    return p


# ----------------------------------------------------------------------------
# Pure-JAX reference (identical math; mirrors the kernel's bf16-operand /
# f32-accumulation precision so the comparison is apples-to-apples)
# ----------------------------------------------------------------------------
def gtn_reference(node_feats, edge_feats, params):
    B, N, node_in = node_feats.shape
    H = params["w_inp"].shape[1]
    depth = params["w_asrc"].shape[0]

    def dot(x, w):
        return jnp.dot(x.astype(jnp.bfloat16), w.astype(jnp.bfloat16),
                       preferred_element_type=jnp.float32)

    outs = []
    for b in range(B):
        x = node_feats[b]
        ef = edge_feats[b].reshape(N * N, -1)
        atom_input = _leaky(dot(x, params["w_inp"]) + params["b_inp"])
        h = atom_input
        for d in range(depth):
            a_src = dot(h, params["w_asrc"][d]) + params["b_asrc"][d]
            a_dst = dot(h, params["w_adst"][d]) + params["b_adst"][d]
            a_edg = (dot(ef, params["w_aedg"][d]) + params["b_aedg"][d]).reshape(N, N, H)
            e = _leaky(a_dst[:, None, :] + a_src[None, :, :] + a_edg)
            s = (dot(e.reshape(N * N, H), params["w_adot"][d].T).reshape(N, N)
                 + params["b_adot"][d])
            alpha = jax.nn.softmax(s, axis=-1)
            m_src = dot(h, params["w_msrc"][d]) + params["b_msrc"][d]
            m_dst = dot(h, params["w_mdst"][d]) + params["b_mdst"][d]
            m_edg = (dot(ef, params["w_medg"][d]) + params["b_medg"][d]).reshape(N, N, H)
            msg = _leaky(m_dst[:, None, :] + m_src[None, :, :] + m_edg)
            agg = jnp.sum(alpha[:, :, None] * msg, axis=1)
            attn_h = _leaky(agg + dot(h, params["w_wn"][d]) + params["b_wn"][d])
            h = jax.nn.relu(attn_h + atom_input)
        node_out = _leaky(dot(x, params["w_out"][:node_in])
                          + dot(h, params["w_out"][node_in:])
                          + params["b_out"])
        gfeat = jnp.mean(node_out, axis=0, keepdims=True)
        hdec = jax.nn.relu(dot(gfeat, params["w_dec1"]) + params["b_dec1"])
        outs.append(dot(hdec, params["w_dec2"]) + params["b_dec2"])
    return jnp.concatenate(outs, axis=0)


if __name__ == "__main__":
    # small but representative hyper-parameters
    B, N = 16, 8                  # 16 complete graphs, 8 nodes each
    node_in, edge_in = 16, 8
    node_out, node_hid = 32, 32
    depth, n_tasks, pred_hid = 2, 1, 32

    key = jax.random.PRNGKey(0)
    kp, kn, ke = jax.random.split(key, 3)
    params = init_params(kp, node_in, edge_in, node_out, node_hid, depth,
                         pred_hid, n_tasks)
    node_feats = jax.random.normal(kn, (B, N, node_in), jnp.float32)
    edge_feats = jax.random.normal(ke, (B, N, N, edge_in), jnp.float32)

    y = jax.block_until_ready(gtn_predictor_forward(node_feats, edge_feats, params))
    y_ref = gtn_reference(node_feats, edge_feats, params)

    assert y.shape == (B, n_tasks)
    assert bool(jnp.all(jnp.isfinite(y)))
    assert bool(jnp.allclose(y, y_ref, rtol=5e-2, atol=5e-2))
    print("KERNEL_OK")
</pallas_src>

<mosaic_0001>
module attributes {stable_mosaic.version = 11 : i64} {
  func.func @gtn_kernel(%arg0: i32, %arg1: memref<8x8x16xbf16, #tpu.memory_space<vmem>>, %arg2: memref<8x8x8x8xbf16, #tpu.memory_space<vmem>>, %arg3: memref<16x32xbf16, #tpu.memory_space<vmem>>, %arg4: memref<1x32xf32, #tpu.memory_space<vmem>>, %arg5: memref<2x32x160xbf16, #tpu.memory_space<vmem>>, %arg6: memref<2x1x160xf32, #tpu.memory_space<vmem>>, %arg7: memref<2x8x64xbf16, #tpu.memory_space<vmem>>, %arg8: memref<2x1x64xf32, #tpu.memory_space<vmem>>, %arg9: memref<2x32x128xbf16, #tpu.memory_space<vmem>>, %arg10: memref<2x1x1xf32, #tpu.memory_space<vmem>>, %arg11: memref<16x32xbf16, #tpu.memory_space<vmem>>, %arg12: memref<32x32xbf16, #tpu.memory_space<vmem>>, %arg13: memref<1x32xf32, #tpu.memory_space<vmem>>, %arg14: memref<8x32xf32, #tpu.memory_space<vmem>>, %arg15: memref<8x8x32xf32, #tpu.memory_space<vmem>>, %arg16: memref<8x8x32xf32, #tpu.memory_space<vmem>>, %arg17: memref<8x8x64xf32, #tpu.memory_space<vmem>>, %arg18: memref<8x8x96xf32, #tpu.memory_space<vmem>>) attributes {dimension_semantics = [#tpu.dimension_semantics<parallel>], iteration_bounds = array<i64: 2>, scalar_prefetch = 0 : i64, scratch_operands = 4 : i64, tpu.core_type = #tpu.core_type<tc>, window_params = [{transform_indices = @transform_0, window_bounds = array<i64: 8, 8, 16>}, {transform_indices = @transform_1, window_bounds = array<i64: 8, 8, 8, 8>}, {pipeline_mode = #tpu.pipeline_mode<synchronous>, transform_indices = @transform_2, window_bounds = array<i64: 16, 32>}, {pipeline_mode = #tpu.pipeline_mode<synchronous>, transform_indices = @transform_3, window_bounds = array<i64: 1, 32>}, {pipeline_mode = #tpu.pipeline_mode<synchronous>, transform_indices = @transform_4, window_bounds = array<i64: 2, 32, 160>}, {pipeline_mode = #tpu.pipeline_mode<synchronous>, transform_indices = @transform_5, window_bounds = array<i64: 2, 1, 160>}, {pipeline_mode = #tpu.pipeline_mode<synchronous>, transform_indices = @transform_6, window_bounds = array<i64: 2, 8, 64>}, {pipeline_mode = #tpu.pipeline_mode<synchronous>, transform_indices = @transform_7, window_bounds = array<i64: 2, 1, 64>}, {pipeline_mode = #tpu.pipeline_mode<synchronous>, transform_indices = @transform_8, window_bounds = array<i64: 2, 32, 128>}, {pipeline_mode = #tpu.pipeline_mode<synchronous>, transform_indices = @transform_9, window_bounds = array<i64: 2, 1, 1>}, {pipeline_mode = #tpu.pipeline_mode<synchronous>, transform_indices = @transform_10, window_bounds = array<i64: 16, 32>}, {pipeline_mode = #tpu.pipeline_mode<synchronous>, transform_indices = @transform_11, window_bounds = array<i64: 32, 32>}, {pipeline_mode = #tpu.pipeline_mode<synchronous>, transform_indices = @transform_12, window_bounds = array<i64: 1, 32>}, {transform_indices = @transform_13, window_bounds = array<i64: 8, 32>}]} {
    %c0 = arith.constant 0 : index
    %c0_0 = arith.constant 0 : index
    %c0_1 = arith.constant 0 : index
    %0 = vector.load %arg1[%c0, %c0_0, %c0_1] : memref<8x8x16xbf16, #tpu.memory_space<vmem>>, vector<8x8x16xbf16>
    %1 = vector.shape_cast %0 : vector<8x8x16xbf16> to vector<64x16xbf16>
    %c0_2 = arith.constant 0 : index
    %c0_3 = arith.constant 0 : index
    %2 = vector.load %arg3[%c0_2, %c0_3] : memref<16x32xbf16, #tpu.memory_space<vmem>>, vector<16x32xbf16>
    %cst = arith.constant dense<0.000000e+00> : vector<64x32xf32>
    %3 = tpu.matmul %1, %2, %cst {dimension_numbers = #tpu.dot_dimension_numbers<[1], [0], [0], [1], [0, 0, 1, 1], [], []>} : vector<64x16xbf16>, vector<16x32xbf16>, vector<64x32xf32> -> vector<64x32xf32>
    %c0_4 = arith.constant 0 : index
    %c0_5 = arith.constant 0 : index
    %4 = vector.load %arg4[%c0_4, %c0_5] : memref<1x32xf32, #tpu.memory_space<vmem>>, vector<1x32xf32>
    %5 = vector.broadcast %4 : vector<1x32xf32> to vector<64x32xf32>
    %6 = arith.addf %3, %5 : vector<64x32xf32>
    %cst_6 = arith.constant 0.000000e+00 : f32
    %7 = vector.broadcast %cst_6 : f32 to vector<64x32xf32>
    %8 = arith.cmpf oge, %6, %7 : vector<64x32xf32>
    %cst_7 = arith.constant 2.000000e-01 : f32
    %9 = vector.broadcast %cst_7 : f32 to vector<64x32xf32>
    %10 = arith.mulf %9, %6 : vector<64x32xf32>
    %11 = arith.select %8, %6, %10 : vector<64x32xi1>, vector<64x32xf32>
    %12 = vector.shape_cast %11 : vector<64x32xf32> to vector<8x8x32xf32>
    %c0_8 = arith.constant 0 : index
    %c0_9 = arith.constant 0 : index
    %c0_10 = arith.constant 0 : index
    %13 = vector.load %arg15[%c0_8, %c0_9, %c0_10] : memref<8x8x32xf32, #tpu.memory_space<vmem>>, vector<8x8x32xf32>
    tpu.vector_store %arg15[%c0_8, %c0_9, %c0_10], %12 {strides = array<i32>} : memref<8x8x32xf32, #tpu.memory_space<vmem>>, vector<8x8x32xf32>,
    %14 = vector.shape_cast %11 : vector<64x32xf32> to vector<8x8x32xf32>
    %c0_11 = arith.constant 0 : index
    %c0_12 = arith.constant 0 : index
    %c0_13 = arith.constant 0 : index
    %15 = vector.load %arg16[%c0_11, %c0_12, %c0_13] : memref<8x8x32xf32, #tpu.memory_space<vmem>>, vector<8x8x32xf32>
    tpu.vector_store %arg16[%c0_11, %c0_12, %c0_13], %14 {strides = array<i32>} : memref<8x8x32xf32, #tpu.memory_space<vmem>>, vector<8x8x32xf32>,
    %c0_i32 = arith.constant 0 : i32
    %c2_i32 = arith.constant 2 : i32
    %16 = arith.addi %c0_i32, %c2_i32 : i32
    %c1_i32 = arith.constant 1 : i32
    scf.for %arg19 = %c0_i32 to %16 step %c1_i32  : i32 {
      %38 = arith.index_cast %arg19 : i32 to index
      %c0_32 = arith.constant 0 : index
      %c0_33 = arith.constant 0 : index
      %39 = vector.load %arg5[%38, %c0_32, %c0_33] : memref<2x32x160xbf16, #tpu.memory_space<vmem>>, vector<1x32x160xbf16>
      %40 = vector.shape_cast %39 : vector<1x32x160xbf16> to vector<32x160xbf16>
      %41 = arith.index_cast %arg19 : i32 to index
      %c0_34 = arith.constant 0 : index
      %c0_35 = arith.constant 0 : index
      %42 = vector.load %arg6[%41, %c0_34, %c0_35] : memref<2x1x160xf32, #tpu.memory_space<vmem>>, vector<1x1x160xf32>
      %43 = vector.shape_cast %42 : vector<1x1x160xf32> to vector<1x160xf32>
      %44 = arith.index_cast %arg19 : i32 to index
      %c0_36 = arith.constant 0 : index
      %c0_37 = arith.constant 0 : index
      %45 = vector.load %arg7[%44, %c0_36, %c0_37] : memref<2x8x64xbf16, #tpu.memory_space<vmem>>, vector<1x8x64xbf16>
      %46 = vector.shape_cast %45 : vector<1x8x64xbf16> to vector<8x64xbf16>
      %47 = arith.index_cast %arg19 : i32 to index
      %c0_38 = arith.constant 0 : index
      %c0_39 = arith.constant 0 : index
      %48 = vector.load %arg8[%47, %c0_38, %c0_39] : memref<2x1x64xf32, #tpu.memory_space<vmem>>, vector<1x1x64xf32>
      %49 = vector.shape_cast %48 : vector<1x1x64xf32> to vector<1x64xf32>
      %50 = arith.index_cast %arg19 : i32 to index
      %c0_40 = arith.constant 0 : index
      %c0_41 = arith.constant 0 : index
      %51 = vector.load %arg9[%50, %c0_40, %c0_41] : memref<2x32x128xbf16, #tpu.memory_space<vmem>>, vector<1x32x128xbf16>
      %52 = vector.shape_cast %51 : vector<1x32x128xbf16> to vector<32x128xbf16>
      %53 = arith.index_cast %arg19 : i32 to index
      %c0_42 = arith.constant 0 : index
      %c0_43 = arith.constant 0 : index
      %54 = vector.load %arg10[%53, %c0_42, %c0_43] : memref<2x1x1xf32, #tpu.memory_space<vmem>>, vector<1x1x1xf32>
      %55 = vector.shape_cast %54 : vector<1x1x1xf32> to vector<1x1xf32>
      %c0_44 = arith.constant 0 : index
      %c0_45 = arith.constant 0 : index
      %c0_46 = arith.constant 0 : index
      %56 = vector.load %arg16[%c0_44, %c0_45, %c0_46] : memref<8x8x32xf32, #tpu.memory_space<vmem>>, vector<8x8x32xf32>
      %57 = vector.shape_cast %56 : vector<8x8x32xf32> to vector<64x32xf32>
      %58 = arith.truncf %57 : vector<64x32xf32> to vector<64x32xbf16>
      %cst_47 = arith.constant dense<0.000000e+00> : vector<64x160xf32>
      %59 = tpu.matmul %58, %40, %cst_47 {dimension_numbers = #tpu.dot_dimension_numbers<[1], [0], [0], [1], [0, 0, 1, 1], [], []>} : vector<64x32xbf16>, vector<32x160xbf16>, vector<64x160xf32> -> vector<64x160xf32>
      %60 = vector.broadcast %43 : vector<1x160xf32> to vector<64x160xf32>
      %61 = arith.addf %59, %60 : vector<64x160xf32>
      %62 = vector.extract_strided_slice %61 {offsets = [0, 0], sizes = [64, 64], strides = [1, 1]} : vector<64x160xf32> to vector<64x64xf32>
      %63 = vector.shape_cast %62 : vector<64x64xf32> to vector<8x8x64xf32>
      %c0_48 = arith.constant 0 : index
      %c0_49 = arith.constant 0 : index
      %c0_50 = arith.constant 0 : index
      %64 = vector.load %arg17[%c0_48, %c0_49, %c0_50] : memref<8x8x64xf32, #tpu.memory_space<vmem>>, vector<8x8x64xf32>
      tpu.vector_store %arg17[%c0_48, %c0_49, %c0_50], %63 {strides = array<i32>} : memref<8x8x64xf32, #tpu.memory_space<vmem>>, vector<8x8x64xf32>,
      %65 = vector.extract_strided_slice %61 {offsets = [0, 64], sizes = [64, 96], strides = [1, 1]} : vector<64x160xf32> to vector<64x96xf32>
      %66 = vector.shape_cast %65 : vector<64x96xf32> to vector<8x8x96xf32>
      %c0_51 = arith.constant 0 : index
      %c0_52 = arith.constant 0 : index
      %c0_53 = arith.constant 0 : index
      %67 = vector.load %arg18[%c0_51, %c0_52, %c0_53] : memref<8x8x96xf32, #tpu.memory_space<vmem>>, vector<8x8x96xf32>
      tpu.vector_store %arg18[%c0_51, %c0_52, %c0_53], %66 {strides = array<i32>} : memref<8x8x96xf32, #tpu.memory_space<vmem>>, vector<8x8x96xf32>,
      %c0_i32_54 = arith.constant 0 : i32
      %c8_i32 = arith.constant 8 : i32
      %68 = arith.muli %c0_i32_54, %c8_i32 : i32
      %69 = tpu.assume_multiple %68, 8 : i32
      %c0_55 = arith.constant 0 : index
      %c0_56 = arith.constant 0 : index
      %c0_57 = arith.constant 0 : index
      %70 = vector.load %arg17[%c0_55, %c0_56, %c0_57] : memref<8x8x64xf32, #tpu.memory_space<vmem>>, vector<8x8x64xf32>
      %71 = vector.extract_strided_slice %70 {offsets = [0, 0, 0], sizes = [8, 8, 32], strides = [1, 1, 1]} : vector<8x8x64xf32> to vector<8x8x32xf32>
      %72 = vector.extract_strided_slice %70 {offsets = [0, 0, 32], sizes = [8, 8, 32], strides = [1, 1, 1]} : vector<8x8x64xf32> to vector<8x8x32xf32>
      %c0_58 = arith.constant 0 : index
      %73 = arith.index_cast %69 : i32 to index
      %c0_59 = arith.constant 0 : index
      %74 = vector.load %arg18[%c0_58, %73, %c0_59] : memref<8x8x96xf32, #tpu.memory_space<vmem>>, vector<8x8x96xf32>
      %75 = vector.extract_strided_slice %74 {offsets = [0, 0, 0], sizes = [8, 8, 32], strides = [1, 1, 1]} : vector<8x8x96xf32> to vector<8x8x32xf32>
      %76 = vector.extract_strided_slice %74 {offsets = [0, 0, 32], sizes = [8, 8, 32], strides = [1, 1, 1]} : vector<8x8x96xf32> to vector<8x8x32xf32>
      %77 = vector.extract_strided_slice %74 {offsets = [0, 0, 64], sizes = [8, 8, 32], strides = [1, 1, 1]} : vector<8x8x96xf32> to vector<8x8x32xf32>
      %c0_60 = arith.constant 0 : index
      %78 = arith.index_cast %69 : i32 to index
      %c0_61 = arith.constant 0 : index
      %c0_62 = arith.constant 0 : index
      %79 = vector.load %arg2[%c0_60, %78, %c0_61, %c0_62] : memref<8x8x8x8xbf16, #tpu.memory_space<vmem>>, vector<8x8x8x8xbf16>
      %80 = vector.shape_cast %79 : vector<8x8x8x8xbf16> to vector<512x8xbf16>
      %cst_63 = arith.constant dense<0.000000e+00> : vector<512x64xf32>
      %81 = tpu.matmul %80, %46, %cst_63 {dimension_numbers = #tpu.dot_dimension_numbers<[1], [0], [0], [1], [0, 0, 1, 1], [], []>} : vector<512x8xbf16>, vector<8x64xbf16>, vector<512x64xf32> -> vector<512x64xf32>
      %82 = vector.broadcast %49 : vector<1x64xf32> to vector<512x64xf32>
      %83 = arith.addf %81, %82 : vector<512x64xf32>
      %84 = vector.shape_cast %83 : vector<512x64xf32> to vector<8x8x8x64xf32>
      %85 = vector.extract_strided_slice %84 {offsets = [0, 0, 0, 0], sizes = [8, 8, 8, 32], strides = [1, 1, 1, 1]} : vector<8x8x8x64xf32> to vector<8x8x8x32xf32>
      %86 = vector.extract_strided_slice %84 {offsets = [0, 0, 0, 32], sizes = [8, 8, 8, 32], strides = [1, 1, 1, 1]} : vector<8x8x8x64xf32> to vector<8x8x8x32xf32>
      %87 = vector.shape_cast %75 : vector<8x8x32xf32> to vector<8x8x1x32xf32>
      %88 = vector.shape_cast %71 : vector<8x8x32xf32> to vector<8x1x8x32xf32>
      %89 = vector.broadcast %87 : vector<8x8x1x32xf32> to vector<8x8x8x32xf32>
      %90 = vector.broadcast %88 : vector<8x1x8x32xf32> to vector<8x8x8x32xf32>
      %91 = arith.addf %89, %90 : vector<8x8x8x32xf32>
      %92 = arith.addf %91, %85 : vector<8x8x8x32xf32>
      %cst_64 = arith.constant 0.000000e+00 : f32
      %93 = vector.broadcast %cst_64 : f32 to vector<8x8x8x32xf32>
      %94 = arith.cmpf oge, %92, %93 : vector<8x8x8x32xf32>
      %cst_65 = arith.constant 2.000000e-01 : f32
      %95 = vector.broadcast %cst_65 : f32 to vector<8x8x8x32xf32>
      %96 = arith.mulf %95, %92 : vector<8x8x8x32xf32>
      %97 = arith.select %94, %92, %96 : vector<8x8x8x32xi1>, vector<8x8x8x32xf32>
      %98 = vector.shape_cast %97 : vector<8x8x8x32xf32> to vector<512x32xf32>
      %99 = arith.truncf %98 : vector<512x32xf32> to vector<512x32xbf16>
      %cst_66 = arith.constant dense<0.000000e+00> : vector<512x128xf32>
      %100 = tpu.matmul %99, %52, %cst_66 {dimension_numbers = #tpu.dot_dimension_numbers<[1], [0], [0], [1], [0, 0, 1, 1], [], []>} : vector<512x32xbf16>, vector<32x128xbf16>, vector<512x128xf32> -> vector<512x128xf32>
      %101 = vector.shape_cast %100 : vector<512x128xf32> to vector<8x8x8x128xf32>
      %cst_67 = arith.constant dense<0.000000e+00> : vector<8x8x8xf32>
      %102 = vector.multi_reduction <add>, %101, %cst_67 [3] : vector<8x8x8x128xf32> to vector<8x8x8xf32>
      %103 = vector.shape_cast %55 : vector<1x1xf32> to vector<1x1x1xf32>
      %104 = vector.broadcast %103 : vector<1x1x1xf32> to vector<8x8x8xf32>
      %105 = arith.addf %102, %104 : vector<8x8x8xf32>
      %cst_68 = arith.constant dense<0xFF800000> : vector<8x8xf32>
      %106 = vector.multi_reduction <maximumf>, %105, %cst_68 [2] : vector<8x8x8xf32> to vector<8x8xf32>
      %107 = vector.shape_cast %106 : vector<8x8xf32> to vector<8x8x1xf32>
      %108 = vector.broadcast %107 : vector<8x8x1xf32> to vector<8x8x8xf32>
      %109 = arith.subf %105, %108 : vector<8x8x8xf32>
      %110 = math.exp %109 : vector<8x8x8xf32>
      %cst_69 = arith.constant dense<0.000000e+00> : vector<8x8xf32>
      %111 = vector.multi_reduction <add>, %110, %cst_69 [2] : vector<8x8x8xf32> to vector<8x8xf32>
      %112 = vector.shape_cast %111 : vector<8x8xf32> to vector<8x8x1xf32>
      %113 = tpu.reciprocal %112 {approx = true} : vector<8x8x1xf32> -> vector<8x8x1xf32>
      %114 = vector.broadcast %113 : vector<8x8x1xf32> to vector<8x8x8xf32>
      %115 = arith.mulf %110, %114 : vector<8x8x8xf32>
      %116 = vector.shape_cast %76 : vector<8x8x32xf32> to vector<8x8x1x32xf32>
      %117 = vector.shape_cast %72 : vector<8x8x32xf32> to vector<8x1x8x32xf32>
      %118 = vector.broadcast %116 : vector<8x8x1x32xf32> to vector<8x8x8x32xf32>
      %119 = vector.broadcast %117 : vector<8x1x8x32xf32> to vector<8x8x8x32xf32>
      %120 = arith.addf %118, %119 : vector<8x8x8x32xf32>
      %121 = arith.addf %120, %86 : vector<8x8x8x32xf32>
      %cst_70 = arith.constant 0.000000e+00 : f32
      %122 = vector.broadcast %cst_70 : f32 to vector<8x8x8x32xf32>
      %123 = arith.cmpf oge, %121, %122 : vector<8x8x8x32xf32>
      %cst_71 = arith.constant 2.000000e-01 : f32
      %124 = vector.broadcast %cst_71 : f32 to vector<8x8x8x32xf32>
      %125 = arith.mulf %124, %121 : vector<8x8x8x32xf32>
      %126 = arith.select %123, %121, %125 : vector<8x8x8x32xi1>, vector<8x8x8x32xf32>
      %127 = vector.shape_cast %115 : vector<8x8x8xf32> to vector<8x8x8x1xf32>
      %128 = vector.broadcast %127 : vector<8x8x8x1xf32> to vector<8x8x8x32xf32>
      %129 = arith.mulf %128, %126 : vector<8x8x8x32xf32>
      %cst_72 = arith.constant dense<0.000000e+00> : vector<8x8x32xf32>
      %130 = vector.multi_reduction <add>, %129, %cst_72 [2] : vector<8x8x8x32xf32> to vector<8x8x32xf32>
      %131 = arith.addf %130, %77 : vector<8x8x32xf32>
      %cst_73 = arith.constant 0.000000e+00 : f32
      %132 = vector.broadcast %cst_73 : f32 to vector<8x8x32xf32>
      %133 = arith.cmpf oge, %131, %132 : vector<8x8x32xf32>
      %cst_74 = arith.constant 2.000000e-01 : f32
      %134 = vector.broadcast %cst_74 : f32 to vector<8x8x32xf32>
      %135 = arith.mulf %134, %131 : vector<8x8x32xf32>
      %136 = arith.select %133, %131, %135 : vector<8x8x32xi1>, vector<8x8x32xf32>
      %c0_75 = arith.constant 0 : index
      %137 = arith.index_cast %69 : i32 to index
      %c0_76 = arith.constant 0 : index
      %138 = vector.load %arg15[%c0_75, %137, %c0_76] : memref<8x8x32xf32, #tpu.memory_space<vmem>>, vector<8x8x32xf32>
      %139 = arith.addf %136, %138 : vector<8x8x32xf32>
      %cst_77 = arith.constant 0.000000e+00 : f32
      %140 = vector.broadcast %cst_77 : f32 to vector<8x8x32xf32>
      %141 = arith.maximumf %139, %140 : vector<8x8x32xf32>
      %c0_78 = arith.constant 0 : index
      %142 = arith.index_cast %69 : i32 to index
      %c0_79 = arith.constant 0 : index
      %143 = vector.load %arg16[%c0_78, %142, %c0_79] : memref<8x8x32xf32, #tpu.memory_space<vmem>>, vector<8x8x32xf32>
      tpu.vector_store %arg16[%c0_78, %142, %c0_79], %141 {strides = array<i32>} : memref<8x8x32xf32, #tpu.memory_space<vmem>>, vector<8x8x32xf32>,
      %c1_i32_80 = arith.constant 1 : i32
    }
    %c2_i32_14 = arith.constant 2 : i32
    %c0_15 = arith.constant 0 : index
    %c0_16 = arith.constant 0 : index
    %c0_17 = arith.constant 0 : index
    %17 = vector.load %arg16[%c0_15, %c0_16, %c0_17] : memref<8x8x32xf32, #tpu.memory_space<vmem>>, vector<8x8x32xf32>
    %18 = vector.shape_cast %17 : vector<8x8x32xf32> to vector<64x32xf32>
    %19 = arith.truncf %18 : vector<64x32xf32> to vector<64x32xbf16>
    %c0_18 = arith.constant 0 : index
    %c0_19 = arith.constant 0 : index
    %20 = vector.load %arg11[%c0_18, %c0_19] : memref<16x32xbf16, #tpu.memory_space<vmem>>, vector<16x32xbf16>
    %cst_20 = arith.constant dense<0.000000e+00> : vector<64x32xf32>
    %21 = tpu.matmul %1, %20, %cst_20 {dimension_numbers = #tpu.dot_dimension_numbers<[1], [0], [0], [1], [0, 0, 1, 1], [], []>} : vector<64x16xbf16>, vector<16x32xbf16>, vector<64x32xf32> -> vector<64x32xf32>
    %c0_21 = arith.constant 0 : index
    %c0_22 = arith.constant 0 : index
    %22 = vector.load %arg12[%c0_21, %c0_22] : memref<32x32xbf16, #tpu.memory_space<vmem>>, vector<32x32xbf16>
    %cst_23 = arith.constant dense<0.000000e+00> : vector<64x32xf32>
    %23 = tpu.matmul %19, %22, %cst_23 {dimension_numbers = #tpu.dot_dimension_numbers<[1], [0], [0], [1], [0, 0, 1, 1], [], []>} : vector<64x32xbf16>, vector<32x32xbf16>, vector<64x32xf32> -> vector<64x32xf32>
    %24 = arith.addf %21, %23 : vector<64x32xf32>
    %c0_24 = arith.constant 0 : index
    %c0_25 = arith.constant 0 : index
    %25 = vector.load %arg13[%c0_24, %c0_25] : memref<1x32xf32, #tpu.memory_space<vmem>>, vector<1x32xf32>
    %26 = vector.broadcast %25 : vector<1x32xf32> to vector<64x32xf32>
    %27 = arith.addf %24, %26 : vector<64x32xf32>
    %cst_26 = arith.constant 0.000000e+00 : f32
    %28 = vector.broadcast %cst_26 : f32 to vector<64x32xf32>
    %29 = arith.cmpf oge, %27, %28 : vector<64x32xf32>
    %cst_27 = arith.constant 2.000000e-01 : f32
    %30 = vector.broadcast %cst_27 : f32 to vector<64x32xf32>
    %31 = arith.mulf %30, %27 : vector<64x32xf32>
    %32 = arith.select %29, %27, %31 : vector<64x32xi1>, vector<64x32xf32>
    %33 = vector.shape_cast %32 : vector<64x32xf32> to vector<8x8x32xf32>
    %cst_28 = arith.constant dense<0.000000e+00> : vector<8x32xf32>
    %34 = vector.multi_reduction <add>, %33, %cst_28 [1] : vector<8x8x32xf32> to vector<8x32xf32>
    %cst_29 = arith.constant 1.250000e-01 : f32
    %35 = vector.broadcast %cst_29 : f32 to vector<8x32xf32>
    %36 = arith.mulf %34, %35 : vector<8x32xf32>
    %c0_30 = arith.constant 0 : index
    %c0_31 = arith.constant 0 : index
    %37 = vector.load %arg14[%c0_30, %c0_31] : memref<8x32xf32, #tpu.memory_space<vmem>>, vector<8x32xf32>
    tpu.vector_store %arg14[%c0_30, %c0_31], %36 {strides = array<i32>} : memref<8x32xf32, #tpu.memory_space<vmem>>, vector<8x32xf32>,
    return
  }
  func.func @transform_0(%arg0: i32) -> (i32, i32, i32) {
    %c0_i32 = arith.constant 0 : i32
    %c0_i32_0 = arith.constant 0 : i32
    %c0_i32_1 = arith.constant 0 : i32
    return %arg0, %c0_i32, %c0_i32_0 : i32, i32, i32
  }
  func.func @transform_1(%arg0: i32) -> (i32, i32, i32, i32) {
    %c0_i32 = arith.constant 0 : i32
    %c0_i32_0 = arith.constant 0 : i32
    %c0_i32_1 = arith.constant 0 : i32
    %c0_i32_2 = arith.constant 0 : i32
    return %arg0, %c0_i32, %c0_i32_0, %c0_i32_1 : i32, i32, i32, i32
  }
  func.func @transform_2(%arg0: i32) -> (i32, i32) {
    %c0_i32 = arith.constant 0 : i32
    %c0_i32_0 = arith.constant 0 : i32
    %c0_i32_1 = arith.constant 0 : i32
    return %c0_i32, %c0_i32_0 : i32, i32
  }
  func.func @transform_3(%arg0: i32) -> (i32, i32) {
    %c0_i32 = arith.constant 0 : i32
    %c0_i32_0 = arith.constant 0 : i32
    %c0_i32_1 = arith.constant 0 : i32
    return %c0_i32, %c0_i32_0 : i32, i32
  }
  func.func @transform_4(%arg0: i32) -> (i32, i32, i32) {
    %c0_i32 = arith.constant 0 : i32
    %c0_i32_0 = arith.constant 0 : i32
    %c0_i32_1 = arith.constant 0 : i32
    %c0_i32_2 = arith.constant 0 : i32
    return %c0_i32, %c0_i32_0, %c0_i32_1 : i32, i32, i32
  }
  func.func @transform_5(%arg0: i32) -> (i32, i32, i32) {
    %c0_i32 = arith.constant 0 : i32
    %c0_i32_0 = arith.constant 0 : i32
    %c0_i32_1 = arith.constant 0 : i32
    %c0_i32_2 = arith.constant 0 : i32
    return %c0_i32, %c0_i32_0, %c0_i32_1 : i32, i32, i32
  }
  func.func @transform_6(%arg0: i32) -> (i32, i32, i32) {
    %c0_i32 = arith.constant 0 : i32
    %c0_i32_0 = arith.constant 0 : i32
    %c0_i32_1 = arith.constant 0 : i32
    %c0_i32_2 = arith.constant 0 : i32
    return %c0_i32, %c0_i32_0, %c0_i32_1 : i32, i32, i32
  }
  func.func @transform_7(%arg0: i32) -> (i32, i32, i32) {
    %c0_i32 = arith.constant 0 : i32
    %c0_i32_0 = arith.constant 0 : i32
    %c0_i32_1 = arith.constant 0 : i32
    %c0_i32_2 = arith.constant 0 : i32
    return %c0_i32, %c0_i32_0, %c0_i32_1 : i32, i32, i32
  }
  func.func @transform_8(%arg0: i32) -> (i32, i32, i32) {
    %c0_i32 = arith.constant 0 : i32
    %c0_i32_0 = arith.constant 0 : i32
    %c0_i32_1 = arith.constant 0 : i32
    %c0_i32_2 = arith.constant 0 : i32
    return %c0_i32, %c0_i32_0, %c0_i32_1 : i32, i32, i32
  }
  func.func @transform_9(%arg0: i32) -> (i32, i32, i32) {
    %c0_i32 = arith.constant 0 : i32
    %c0_i32_0 = arith.constant 0 : i32
    %c0_i32_1 = arith.constant 0 : i32
    %c0_i32_2 = arith.constant 0 : i32
    return %c0_i32, %c0_i32_0, %c0_i32_1 : i32, i32, i32
  }
  func.func @transform_10(%arg0: i32) -> (i32, i32) {
    %c0_i32 = arith.constant 0 : i32
    %c0_i32_0 = arith.constant 0 : i32
    %c0_i32_1 = arith.constant 0 : i32
    return %c0_i32, %c0_i32_0 : i32, i32
  }
  func.func @transform_11(%arg0: i32) -> (i32, i32) {
    %c0_i32 = arith.constant 0 : i32
    %c0_i32_0 = arith.constant 0 : i32
    %c0_i32_1 = arith.constant 0 : i32
    return %c0_i32, %c0_i32_0 : i32, i32
  }
  func.func @transform_12(%arg0: i32) -> (i32, i32) {
    %c0_i32 = arith.constant 0 : i32
    %c0_i32_0 = arith.constant 0 : i32
    %c0_i32_1 = arith.constant 0 : i32
    return %c0_i32, %c0_i32_0 : i32, i32
  }
  func.func @transform_13(%arg0: i32) -> (i32, i32) {
    %c0_i32 = arith.constant 0 : i32
    %c0_i32_0 = arith.constant 0 : i32
    return %arg0, %c0_i32 : i32, i32
  }
}

</mosaic_0001>

<llo_original>
// kernel: tpu_custom_call.1
$region0: #{tpu_custom_call.1}
  #allocation0 [shape = 'u32[]', space=smem, size = 0x4, offset = 0x4, fixed_abs, tag = 'smem constant byte address 0x4 - core index']
  #allocation1 [shape = 'u32[72,128]{1,0:T(1,128)}', space=vmem, size = 0x9000, scoped, tag = 'internal scratch']
  #allocation2 [shape = 'f32[8,8,32]{2,1,0:T(8,128)}', space=vmem, size = 0x8000, scoped, tag = 'scratch operand']
  #allocation3 [shape = 'f32[8,8,32]{2,1,0:T(8,128)}', space=vmem, size = 0x8000, scoped, tag = 'scratch operand']
  #allocation4 [shape = 'f32[8,8,64]{2,1,0:T(8,128)}', space=vmem, size = 0x8000, scoped, tag = 'scratch operand']
  #allocation5 [shape = 'f32[8,8,96]{2,1,0:T(8,128)}', space=vmem, size = 0x8000, scoped, tag = 'scratch operand']
  %s0 = inlined_call_operand.vmem [shape: bf16[16,8,16], index: 0, kind: input, shape index: {}]
  %s1 = inlined_call_operand.vmem [shape: bf16[16,8,8,8], index: 1, kind: input, shape index: {}]
  %s2 = inlined_call_operand.vmem [shape: bf16[16,32], index: 2, kind: input, shape index: {}]
  %s3 = inlined_call_operand.vmem [shape: f32[1,32], index: 3, kind: input, shape index: {}]
  %s4 = inlined_call_operand.vmem [shape: bf16[2,32,160], index: 4, kind: input, shape index: {}]
  %s5 = inlined_call_operand.vmem [shape: f32[2,1,160], index: 5, kind: input, shape index: {}]
  %s6 = inlined_call_operand.vmem [shape: bf16[2,8,64], index: 6, kind: input, shape index: {}]
  %s7 = inlined_call_operand.vmem [shape: f32[2,1,64], index: 7, kind: input, shape index: {}]
  %s8 = inlined_call_operand.vmem [shape: bf16[2,32,128], index: 8, kind: input, shape index: {}]
  %s9 = inlined_call_operand.vmem [shape: f32[2,1,1], index: 9, kind: input, shape index: {}]
  %s10 = inlined_call_operand.vmem [shape: bf16[16,32], index: 10, kind: input, shape index: {}]
  %s11 = inlined_call_operand.vmem [shape: bf16[32,32], index: 11, kind: input, shape index: {}]
  %s12 = inlined_call_operand.vmem [shape: f32[1,32], index: 12, kind: input, shape index: {}]
  %s13 = inlined_call_operand.hbm [shape: f32[16,32], index: 13, kind: output, shape index: {}]
  %s14 = sld [smem:[#allocation0]]
  $region92: #{tpu_custom_call.1} parent=0
    _
  %s16 = ssub.s32 1, %s14
  %s17 = scalar_select 0, %s16, %s14
  $region1: #{tpu_custom_call.1} parent=0
    #allocation6 [shape = 'u8[8192]{0}', space=vmem, size = 0x2000, scoped, tag = 'output window, operand 0']
    #allocation7 [shape = 's32[2]{0}', space=sflag, size = 0x8, scoped, tag = 'scoped memory for tpu_custom_call.1']
    %18 = vsyncpa [#allocation7], 0
    %s19 = scalar_lea.sflag [#allocation7], 1
    %20 = vsyncpa %s19, 0
    loop: start=0, step=1, limit=4
    $region2: #{tpu_custom_call.1} parent=1 // loop_pre_header
      _
    $region3: #{tpu_custom_call.1} parent=1 // loop_header
      %s22 = sphi 0, %s26
      %p23 = scmp.ge.s32.totalorder %s22, 4
      %s32 = sphi 0, %s34
      %s35 = sphi 0, %s32
      %s36 = sphi 0, %s35
      %s52 = sphi 0, %s36
      %s58 = sphi 0, %s60
      %s61 = sphi 0, %s58
      %s62 = sphi 0, %s61
      %s78 = sphi 0, %s62
      %s82 = sphi 0, %s82
      %s84 = sphi 0, %s82
      %s85 = sphi 0, %s84
      %s99 = sphi 0, %s85
      %s103 = sphi 0, %s103
      %s105 = sphi 0, %s103
      %s106 = sphi 0, %s105
      %s120 = sphi 0, %s106
      %s124 = sphi 0, %s124
      %s126 = sphi 0, %s124
      %s127 = sphi 0, %s126
      %s141 = sphi 0, %s127
      %s145 = sphi 0, %s145
      %s147 = sphi 0, %s145
      %s148 = sphi 0, %s147
      %s162 = sphi 0, %s148
      %s166 = sphi 0, %s166
      %s168 = sphi 0, %s166
      %s169 = sphi 0, %s168
      %s183 = sphi 0, %s169
      %s187 = sphi 0, %s187
      %s189 = sphi 0, %s187
      %s190 = sphi 0, %s189
      %s204 = sphi 0, %s190
      %s208 = sphi 0, %s208
      %s210 = sphi 0, %s208
      %s211 = sphi 0, %s210
      %s225 = sphi 0, %s211
      %s229 = sphi 0, %s229
      %s231 = sphi 0, %s229
      %s232 = sphi 0, %s231
      %s246 = sphi 0, %s232
      %s250 = sphi 0, %s250
      %s252 = sphi 0, %s250
      %s253 = sphi 0, %s252
      %s267 = sphi 0, %s253
      %s271 = sphi 0, %s271
      %s273 = sphi 0, %s271
      %s274 = sphi 0, %s273
      %s288 = sphi 0, %s274
      %s292 = sphi 0, %s292
      %s294 = sphi 0, %s292
      %s295 = sphi 0, %s294
      %s309 = sphi 0, %s295
      %s315 = sphi 0, %s317
      %s318 = sphi 0, %s315
      %s319 = sphi 0, %s318
      %s335 = sphi 0, %s319
    $region4: #{tpu_custom_call.1} parent=1 // loop_header_branch
      %25 = sbr.rel (%p23) target = $region8
    $region5: #{tpu_custom_call.1} parent=1 // loop_body
      %s27 = ssub.s32 %s22, 1
      %s28 = ssub.s32 %s22, 2
      %s29 = sadd.s32 %s22, 1
      %s30 = ssub.s32 %s22, %s29
      %p31 = scmp.eq.s32.totalorder %s30, 0
      %s33 = sadd.s32 %s32, 1
      %s34 = scalar_select %p31, %s32, %s33
      %p37 = pneg %p31
      %p38 = scmp.eq.s32.totalorder %s22, 1
      %p39 = por %p37, %p38
      %p40 = scmp.ne.s32.totalorder %s32, %s35
      %p41 = scmp.eq.s32.totalorder %s22, 0
      %p42 = por %p40, %p41
      %p43 = scmp.ne.s32.totalorder %s32, %s35
      %p44 = scmp.eq.s32.totalorder %s27, 1
      %p45 = por %p43, %p44
      %p46 = scmp.ne.s32.totalorder %s35, %s36
      %p47 = scmp.eq.s32.totalorder %s27, 0
      %p48 = por %p46, %p47
      %p49 = scmp.ne.s32.totalorder %s35, %s36
      %p50 = scmp.eq.s32.totalorder %s28, 1
      %p51 = por %p49, %p50
      %p53 = scmp.ne.s32.totalorder %s36, %s52
      %p54 = scmp.eq.s32.totalorder %s28, 0
      %p55 = por %p53, %p54
      %s56 = ssub.s32 %s22, %s29
      %p57 = scmp.eq.s32.totalorder %s56, 0
      %s59 = sadd.s32 %s58, 1
      %s60 = scalar_select %p57, %s58, %s59
      %p63 = pneg %p57
      %p64 = scmp.eq.s32.totalorder %s22, 1
      %p65 = por %p63, %p64
      %p66 = scmp.ne.s32.totalorder %s58, %s61
      %p67 = scmp.eq.s32.totalorder %s22, 0
      %p68 = por %p66, %p67
      %p69 = scmp.ne.s32.totalorder %s58, %s61
      %p70 = scmp.eq.s32.totalorder %s27, 1
      %p71 = por %p69, %p70
      %p72 = scmp.ne.s32.totalorder %s61, %s62
      %p73 = scmp.eq.s32.totalorder %s27, 0
      %p74 = por %p72, %p73
      %p75 = scmp.ne.s32.totalorder %s61, %s62
      %p76 = scmp.eq.s32.totalorder %s28, 1
      %p77 = por %p75, %p76
      %p79 = scmp.ne.s32.totalorder %s62, %s78
      %p80 = scmp.eq.s32.totalorder %s28, 0
      %p81 = por %p79, %p80
      %s83 = sadd.s32 %s82, 1
      %p86 = scmp.eq.s32.totalorder %s22, 1
      %p87 = scmp.ne.s32.totalorder %s82, %s84
      %p88 = scmp.eq.s32.totalorder %s22, 0
      %p89 = por %p87, %p88
      %p90 = scmp.ne.s32.totalorder %s82, %s84
      %p91 = scmp.eq.s32.totalorder %s27, 1
      %p92 = por %p90, %p91
      %p93 = scmp.ne.s32.totalorder %s84, %s85
      %p94 = scmp.eq.s32.totalorder %s27, 0
      %p95 = por %p93, %p94
      %p96 = scmp.ne.s32.totalorder %s84, %s85
      %p97 = scmp.eq.s32.totalorder %s28, 1
      %p98 = por %p96, %p97
      %p100 = scmp.ne.s32.totalorder %s85, %s99
      %p101 = scmp.eq.s32.totalorder %s28, 0
      %p102 = por %p100, %p101
      %s104 = sadd.s32 %s103, 1
      %p107 = scmp.eq.s32.totalorder %s22, 1
      %p108 = scmp.ne.s32.totalorder %s103, %s105
      %p109 = scmp.eq.s32.totalorder %s22, 0
      %p110 = por %p108, %p109
      %p111 = scmp.ne.s32.totalorder %s103, %s105
      %p112 = scmp.eq.s32.totalorder %s27, 1
      %p113 = por %p111, %p112
      %p114 = scmp.ne.s32.totalorder %s105, %s106
      %p115 = scmp.eq.s32.totalorder %s27, 0
      %p116 = por %p114, %p115
      %p117 = scmp.ne.s32.totalorder %s105, %s106
      %p118 = scmp.eq.s32.totalorder %s28, 1
      %p119 = por %p117, %p118
      %p121 = scmp.ne.s32.totalorder %s106, %s120
      %p122 = scmp.eq.s32.totalorder %s28, 0
      %p123 = por %p121, %p122
      %s125 = sadd.s32 %s124, 1
      %p128 = scmp.eq.s32.totalorder %s22, 1
      %p129 = scmp.ne.s32.totalorder %s124, %s126
      %p130 = scmp.eq.s32.totalorder %s22, 0
      %p131 = por %p129, %p130
      %p132 = scmp.ne.s32.totalorder %s124, %s126
      %p133 = scmp.eq.s32.totalorder %s27, 1
      %p134 = por %p132, %p133
      %p135 = scmp.ne.s32.totalorder %s126, %s127
      %p136 = scmp.eq.s32.totalorder %s27, 0
      %p137 = por %p135, %p136
      %p138 = scmp.ne.s32.totalorder %s126, %s127
      %p139 = scmp.eq.s32.totalorder %s28, 1
      %p140 = por %p138, %p139
      %p142 = scmp.ne.s32.totalorder %s127, %s141
      %p143 = scmp.eq.s32.totalorder %s28, 0
      %p144 = por %p142, %p143
      %s146 = sadd.s32 %s145, 1
      %p149 = scmp.eq.s32.totalorder %s22, 1
      %p150 = scmp.ne.s32.totalorder %s145, %s147
      %p151 = scmp.eq.s32.totalorder %s22, 0
      %p152 = por %p150, %p151
      %p153 = scmp.ne.s32.totalorder %s145, %s147
      %p154 = scmp.eq.s32.totalorder %s27, 1
      %p155 = por %p153, %p154
      %p156 = scmp.ne.s32.totalorder %s147, %s148
      %p157 = scmp.eq.s32.totalorder %s27, 0
      %p158 = por %p156, %p157
      %p159 = scmp.ne.s32.totalorder %s147, %s148
      %p160 = scmp.eq.s32.totalorder %s28, 1
      %p161 = por %p159, %p160
      %p163 = scmp.ne.s32.totalorder %s148, %s162
      %p164 = scmp.eq.s32.totalorder %s28, 0
      %p165 = por %p163, %p164
      %s167 = sadd.s32 %s166, 1
      %p170 = scmp.eq.s32.totalorder %s22, 1
      %p171 = scmp.ne.s32.totalorder %s166, %s168
      %p172 = scmp.eq.s32.totalorder %s22, 0
      %p173 = por %p171, %p172
      %p174 = scmp.ne.s32.totalorder %s166, %s168
      %p175 = scmp.eq.s32.totalorder %s27, 1
      %p176 = por %p174, %p175
      %p177 = scmp.ne.s32.totalorder %s168, %s169
      %p178 = scmp.eq.s32.totalorder %s27, 0
      %p179 = por %p177, %p178
      %p180 = scmp.ne.s32.totalorder %s168, %s169
      %p181 = scmp.eq.s32.totalorder %s28, 1
      %p182 = por %p180, %p181
      %p184 = scmp.ne.s32.totalorder %s169, %s183
      %p185 = scmp.eq.s32.totalorder %s28, 0
      %p186 = por %p184, %p185
      %s188 = sadd.s32 %s187, 1
      %p191 = scmp.eq.s32.totalorder %s22, 1
      %p192 = scmp.ne.s32.totalorder %s187, %s189
      %p193 = scmp.eq.s32.totalorder %s22, 0
      %p194 = por %p192, %p193
      %p195 = scmp.ne.s32.totalorder %s187, %s189
      %p196 = scmp.eq.s32.totalorder %s27, 1
      %p197 = por %p195, %p196
      %p198 = scmp.ne.s32.totalorder %s189, %s190
      %p199 = scmp.eq.s32.totalorder %s27, 0
      %p200 = por %p198, %p199
      %p201 = scmp.ne.s32.totalorder %s189, %s190
      %p202 = scmp.eq.s32.totalorder %s28, 1
      %p203 = por %p201, %p202
      %p205 = scmp.ne.s32.totalorder %s190, %s204
      %p206 = scmp.eq.s32.totalorder %s28, 0
      %p207 = por %p205, %p206
      %s209 = sadd.s32 %s208, 1
      %p212 = scmp.eq.s32.totalorder %s22, 1
      %p213 = scmp.ne.s32.totalorder %s208, %s210
      %p214 = scmp.eq.s32.totalorder %s22, 0
      %p215 = por %p213, %p214
      %p216 = scmp.ne.s32.totalorder %s208, %s210
      %p217 = scmp.eq.s32.totalorder %s27, 1
      %p218 = por %p216, %p217
      %p219 = scmp.ne.s32.totalorder %s210, %s211
      %p220 = scmp.eq.s32.totalorder %s27, 0
      %p221 = por %p219, %p220
      %p222 = scmp.ne.s32.totalorder %s210, %s211
      %p223 = scmp.eq.s32.totalorder %s28, 1
      %p224 = por %p222, %p223
      %p226 = scmp.ne.s32.totalorder %s211, %s225
      %p227 = scmp.eq.s32.totalorder %s28, 0
      %p228 = por %p226, %p227
      %s230 = sadd.s32 %s229, 1
      %p233 = scmp.eq.s32.totalorder %s22, 1
      %p234 = scmp.ne.s32.totalorder %s229, %s231
      %p235 = scmp.eq.s32.totalorder %s22, 0
      %p236 = por %p234, %p235
      %p237 = scmp.ne.s32.totalorder %s229, %s231
      %p238 = scmp.eq.s32.totalorder %s27, 1
      %p239 = por %p237, %p238
      %p240 = scmp.ne.s32.totalorder %s231, %s232
      %p241 = scmp.eq.s32.totalorder %s27, 0
      %p242 = por %p240, %p241
      %p243 = scmp.ne.s32.totalorder %s231, %s232
      %p244 = scmp.eq.s32.totalorder %s28, 1
      %p245 = por %p243, %p244
      %p247 = scmp.ne.s32.totalorder %s232, %s246
      %p248 = scmp.eq.s32.totalorder %s28, 0
      %p249 = por %p247, %p248
      %s251 = sadd.s32 %s250, 1
      %p254 = scmp.eq.s32.totalorder %s22, 1
      %p255 = scmp.ne.s32.totalorder %s250, %s252
      %p256 = scmp.eq.s32.totalorder %s22, 0
      %p257 = por %p255, %p256
      %p258 = scmp.ne.s32.totalorder %s250, %s252
      %p259 = scmp.eq.s32.totalorder %s27, 1
      %p260 = por %p258, %p259
      %p261 = scmp.ne.s32.totalorder %s252, %s253
      %p262 = scmp.eq.s32.totalorder %s27, 0
      %p263 = por %p261, %p262
      %p264 = scmp.ne.s32.totalorder %s252, %s253
      %p265 = scmp.eq.s32.totalorder %s28, 1
      %p266 = por %p264, %p265
      %p268 = scmp.ne.s32.totalorder %s253, %s267
      %p269 = scmp.eq.s32.totalorder %s28, 0
      %p270 = por %p268, %p269
      %s272 = sadd.s32 %s271, 1
      %p275 = scmp.eq.s32.totalorder %s22, 1
      %p276 = scmp.ne.s32.totalorder %s271, %s273
      %p277 = scmp.eq.s32.totalorder %s22, 0
      %p278 = por %p276, %p277
      %p279 = scmp.ne.s32.totalorder %s271, %s273
      %p280 = scmp.eq.s32.totalorder %s27, 1
      %p281 = por %p279, %p280
      %p282 = scmp.ne.s32.totalorder %s273, %s274
      %p283 = scmp.eq.s32.totalorder %s27, 0
      %p284 = por %p282, %p283
      %p285 = scmp.ne.s32.totalorder %s273, %s274
      %p286 = scmp.eq.s32.totalorder %s28, 1
      %p287 = por %p285, %p286
      %p289 = scmp.ne.s32.totalorder %s274, %s288
      %p290 = scmp.eq.s32.totalorder %s28, 0
      %p291 = por %p289, %p290
      %s293 = sadd.s32 %s292, 1
      %p296 = scmp.eq.s32.totalorder %s22, 1
      %p297 = scmp.ne.s32.totalorder %s292, %s294
      %p298 = scmp.eq.s32.totalorder %s22, 0
      %p299 = por %p297, %p298
      %p300 = scmp.ne.s32.totalorder %s292, %s294
      %p301 = scmp.eq.s32.totalorder %s27, 1
      %p302 = por %p300, %p301
      %p303 = scmp.ne.s32.totalorder %s294, %s295
      %p304 = scmp.eq.s32.totalorder %s27, 0
      %p305 = por %p303, %p304
      %p306 = scmp.ne.s32.totalorder %s294, %s295
      %p307 = scmp.eq.s32.totalorder %s28, 1
      %p308 = por %p306, %p307
      %p310 = scmp.ne.s32.totalorder %s295, %s309
      %p311 = scmp.eq.s32.totalorder %s28, 0
      %p312 = por %p310, %p311
      %s313 = ssub.s32 %s22, %s29
      %p314 = scmp.eq.s32.totalorder %s313, 0
      %s316 = sadd.s32 %s315, 1
      %s317 = scalar_select %p314, %s315, %s316
      %p320 = pneg %p314
      %p321 = scmp.eq.s32.totalorder %s22, 1
      %p322 = por %p320, %p321
      %p323 = scmp.ne.s32.totalorder %s315, %s318
      %p324 = scmp.eq.s32.totalorder %s22, 0
      %p325 = por %p323, %p324
      %p326 = scmp.ne.s32.totalorder %s315, %s318
      %p327 = scmp.eq.s32.totalorder %s27, 1
      %p328 = por %p326, %p327
      %p329 = scmp.ne.s32.totalorder %s318, %s319
      %p330 = scmp.eq.s32.totalorder %s27, 0
      %p331 = por %p329, %p330
      %p332 = scmp.ne.s32.totalorder %s318, %s319
      %p333 = scmp.eq.s32.totalorder %s28, 1
      %p334 = por %p332, %p333
      %p336 = scmp.ne.s32.totalorder %s319, %s335
      %p337 = scmp.eq.s32.totalorder %s28, 0
      %p338 = por %p336, %p337
      %p339 = scmp.le.s32.totalorder 1, %s22
      %p340 = scmp.lt.s32.totalorder %s22, 3
      %p341 = pnand %p339, %p340
      %p342 = pneg %p341
      // Predicated region
      $region9: #{tpu_custom_call.1} parent=5 // pred_check
        _
      $region10: #{tpu_custom_call.1} parent=5 // pred_check_branch
        %344 = sbr.rel (%p341) target = $region12
      $region11: #{tpu_custom_call.1} parent=5 // pred_region
        %s345 = ssub.s32 %s22, 1
        // Predicated region
        $region13: #{tpu_custom_call.1} parent=11 // pred_check
          %p346 = pneg %p95
        $region14: #{tpu_custom_call.1} parent=11 // pred_check_branch
          %348 = sbr.rel (%p346) target = $region16
        $region15: #{tpu_custom_call.1} parent=11 // pred_region
          _
        $region16: #{tpu_custom_call.1} parent=11 // pred_fallthru
          _
        // Predicated region
        $region17: #{tpu_custom_call.1} parent=11 // pred_check
          %p349 = pneg %p116
        $region18: #{tpu_custom_call.1} parent=11 // pred_check_branch
          %351 = sbr.rel (%p349) target = $region20
        $region19: #{tpu_custom_call.1} parent=11 // pred_region
          _
        $region20: #{tpu_custom_call.1} parent=11 // pred_fallthru
          _
        // Predicated region
        $region21: #{tpu_custom_call.1} parent=11 // pred_check
          %p352 = pneg %p137
        $region22: #{tpu_custom_call.1} parent=11 // pred_check_branch
          %354 = sbr.rel (%p352) target = $region24
        $region23: #{tpu_custom_call.1} parent=11 // pred_region
          _
        $region24: #{tpu_custom_call.1} parent=11 // pred_fallthru
          _
        // Predicated region
        $region25: #{tpu_custom_call.1} parent=11 // pred_check
          %p355 = pneg %p158
        $region26: #{tpu_custom_call.1} parent=11 // pred_check_branch
          %357 = sbr.rel (%p355) target = $region28
        $region27: #{tpu_custom_call.1} parent=11 // pred_region
          _
        $region28: #{tpu_custom_call.1} parent=11 // pred_fallthru
          _
        // Predicated region
        $region29: #{tpu_custom_call.1} parent=11 // pred_check
          %p358 = pneg %p179
        $region30: #{tpu_custom_call.1} parent=11 // pred_check_branch
          %360 = sbr.rel (%p358) target = $region32
        $region31: #{tpu_custom_call.1} parent=11 // pred_region
          _
        $region32: #{tpu_custom_call.1} parent=11 // pred_fallthru
          _
        // Predicated region
        $region33: #{tpu_custom_call.1} parent=11 // pred_check
          %p361 = pneg %p200
        $region34: #{tpu_custom_call.1} parent=11 // pred_check_branch
          %363 = sbr.rel (%p361) target = $region36
        $region35: #{tpu_custom_call.1} parent=11 // pred_region
          _
        $region36: #{tpu_custom_call.1} parent=11 // pred_fallthru
          _
        // Predicated region
        $region37: #{tpu_custom_call.1} parent=11 // pred_check
          %p364 = pneg %p221
        $region38: #{tpu_custom_call.1} parent=11 // pred_check_branch
          %366 = sbr.rel (%p364) target = $region40
        $region39: #{tpu_custom_call.1} parent=11 // pred_region
          _
        $region40: #{tpu_custom_call.1} parent=11 // pred_fallthru
          _
        // Predicated region
        $region41: #{tpu_custom_call.1} parent=11 // pred_check
          %p367 = pneg %p242
        $region42: #{tpu_custom_call.1} parent=11 // pred_check_branch
          %369 = sbr.rel (%p367) target = $region44
        $region43: #{tpu_custom_call.1} parent=11 // pred_region
          _
        $region44: #{tpu_custom_call.1} parent=11 // pred_fallthru
          _
        // Predicated region
        $region45: #{tpu_custom_call.1} parent=11 // pred_check
          %p370 = pneg %p263
        $region46: #{tpu_custom_call.1} parent=11 // pred_check_branch
          %372 = sbr.rel (%p370) target = $region48
        $region47: #{tpu_custom_call.1} parent=11 // pred_region
          _
        $region48: #{tpu_custom_call.1} parent=11 // pred_fallthru
          _
        // Predicated region
        $region49: #{tpu_custom_call.1} parent=11 // pred_check
          %p373 = pneg %p284
        $region50: #{tpu_custom_call.1} parent=11 // pred_check_branch
          %375 = sbr.rel (%p373) target = $region52
        $region51: #{tpu_custom_call.1} parent=11 // pred_region
          _
        $region52: #{tpu_custom_call.1} parent=11 // pred_fallthru
          _
        // Predicated region
        $region53: #{tpu_custom_call.1} parent=11 // pred_check
          %p376 = pneg %p305
        $region54: #{tpu_custom_call.1} parent=11 // pred_check_branch
          %378 = sbr.rel (%p376) target = $region56
        $region55: #{tpu_custom_call.1} parent=11 // pred_region
          _
        $region56: #{tpu_custom_call.1} parent=11 // pred_fallthru
          _
      $region12: #{tpu_custom_call.1} parent=5 // pred_fallthru
        _
      %p379 = scmp.lt.s32.totalorder %s22, 2
      // Predicated region
      $region57: #{tpu_custom_call.1} parent=5 // pred_check
        %p380 = pneg %p379
      $region58: #{tpu_custom_call.1} parent=5 // pred_check_branch
        %382 = sbr.rel (%p380) target = $region60
      $region59: #{tpu_custom_call.1} parent=5 // pred_region
        // Predicated region
        $region61: #{tpu_custom_call.1} parent=59 // pred_check
          %p383 = pneg %p42
        $region62: #{tpu_custom_call.1} parent=59 // pred_check_branch
          %385 = sbr.rel (%p383) target = $region64
        $region63: #{tpu_custom_call.1} parent=59 // pred_region
          %s386 = smul.u32 8, %s22
          %p387 = scmp.lt.s32.totalorder %s386, 15
          %s388 = scalar_select %p387, %s386, 15
          %s389 = smul.addr %s388, 4
          %s390 = scalar_lea.vmem %s0, %s389
          %s391 = smul.u32 8, %s22
        $region64: #{tpu_custom_call.1} parent=59 // pred_fallthru
          _
        // Predicated region
        $region65: #{tpu_custom_call.1} parent=59 // pred_check
          %p392 = pneg %p68
        $region66: #{tpu_custom_call.1} parent=59 // pred_check_branch
          %394 = sbr.rel (%p392) target = $region68
        $region67: #{tpu_custom_call.1} parent=59 // pred_region
          %s395 = smul.u32 8, %s22
          %p396 = scmp.lt.s32.totalorder %s395, 15
          %s397 = scalar_select %p396, %s395, 15
          %s398 = smul.addr %s397, 8
          %s399 = smul.addr %s398, 4
          %s400 = scalar_lea.vmem %s1, %s399
          %s401 = smul.u32 8, %s22
        $region68: #{tpu_custom_call.1} parent=59 // pred_fallthru
          _
      $region60: #{tpu_custom_call.1} parent=5 // pred_fallthru
        _
      %p402 = scmp.le.s32.totalorder 1, %s22
      %p403 = scmp.lt.s32.totalorder %s22, 3
      %p404 = pnand %p402, %p403
      %p405 = pneg %p404
      // Predicated region
      $region69: #{tpu_custom_call.1} parent=5 // pred_check
        _
      $region70: #{tpu_custom_call.1} parent=5 // pred_check_branch
        %407 = sbr.rel (%p404) target = $region72
      $region71: #{tpu_custom_call.1} parent=5 // pred_region
        %s408 = ssub.s32 %s22, 1
        %s409 = smul.u32 8, %s27
        %p410 = scmp.lt.s32.totalorder %s409, 15
        %s411 = scalar_select %p410, %s409, 15
        %s412 = smul.addr %s411, 4
        %s413 = scalar_lea.vmem %s0, %s412
        %p414 = pneg %p48
        %p415 = pneg %p45
        %s416 = smul.u32 8, %s27
        %p417 = scmp.lt.s32.totalorder %s416, 15
        %s418 = scalar_select %p417, %s416, 15
        %s419 = smul.addr %s418, 8
        %s420 = smul.addr %s419, 4
        %s421 = scalar_lea.vmem %s1, %s420
        %p422 = pneg %p74
        %p423 = pneg %p71
        %p424 = pneg %p95
        %p425 = pneg %p92
        %p426 = pneg %p116
        %p427 = pneg %p113
        %p428 = pneg %p137
        %p429 = pneg %p134
        %p430 = pneg %p158
        %p431 = pneg %p155
        %p432 = pneg %p179
        %p433 = pneg %p176
        %p434 = pneg %p200
        %p435 = pneg %p197
        %p436 = pneg %p221
        %p437 = pneg %p218
        %p438 = pneg %p242
        %p439 = pneg %p239
        %p440 = pneg %p263
        %p441 = pneg %p260
        %p442 = pneg %p284
        %p443 = pneg %p281
        %p444 = pneg %p305
        %p445 = pneg %p302
        %p446 = pneg %p331
        %p447 = pneg %p328
        %s448 = sand.u32 %s318, 1
        %s449 = scalar_lea.sflag [#allocation7], %s448
        %s450 = sand.u32 %s318, 1
        %s451 = smul.addr %s450, 8
        %s452 = scalar_lea.vmem [#allocation6], %s451
        %s453 = smul.u32 8, %s27
        %p454 = scmp.lt.s32.totalorder %s453, 15
        %s455 = scalar_select %p454, %s453, 15
        %s456 = smul.addr %s455, 4
        %s457 = scalar_lea.vmem %s0, %s456
        %s458 = smul.u32 8, %s27
        %s459 = smul.u32 8, %s27
        %p460 = scmp.lt.s32.totalorder %s459, 15
        %s461 = scalar_select %p460, %s459, 15
        %s462 = smul.addr %s461, 8
        %s463 = smul.addr %s462, 4
        %s464 = scalar_lea.vmem %s1, %s463
        %s465 = smul.u32 8, %s27
        %v467 = vld [vmem:[%s457] sm:$0xf]
        %v468 = vld [vmem:[%s457 + $0x4] sm:$0xf]
        %v469 = vld [vmem:[%s457 + $0x8] sm:$0xf]
        %v470 = vld [vmem:[%s457 + $0xc] sm:$0xf]
        %v471 = vld [vmem:[%s457 + $0x10] sm:$0xf]
        %v472 = vld [vmem:[%s457 + $0x14] sm:$0xf]
        %v473 = vld [vmem:[%s457 + $0x18] sm:$0xf]
        %v474 = vld [vmem:[%s457 + $0x1c] sm:$0xf]
        %v475 = vld [vmem:[%s2] sm:$0xf]
        %v476 = vld [vmem:[%s2 + $0x4] sm:$0xf]
        %v477 = vld [vmem:[%s3] sm:$0x1]
        %v479 = vperm.slane %v477, 0
        %v489 = vunpack.c.l.b16 %v467
        %v490 = vunpack.c.l.b16 %v468
        %v491 = vunpack.c.l.b16 %v469
        %v492 = vunpack.c.l.b16 %v470
        %v493 = vunpack.c.l.b16 %v471
        %v494 = vunpack.c.l.b16 %v472
        %v495 = vunpack.c.l.b16 %v473
        %v496 = vunpack.c.l.b16 %v474
        %v497 = vpack.c.b16 %v490, %v489
        %v498 = vpack.c.b16 %v492, %v491
        %v499 = vpack.c.b16 %v494, %v493
        %v500 = vpack.c.b16 %v496, %v495
        %v503 = vunpack.c.l.b16 %v475
        %v504 = vunpack.c.l.b16 %v476
        %v505 = vpack.c.b16 %v504, %v503
        %vm507 = vcmask 130048
        %v509 = vsel %vm507, %v497, 0
        %v512 = vsel %vm507, %v498, 0
        %v515 = vsel %vm507, %v499, 0
        %v518 = vsel %vm507, %v500, 0
        %520 = vmatpush.bf16.msra.mxu0 0
        %521 = vmatpush.bf16.msra.mxu0 0
        %522 = vmatpush.bf16.msra.mxu0 0
        %523 = vmatpush.bf16.msra.mxu0 0
        %524 = vmatpush.bf16.msra.mxu0 0
        %525 = vmatpush.bf16.msra.mxu0 0
        %526 = vmatpush.bf16.msra.mxu0 0
        %527 = vmatpush.bf16.msra.mxu0 %v505
        %528 = vmatmul.bf16.gmra.mxu0 %v509
        %v529 = vpop.f32.mrf.mxu0
        %v530 = vadd.f32 %v479, %v529
        %v531 = vpop.f32.mrf.mxu0
        %v532 = vadd.f32 %v479, %v531
        %533 = vmatmul.bf16.gmra.mxu0 %v512
        %v534 = vpop.f32.mrf.mxu0
        %v535 = vadd.f32 %v479, %v534
        %v536 = vpop.f32.mrf.mxu0
        %v537 = vadd.f32 %v479, %v536
        %538 = vmatmul.bf16.gmra.mxu0 %v515
        %v539 = vpop.f32.mrf.mxu0
        %v540 = vadd.f32 %v479, %v539
        %v541 = vpop.f32.mrf.mxu0
        %v542 = vadd.f32 %v479, %v541
        %543 = vmatmul.bf16.gmra.mxu0 %v518
        %v544 = vpop.f32.mrf.mxu0
        %v545 = vadd.f32 %v479, %v544
        %v546 = vpop.f32.mrf.mxu0
        %v547 = vadd.f32 %v479, %v546
        %548 = vdwg.mxu0
        %vm549 = vcmp.ge.f32.partialorder %v530, 0.0
        %vm550 = vcmp.ge.f32.partialorder %v532, 0.0
        %vm551 = vcmp.ge.f32.partialorder %v535, 0.0
        %vm552 = vcmp.ge.f32.partialorder %v537, 0.0
        %vm553 = vcmp.ge.f32.partialorder %v540, 0.0
        %vm554 = vcmp.ge.f32.partialorder %v542, 0.0
        %vm555 = vcmp.ge.f32.partialorder %v545, 0.0
        %vm556 = vcmp.ge.f32.partialorder %v547, 0.0
        %v557 = vmul.f32 %v530, 0.2
        %v558 = vmul.f32 %v532, 0.2
        %v559 = vmul.f32 %v535, 0.2
        %v560 = vmul.f32 %v537, 0.2
        %v561 = vmul.f32 %v540, 0.2
        %v562 = vmul.f32 %v542, 0.2
        %v563 = vmul.f32 %v545, 0.2
        %v564 = vmul.f32 %v547, 0.2
        %v565 = vsel %vm549, %v530, %v557
        %v566 = vsel %vm550, %v532, %v558
        %v567 = vsel %vm551, %v535, %v559
        %v568 = vsel %vm552, %v537, %v560
        %v569 = vsel %vm553, %v540, %v561
        %v570 = vsel %vm554, %v542, %v562
        %v571 = vsel %vm555, %v545, %v563
        %v572 = vsel %vm556, %v547, %v564
        %vm573 = vcmask 261120
        %574 = vst.msk [vmem:[#allocation2] sm:$0xff] %vm573, %v565
        %575 = vst.msk [vmem:[#allocation2 + $0x8] sm:$0xff] %vm573, %v566
        %576 = vst.msk [vmem:[#allocation2 + $0x10] sm:$0xff] %vm573, %v567
        %577 = vst.msk [vmem:[#allocation2 + $0x18] sm:$0xff] %vm573, %v568
        %578 = vst.msk [vmem:[#allocation2 + $0x20] sm:$0xff] %vm573, %v569
        %579 = vst.msk [vmem:[#allocation2 + $0x28] sm:$0xff] %vm573, %v570
        %580 = vst.msk [vmem:[#allocation2 + $0x30] sm:$0xff] %vm573, %v571
        %581 = vst.msk [vmem:[#allocation2 + $0x38] sm:$0xff] %vm573, %v572
        %582 = vst.msk [vmem:[#allocation3] sm:$0xff] %vm573, %v565
        %583 = vst.msk [vmem:[#allocation3 + $0x8] sm:$0xff] %vm573, %v566
        %584 = vst.msk [vmem:[#allocation3 + $0x10] sm:$0xff] %vm573, %v567
        %585 = vst.msk [vmem:[#allocation3 + $0x18] sm:$0xff] %vm573, %v568
        %586 = vst.msk [vmem:[#allocation3 + $0x20] sm:$0xff] %vm573, %v569
        %587 = vst.msk [vmem:[#allocation3 + $0x28] sm:$0xff] %vm573, %v570
        %588 = vst.msk [vmem:[#allocation3 + $0x30] sm:$0xff] %vm573, %v571
        %589 = vst.msk [vmem:[#allocation3 + $0x38] sm:$0xff] %vm573, %v572
        loop: start=0, step=1, limit=2
        $region73: #{tpu_custom_call.1} parent=71 // loop_pre_header
          _
        $region74: #{tpu_custom_call.1} parent=71 // loop_header
          %s591 = sphi 0, %s595
          %p592 = scmp.ge.s32.totalorder %s591, 2
        $region75: #{tpu_custom_call.1} parent=71 // loop_header_branch
          %594 = sbr.rel (%p592) target = $region79
        $region76: #{tpu_custom_call.1} parent=71 // loop_body
          %s596 = smul.u32 %s591, 8
          %s597 = smul.addr %s596, 4
          %s598 = scalar_lea.vmem %s4, %s597
          %v599 = vld [vmem:[%s598] sm:$0xff]
          %v600 = vld [vmem:[%s598 + $0x8] sm:$0xff]
          %v601 = vld [vmem:[%s598 + $0x10] sm:$0xff]
          %v602 = vld [vmem:[%s598 + $0x18] sm:$0xff]
          %s603 = smul.u32 %s591, 2
          %s604 = scalar_lea.vmem %s5, %s603
          %v605 = vld [vmem:[%s604] sm:$0x3]
          %s606 = smul.addr %s591, 4
          %s607 = scalar_lea.vmem %s6, %s606
          %v608 = vld [vmem:[%s607] sm:$0xf]
          %s609 = scalar_lea.vmem %s7, %s591
          %v610 = vld [vmem:[%s609] sm:$0x1]
          %s611 = smul.u32 %s591, 4
          %s612 = smul.addr %s611, 4
          %s613 = scalar_lea.vmem %s8, %s612
          %v614 = vld [vmem:[%s613] sm:$0xf]
          %v615 = vld [vmem:[%s613 + $0x4] sm:$0xf]
          %v616 = vld [vmem:[%s613 + $0x8] sm:$0xf]
          %v617 = vld [vmem:[%s613 + $0xc] sm:$0xf]
          %s618 = scalar_lea.vmem %s9, %s591
          %v619 = vld [vmem:[%s618] sm:$0x1]
          %v620 = vld [vmem:[#allocation3] sm:$0xff]
          %v621 = vld [vmem:[#allocation3 + $0x8] sm:$0xff]
          %v622 = vld [vmem:[#allocation3 + $0x10] sm:$0xff]
          %v623 = vld [vmem:[#allocation3 + $0x18] sm:$0xff]
          %v624 = vld [vmem:[#allocation3 + $0x20] sm:$0xff]
          %v625 = vld [vmem:[#allocation3 + $0x28] sm:$0xff]
          %v626 = vld [vmem:[#allocation3 + $0x30] sm:$0xff]
          %v627 = vld [vmem:[#allocation3 + $0x38] sm:$0xff]
          %v628 = vpack.c.bf16 %v621, %v620
          %v629 = vpack.c.bf16 %v623, %v622
          %v630 = vpack.c.bf16 %v625, %v624
          %v631 = vpack.c.bf16 %v627, %v626
          %v633 = vperm.slane %v605, 0
          %v634 = vperm.slane %v605, 1
          %v641 = vunpack.c.l.b16 %v599
          %v642 = vunpack.c.h.b16 %v599
          %v643 = vunpack.c.l.b16 %v600
          %v644 = vunpack.c.h.b16 %v600
          %v645 = vunpack.c.l.b16 %v601
          %v646 = vunpack.c.h.b16 %v601
          %v647 = vunpack.c.l.b16 %v602
          %v648 = vunpack.c.h.b16 %v602
          %v649 = vpack.c.b16 %v643, %v641
          %v650 = vpack.c.b16 %v644, %v642
          %v651 = vpack.c.b16 %v647, %v645
          %v652 = vpack.c.b16 %v648, %v646
          %v658 = vsel %vm573, %v628, 0
          %v661 = vsel %vm573, %v629, 0
          %v664 = vsel %vm573, %v630, 0
          %v667 = vsel %vm573, %v631, 0
          %669 = vmatpush.bf16.msra.mxu0 0
          %670 = vmatpush.bf16.msra.mxu0 0
          %671 = vmatpush.bf16.msra.mxu0 0
          %672 = vmatpush.bf16.msra.mxu0 0
          %673 = vmatpush.bf16.msra.mxu0 0
          %674 = vmatpush.bf16.msra.mxu0 0
          %675 = vmatpush.bf16.msra.mxu0 %v651
          %676 = vmatpush.bf16.msra.mxu0 %v649
          %677 = vmatmul.bf16.gmra.mxu0 %v658
          %v678 = vpop.f32.mrf.mxu0
          %v679 = vadd.f32 %v633, %v678
          %v680 = vpop.f32.mrf.mxu0
          %v681 = vadd.f32 %v633, %v680
          %682 = vmatmul.bf16.gmra.mxu0 %v661
          %v683 = vpop.f32.mrf.mxu0
          %v684 = vadd.f32 %v633, %v683
          %v685 = vpop.f32.mrf.mxu0
          %v686 = vadd.f32 %v633, %v685
          %687 = vmatmul.bf16.gmra.mxu0 %v664
          %v688 = vpop.f32.mrf.mxu0
          %v689 = vadd.f32 %v633, %v688
          %v690 = vpop.f32.mrf.mxu0
          %v691 = vadd.f32 %v633, %v690
          %692 = vmatmul.bf16.gmra.mxu0 %v667
          %v693 = vpop.f32.mrf.mxu0
          %v694 = vadd.f32 %v633, %v693
          %v695 = vpop.f32.mrf.mxu0
          %v696 = vadd.f32 %v633, %v695
          %697 = vdwg.mxu0
          %698 = vmatpush.bf16.msra.mxu0 0
          %699 = vmatpush.bf16.msra.mxu0 0
          %700 = vmatpush.bf16.msra.mxu0 0
          %701 = vmatpush.bf16.msra.mxu0 0
          %702 = vmatpush.bf16.msra.mxu0 0
          %703 = vmatpush.bf16.msra.mxu0 0
          %704 = vmatpush.bf16.msra.mxu0 %v652
          %705 = vmatpush.bf16.msra.mxu0 %v650
          %706 = vmatmul.bf16.gmra.mxu0 %v658
          %v707 = vpop.f32.mrf.mxu0
          %v708 = vadd.f32 %v634, %v707
          %v709 = vpop.f32.mrf.mxu0
          %v710 = vadd.f32 %v634, %v709
          %711 = vmatmul.bf16.gmra.mxu0 %v661
          %v712 = vpop.f32.mrf.mxu0
          %v713 = vadd.f32 %v634, %v712
          %v714 = vpop.f32.mrf.mxu0
          %v715 = vadd.f32 %v634, %v714
          %716 = vmatmul.bf16.gmra.mxu0 %v664
          %v717 = vpop.f32.mrf.mxu0
          %v718 = vadd.f32 %v634, %v717
          %v719 = vpop.f32.mrf.mxu0
          %v720 = vadd.f32 %v634, %v719
          %721 = vmatmul.bf16.gmra.mxu0 %v667
          %v722 = vpop.f32.mrf.mxu0
          %v723 = vadd.f32 %v634, %v722
          %v724 = vpop.f32.mrf.mxu0
          %v725 = vadd.f32 %v634, %v724
          %726 = vdwg.mxu0
          %vm727 = vcmask 523264
          %728 = vst.msk [vmem:[#allocation4] sm:$0xff] %vm727, %v679
          %729 = vst.msk [vmem:[#allocation4 + $0x8] sm:$0xff] %vm727, %v681
          %730 = vst.msk [vmem:[#allocation4 + $0x10] sm:$0xff] %vm727, %v684
          %731 = vst.msk [vmem:[#allocation4 + $0x18] sm:$0xff] %vm727, %v686
          %732 = vst.msk [vmem:[#allocation4 + $0x20] sm:$0xff] %vm727, %v689
          %733 = vst.msk [vmem:[#allocation4 + $0x28] sm:$0xff] %vm727, %v691
          %734 = vst.msk [vmem:[#allocation4 + $0x30] sm:$0xff] %vm727, %v694
          %735 = vst.msk [vmem:[#allocation4 + $0x38] sm:$0xff] %vm727, %v696
          %752 = vrot.lane.b32.xlu0 %v679, 64
          %v753 = vpop.permute.xlu0 %752
          %754 = vrot.lane.b32.xlu0 %v708, 64
          %v755 = vpop.permute.xlu0 %754
          %756 = vrot.lane.b32.xlu0 %v681, 64
          %v757 = vpop.permute.xlu0 %756
          %758 = vrot.lane.b32.xlu0 %v710, 64
          %v759 = vpop.permute.xlu0 %758
          %760 = vrot.lane.b32.xlu0 %v684, 64
          %v761 = vpop.permute.xlu0 %760
          %762 = vrot.lane.b32.xlu0 %v713, 64
          %v763 = vpop.permute.xlu0 %762
          %764 = vrot.lane.b32.xlu0 %v686, 64
          %v765 = vpop.permute.xlu0 %764
          %766 = vrot.lane.b32.xlu0 %v715, 64
          %v767 = vpop.permute.xlu0 %766
          %768 = vrot.lane.b32.xlu0 %v689, 64
          %v769 = vpop.permute.xlu0 %768
          %770 = vrot.lane.b32.xlu0 %v718, 64
          %v771 = vpop.permute.xlu0 %770
          %772 = vrot.lane.b32.xlu0 %v691, 64
          %v773 = vpop.permute.xlu0 %772
          %774 = vrot.lane.b32.xlu0 %v720, 64
          %v775 = vpop.permute.xlu0 %774
          %776 = vrot.lane.b32.xlu0 %v694, 64
          %v777 = vpop.permute.xlu0 %776
          %778 = vrot.lane.b32.xlu0 %v723, 64
          %v779 = vpop.permute.xlu0 %778
          %780 = vrot.lane.b32.xlu0 %v696, 64
          %v781 = vpop.permute.xlu0 %780
          %782 = vrot.lane.b32.xlu0 %v725, 64
          %v783 = vpop.permute.xlu0 %782
          %v784 = vsel %vm727, %v753, %v755
          %v785 = vsel %vm727, %v757, %v759
          %v786 = vsel %vm727, %v761, %v763
          %v787 = vsel %vm727, %v765, %v767
          %v788 = vsel %vm727, %v769, %v771
          %v789 = vsel %vm727, %v773, %v775
          %v790 = vsel %vm727, %v777, %v779
          %v791 = vsel %vm727, %v781, %v783
          %vm800 = vcmask 785408
          %801 = vst.msk [vmem:[#allocation5] sm:$0xff] %vm800, %v784
          %802 = vst.msk [vmem:[#allocation5 + $0x8] sm:$0xff] %vm800, %v785
          %803 = vst.msk [vmem:[#allocation5 + $0x10] sm:$0xff] %vm800, %v786
          %804 = vst.msk [vmem:[#allocation5 + $0x18] sm:$0xff] %vm800, %v787
          %805 = vst.msk [vmem:[#allocation5 + $0x20] sm:$0xff] %vm800, %v788
          %806 = vst.msk [vmem:[#allocation5 + $0x28] sm:$0xff] %vm800, %v789
          %807 = vst.msk [vmem:[#allocation5 + $0x30] sm:$0xff] %vm800, %v790
          %808 = vst.msk [vmem:[#allocation5 + $0x38] sm:$0xff] %vm800, %v791
          %v809 = vld [vmem:[#allocation4] sm:$0xff]
          %v810 = vld [vmem:[#allocation4 + $0x8] sm:$0xff]
          %v811 = vld [vmem:[#allocation4 + $0x10] sm:$0xff]
          %v812 = vld [vmem:[#allocation4 + $0x18] sm:$0xff]
          %v813 = vld [vmem:[#allocation4 + $0x20] sm:$0xff]
          %v814 = vld [vmem:[#allocation4 + $0x28] sm:$0xff]
          %v815 = vld [vmem:[#allocation4 + $0x30] sm:$0xff]
          %v816 = vld [vmem:[#allocation4 + $0x38] sm:$0xff]
          %v817 = vld [vmem:[#allocation5] sm:$0xff]
          %v818 = vld [vmem:[#allocation5 + $0x8] sm:$0xff]
          %v819 = vld [vmem:[#allocation5 + $0x10] sm:$0xff]
          %v820 = vld [vmem:[#allocation5 + $0x18] sm:$0xff]
          %v821 = vld [vmem:[#allocation5 + $0x20] sm:$0xff]
          %v822 = vld [vmem:[#allocation5 + $0x28] sm:$0xff]
          %v823 = vld [vmem:[#allocation5 + $0x30] sm:$0xff]
          %v824 = vld [vmem:[#allocation5 + $0x38] sm:$0xff]
          %v825 = vld [vmem:[%s464] sm:$0xf]
          %v826 = vld [vmem:[%s464 + $0x4] sm:$0xf]
          %v827 = vld [vmem:[%s464 + $0x8] sm:$0xf]
          %v828 = vld [vmem:[%s464 + $0xc] sm:$0xf]
          %v829 = vld [vmem:[%s464 + $0x10] sm:$0xf]
          %v830 = vld [vmem:[%s464 + $0x14] sm:$0xf]
          %v831 = vld [vmem:[%s464 + $0x18] sm:$0xf]
          %v832 = vld [vmem:[%s464 + $0x1c] sm:$0xf]
          %v833 = vld [vmem:[%s464 + $0x20] sm:$0xf]
          %v834 = vld [vmem:[%s464 + $0x24] sm:$0xf]
          %v835 = vld [vmem:[%s464 + $0x28] sm:$0xf]
          %v836 = vld [vmem:[%s464 + $0x2c] sm:$0xf]
          %v837 = vld [vmem:[%s464 + $0x30] sm:$0xf]
          %v838 = vld [vmem:[%s464 + $0x34] sm:$0xf]
          %v839 = vld [vmem:[%s464 + $0x38] sm:$0xf]
          %v840 = vld [vmem:[%s464 + $0x3c] sm:$0xf]
          %v841 = vld [vmem:[%s464 + $0x40] sm:$0xf]
          %v842 = vld [vmem:[%s464 + $0x44] sm:$0xf]
          %v843 = vld [vmem:[%s464 + $0x48] sm:$0xf]
          %v844 = vld [vmem:[%s464 + $0x4c] sm:$0xf]
          %v845 = vld [vmem:[%s464 + $0x50] sm:$0xf]
          %v846 = vld [vmem:[%s464 + $0x54] sm:$0xf]
          %v847 = vld [vmem:[%s464 + $0x58] sm:$0xf]
          %v848 = vld [vmem:[%s464 + $0x5c] sm:$0xf]
          %v849 = vld [vmem:[%s464 + $0x60] sm:$0xf]
          %v850 = vld [vmem:[%s464 + $0x64] sm:$0xf]
          %v851 = vld [vmem:[%s464 + $0x68] sm:$0xf]
          %v852 = vld [vmem:[%s464 + $0x6c] sm:$0xf]
          %v853 = vld [vmem:[%s464 + $0x70] sm:$0xf]
          %v854 = vld [vmem:[%s464 + $0x74] sm:$0xf]
          %v855 = vld [vmem:[%s464 + $0x78] sm:$0xf]
          %v856 = vld [vmem:[%s464 + $0x7c] sm:$0xf]
          %v857 = vld [vmem:[%s464 + $0x80] sm:$0xf]
          %v858 = vld [vmem:[%s464 + $0x84] sm:$0xf]
          %v859 = vld [vmem:[%s464 + $0x88] sm:$0xf]
          %v860 = vld [vmem:[%s464 + $0x8c] sm:$0xf]
          %v861 = vld [vmem:[%s464 + $0x90] sm:$0xf]
          %v862 = vld [vmem:[%s464 + $0x94] sm:$0xf]
          %v863 = vld [vmem:[%s464 + $0x98] sm:$0xf]
          %v864 = vld [vmem:[%s464 + $0x9c] sm:$0xf]
          %v865 = vld [vmem:[%s464 + $0xa0] sm:$0xf]
          %v866 = vld [vmem:[%s464 + $0xa4] sm:$0xf]
          %v867 = vld [vmem:[%s464 + $0xa8] sm:$0xf]
          %v868 = vld [vmem:[%s464 + $0xac] sm:$0xf]
          %v869 = vld [vmem:[%s464 + $0xb0] sm:$0xf]
          %v870 = vld [vmem:[%s464 + $0xb4] sm:$0xf]
          %v871 = vld [vmem:[%s464 + $0xb8] sm:$0xf]
          %v872 = vld [vmem:[%s464 + $0xbc] sm:$0xf]
          %v873 = vld [vmem:[%s464 + $0xc0] sm:$0xf]
          %v874 = vld [vmem:[%s464 + $0xc4] sm:$0xf]
          %v875 = vld [vmem:[%s464 + $0xc8] sm:$0xf]
          %v876 = vld [vmem:[%s464 + $0xcc] sm:$0xf]
          %v877 = vld [vmem:[%s464 + $0xd0] sm:$0xf]
          %v878 = vld [vmem:[%s464 + $0xd4] sm:$0xf]
          %v879 = vld [vmem:[%s464 + $0xd8] sm:$0xf]
          %v880 = vld [vmem:[%s464 + $0xdc] sm:$0xf]
          %v881 = vld [vmem:[%s464 + $0xe0] sm:$0xf]
          %v882 = vld [vmem:[%s464 + $0xe4] sm:$0xf]
          %v883 = vld [vmem:[%s464 + $0xe8] sm:$0xf]
          %v884 = vld [vmem:[%s464 + $0xec] sm:$0xf]
          %v885 = vld [vmem:[%s464 + $0xf0] sm:$0xf]
          %v886 = vld [vmem:[%s464 + $0xf4] sm:$0xf]
          %v887 = vld [vmem:[%s464 + $0xf8] sm:$0xf]
          %v888 = vld [vmem:[%s464 + $0xfc] sm:$0xf]
          %v890 = vperm.slane %v610, 0
          %v956 = vunpack.c.l.b16 %v825
          %v957 = vunpack.c.l.b16 %v826
          %v958 = vunpack.c.l.b16 %v827
          %v959 = vunpack.c.l.b16 %v828
          %v960 = vunpack.c.l.b16 %v829
          %v961 = vunpack.c.l.b16 %v830
          %v962 = vunpack.c.l.b16 %v831
          %v963 = vunpack.c.l.b16 %v832
          %v964 = vunpack.c.l.b16 %v833
          %v965 = vunpack.c.l.b16 %v834
          %v966 = vunpack.c.l.b16 %v835
          %v967 = vunpack.c.l.b16 %v836
          %v968 = vunpack.c.l.b16 %v837
          %v969 = vunpack.c.l.b16 %v838
          %v970 = vunpack.c.l.b16 %v839
          %v971 = vunpack.c.l.b16 %v840
          %v972 = vunpack.c.l.b16 %v841
          %v973 = vunpack.c.l.b16 %v842
          %v974 = vunpack.c.l.b16 %v843
          %v975 = vunpack.c.l.b16 %v844
          %v976 = vunpack.c.l.b16 %v845
          %v977 = vunpack.c.l.b16 %v846
          %v978 = vunpack.c.l.b16 %v847
          %v979 = vunpack.c.l.b16 %v848
          %v980 = vunpack.c.l.b16 %v849
          %v981 = vunpack.c.l.b16 %v850
          %v982 = vunpack.c.l.b16 %v851
          %v983 = vunpack.c.l.b16 %v852
          %v984 = vunpack.c.l.b16 %v853
          %v985 = vunpack.c.l.b16 %v854
          %v986 = vunpack.c.l.b16 %v855
          %v987 = vunpack.c.l.b16 %v856
          %v988 = vunpack.c.l.b16 %v857
          %v989 = vunpack.c.l.b16 %v858
          %v990 = vunpack.c.l.b16 %v859
          %v991 = vunpack.c.l.b16 %v860
          %v992 = vunpack.c.l.b16 %v861
          %v993 = vunpack.c.l.b16 %v862
          %v994 = vunpack.c.l.b16 %v863
          %v995 = vunpack.c.l.b16 %v864
          %v996 = vunpack.c.l.b16 %v865
          %v997 = vunpack.c.l.b16 %v866
          %v998 = vunpack.c.l.b16 %v867
          %v999 = vunpack.c.l.b16 %v868
          %v1000 = vunpack.c.l.b16 %v869
          %v1001 = vunpack.c.l.b16 %v870
          %v1002 = vunpack.c.l.b16 %v871
          %v1003 = vunpack.c.l.b16 %v872
          %v1004 = vunpack.c.l.b16 %v873
          %v1005 = vunpack.c.l.b16 %v874
          %v1006 = vunpack.c.l.b16 %v875
          %v1007 = vunpack.c.l.b16 %v876
          %v1008 = vunpack.c.l.b16 %v877
          %v1009 = vunpack.c.l.b16 %v878
          %v1010 = vunpack.c.l.b16 %v879
          %v1011 = vunpack.c.l.b16 %v880
          %v1012 = vunpack.c.l.b16 %v881
          %v1013 = vunpack.c.l.b16 %v882
          %v1014 = vunpack.c.l.b16 %v883
          %v1015 = vunpack.c.l.b16 %v884
          %v1016 = vunpack.c.l.b16 %v885
          %v1017 = vunpack.c.l.b16 %v886
          %v1018 = vunpack.c.l.b16 %v887
          %v1019 = vunpack.c.l.b16 %v888
          %v1020 = vpack.c.b16 %v957, %v956
          %v1021 = vpack.c.b16 %v959, %v958
          %v1022 = vpack.c.b16 %v961, %v960
          %v1023 = vpack.c.b16 %v963, %v962
          %v1024 = vpack.c.b16 %v965, %v964
          %v1025 = vpack.c.b16 %v967, %v966
          %v1026 = vpack.c.b16 %v969, %v968
          %v1027 = vpack.c.b16 %v971, %v970
          %v1028 = vpack.c.b16 %v973, %v972
          %v1029 = vpack.c.b16 %v975, %v974
          %v1030 = vpack.c.b16 %v977, %v976
          %v1031 = vpack.c.b16 %v979, %v978
          %v1032 = vpack.c.b16 %v981, %v980
          %v1033 = vpack.c.b16 %v983, %v982
          %v1034 = vpack.c.b16 %v985, %v984
          %v1035 = vpack.c.b16 %v987, %v986
          %v1036 = vpack.c.b16 %v989, %v988
          %v1037 = vpack.c.b16 %v991, %v990
          %v1038 = vpack.c.b16 %v993, %v992
          %v1039 = vpack.c.b16 %v995, %v994
          %v1040 = vpack.c.b16 %v997, %v996
          %v1041 = vpack.c.b16 %v999, %v998
          %v1042 = vpack.c.b16 %v1001, %v1000
          %v1043 = vpack.c.b16 %v1003, %v1002
          %v1044 = vpack.c.b16 %v1005, %v1004
          %v1045 = vpack.c.b16 %v1007, %v1006
          %v1046 = vpack.c.b16 %v1009, %v1008
          %v1047 = vpack.c.b16 %v1011, %v1010
          %v1048 = vpack.c.b16 %v1013, %v1012
          %v1049 = vpack.c.b16 %v1015, %v1014
          %v1050 = vpack.c.b16 %v1017, %v1016
          %v1051 = vpack.c.b16 %v1019, %v1018
          %vm1052 = vcmask 64512
          %v1054 = vsel %vm1052, %v1020, 0
          %v1057 = vsel %vm1052, %v1021, 0
          %v1060 = vsel %vm1052, %v1022, 0
          %v1063 = vsel %vm1052, %v1023, 0
          %v1066 = vsel %vm1052, %v1024, 0
          %v1069 = vsel %vm1052, %v1025, 0
          %v1072 = vsel %vm1052, %v1026, 0
          %v1075 = vsel %vm1052, %v1027, 0
          %v1078 = vsel %vm1052, %v1028, 0
          %v1081 = vsel %vm1052, %v1029, 0
          %v1084 = vsel %vm1052, %v1030, 0
          %v1087 = vsel %vm1052, %v1031, 0
          %v1090 = vsel %vm1052, %v1032, 0
          %v1093 = vsel %vm1052, %v1033, 0
          %v1096 = vsel %vm1052, %v1034, 0
          %v1099 = vsel %vm1052, %v1035, 0
          %v1102 = vsel %vm1052, %v1036, 0
          %v1105 = vsel %vm1052, %v1037, 0
          %v1108 = vsel %vm1052, %v1038, 0
          %v1111 = vsel %vm1052, %v1039, 0
          %v1114 = vsel %vm1052, %v1040, 0
          %v1117 = vsel %vm1052, %v1041, 0
          %v1120 = vsel %vm1052, %v1042, 0
          %v1123 = vsel %vm1052, %v1043, 0
          %v1126 = vsel %vm1052, %v1044, 0
          %v1129 = vsel %vm1052, %v1045, 0
          %v1132 = vsel %vm1052, %v1046, 0
          %v1135 = vsel %vm1052, %v1047, 0
          %v1138 = vsel %vm1052, %v1048, 0
          %v1141 = vsel %vm1052, %v1049, 0
          %v1144 = vsel %vm1052, %v1050, 0
          %v1147 = vsel %vm1052, %v1051, 0
          %vm1149 = vcmask 1043456
          %v1151 = vsel %vm1149, %v608, 0
          %1153 = vmatpush.bf16.msra.mxu0 0
          %1154 = vmatpush.bf16.msra.mxu0 0
          %1155 = vmatpush.bf16.msra.mxu0 0
          %1156 = vmatpush.bf16.msra.mxu0 0
          %1157 = vmatpush.bf16.msra.mxu0 0
          %1158 = vmatpush.bf16.msra.mxu0 0
          %1159 = vmatpush.bf16.msra.mxu0 0
          %1160 = vmatpush.bf16.msra.mxu0 %v1151
          %1161 = vmatmul.bf16.gmra.mxu0 %v1054
          %v1162 = vpop.f32.mrf.mxu0
          %v1163 = vadd.f32 %v890, %v1162
          %v1164 = vpop.f32.mrf.mxu0
          %v1165 = vadd.f32 %v890, %v1164
          %1166 = vmatmul.bf16.gmra.mxu0 %v1057
          %v1167 = vpop.f32.mrf.mxu0
          %v1168 = vadd.f32 %v890, %v1167
          %v1169 = vpop.f32.mrf.mxu0
          %v1170 = vadd.f32 %v890, %v1169
          %1171 = vmatmul.bf16.gmra.mxu0 %v1060
          %v1172 = vpop.f32.mrf.mxu0
          %v1173 = vadd.f32 %v890, %v1172
          %v1174 = vpop.f32.mrf.mxu0
          %v1175 = vadd.f32 %v890, %v1174
          %1176 = vmatmul.bf16.gmra.mxu0 %v1063
          %v1177 = vpop.f32.mrf.mxu0
          %v1178 = vadd.f32 %v890, %v1177
          %v1179 = vpop.f32.mrf.mxu0
          %v1180 = vadd.f32 %v890, %v1179
          %1181 = vmatmul.bf16.gmra.mxu0 %v1066
          %v1182 = vpop.f32.mrf.mxu0
          %v1183 = vadd.f32 %v890, %v1182
          %v1184 = vpop.f32.mrf.mxu0
          %v1185 = vadd.f32 %v890, %v1184
          %1186 = vmatmul.bf16.gmra.mxu0 %v1069
          %v1187 = vpop.f32.mrf.mxu0
          %v1188 = vadd.f32 %v890, %v1187
          %v1189 = vpop.f32.mrf.mxu0
          %v1190 = vadd.f32 %v890, %v1189
          %1191 = vmatmul.bf16.gmra.mxu0 %v1072
          %v1192 = vpop.f32.mrf.mxu0
          %v1193 = vadd.f32 %v890, %v1192
          %v1194 = vpop.f32.mrf.mxu0
          %v1195 = vadd.f32 %v890, %v1194
          %1196 = vmatmul.bf16.gmra.mxu0 %v1075
          %v1197 = vpop.f32.mrf.mxu0
          %v1198 = vadd.f32 %v890, %v1197
          %v1199 = vpop.f32.mrf.mxu0
          %v1200 = vadd.f32 %v890, %v1199
          %1201 = vmatmul.bf16.gmra.mxu0 %v1078
          %v1202 = vpop.f32.mrf.mxu0
          %v1203 = vadd.f32 %v890, %v1202
          %v1204 = vpop.f32.mrf.mxu0
          %v1205 = vadd.f32 %v890, %v1204
          %1206 = vmatmul.bf16.gmra.mxu0 %v1081
          %v1207 = vpop.f32.mrf.mxu0
          %v1208 = vadd.f32 %v890, %v1207
          %v1209 = vpop.f32.mrf.mxu0
          %v1210 = vadd.f32 %v890, %v1209
          %1211 = vmatmul.bf16.gmra.mxu0 %v1084
          %v1212 = vpop.f32.mrf.mxu0
          %v1213 = vadd.f32 %v890, %v1212
          %v1214 = vpop.f32.mrf.mxu0
          %v1215 = vadd.f32 %v890, %v1214
          %1216 = vmatmul.bf16.gmra.mxu0 %v1087
          %v1217 = vpop.f32.mrf.mxu0
          %v1218 = vadd.f32 %v890, %v1217
          %v1219 = vpop.f32.mrf.mxu0
          %v1220 = vadd.f32 %v890, %v1219
          %1221 = vmatmul.bf16.gmra.mxu0 %v1090
          %v1222 = vpop.f32.mrf.mxu0
          %v1223 = vadd.f32 %v890, %v1222
          %v1224 = vpop.f32.mrf.mxu0
          %v1225 = vadd.f32 %v890, %v1224
          %1226 = vmatmul.bf16.gmra.mxu0 %v1093
          %v1227 = vpop.f32.mrf.mxu0
          %v1228 = vadd.f32 %v890, %v1227
          %v1229 = vpop.f32.mrf.mxu0
          %v1230 = vadd.f32 %v890, %v1229
          %1231 = vmatmul.bf16.gmra.mxu0 %v1096
          %v1232 = vpop.f32.mrf.mxu0
          %v1233 = vadd.f32 %v890, %v1232
          %v1234 = vpop.f32.mrf.mxu0
          %v1235 = vadd.f32 %v890, %v1234
          %1236 = vmatmul.bf16.gmra.mxu0 %v1099
          %v1237 = vpop.f32.mrf.mxu0
          %v1238 = vadd.f32 %v890, %v1237
          %v1239 = vpop.f32.mrf.mxu0
          %v1240 = vadd.f32 %v890, %v1239
          %1241 = vmatmul.bf16.gmra.mxu0 %v1102
          %v1242 = vpop.f32.mrf.mxu0
          %v1243 = vadd.f32 %v890, %v1242
          %v1244 = vpop.f32.mrf.mxu0
          %v1245 = vadd.f32 %v890, %v1244
          %1246 = vmatmul.bf16.gmra.mxu0 %v1105
          %v1247 = vpop.f32.mrf.mxu0
          %v1248 = vadd.f32 %v890, %v1247
          %v1249 = vpop.f32.mrf.mxu0
          %v1250 = vadd.f32 %v890, %v1249
          %1251 = vmatmul.bf16.gmra.mxu0 %v1108
          %v1252 = vpop.f32.mrf.mxu0
          %v1253 = vadd.f32 %v890, %v1252
          %v1254 = vpop.f32.mrf.mxu0
          %v1255 = vadd.f32 %v890, %v1254
          %1256 = vmatmul.bf16.gmra.mxu0 %v1111
          %v1257 = vpop.f32.mrf.mxu0
          %v1258 = vadd.f32 %v890, %v1257
          %v1259 = vpop.f32.mrf.mxu0
          %v1260 = vadd.f32 %v890, %v1259
          %1261 = vmatmul.bf16.gmra.mxu0 %v1114
          %v1262 = vpop.f32.mrf.mxu0
          %v1263 = vadd.f32 %v890, %v1262
          %v1264 = vpop.f32.mrf.mxu0
          %v1265 = vadd.f32 %v890, %v1264
          %1266 = vmatmul.bf16.gmra.mxu0 %v1117
          %v1267 = vpop.f32.mrf.mxu0
          %v1268 = vadd.f32 %v890, %v1267
          %v1269 = vpop.f32.mrf.mxu0
          %v1270 = vadd.f32 %v890, %v1269
          %1271 = vmatmul.bf16.gmra.mxu0 %v1120
          %v1272 = vpop.f32.mrf.mxu0
          %v1273 = vadd.f32 %v890, %v1272
          %v1274 = vpop.f32.mrf.mxu0
          %v1275 = vadd.f32 %v890, %v1274
          %1276 = vmatmul.bf16.gmra.mxu0 %v1123
          %v1277 = vpop.f32.mrf.mxu0
          %v1278 = vadd.f32 %v890, %v1277
          %v1279 = vpop.f32.mrf.mxu0
          %v1280 = vadd.f32 %v890, %v1279
          %1281 = vmatmul.bf16.gmra.mxu0 %v1126
          %v1282 = vpop.f32.mrf.mxu0
          %v1283 = vadd.f32 %v890, %v1282
          %v1284 = vpop.f32.mrf.mxu0
          %v1285 = vadd.f32 %v890, %v1284
          %1286 = vmatmul.bf16.gmra.mxu0 %v1129
          %v1287 = vpop.f32.mrf.mxu0
          %v1288 = vadd.f32 %v890, %v1287
          %v1289 = vpop.f32.mrf.mxu0
          %v1290 = vadd.f32 %v890, %v1289
          %1291 = vmatmul.bf16.gmra.mxu0 %v1132
          %v1292 = vpop.f32.mrf.mxu0
          %v1293 = vadd.f32 %v890, %v1292
          %v1294 = vpop.f32.mrf.mxu0
          %v1295 = vadd.f32 %v890, %v1294
          %1296 = vmatmul.bf16.gmra.mxu0 %v1135
          %v1297 = vpop.f32.mrf.mxu0
          %v1298 = vadd.f32 %v890, %v1297
          %v1299 = vpop.f32.mrf.mxu0
          %v1300 = vadd.f32 %v890, %v1299
          %1301 = vmatmul.bf16.gmra.mxu0 %v1138
          %v1302 = vpop.f32.mrf.mxu0
          %v1303 = vadd.f32 %v890, %v1302
          %v1304 = vpop.f32.mrf.mxu0
          %v1305 = vadd.f32 %v890, %v1304
          %1306 = vmatmul.bf16.gmra.mxu0 %v1141
          %v1307 = vpop.f32.mrf.mxu0
          %v1308 = vadd.f32 %v890, %v1307
          %v1309 = vpop.f32.mrf.mxu0
          %v1310 = vadd.f32 %v890, %v1309
          %1311 = vmatmul.bf16.gmra.mxu0 %v1144
          %v1312 = vpop.f32.mrf.mxu0
          %v1313 = vadd.f32 %v890, %v1312
          %v1314 = vpop.f32.mrf.mxu0
          %v1315 = vadd.f32 %v890, %v1314
          %1316 = vmatmul.bf16.gmra.mxu0 %v1147
          %v1317 = vpop.f32.mrf.mxu0
          %v1318 = vadd.f32 %v890, %v1317
          %v1319 = vpop.f32.mrf.mxu0
          %v1320 = vadd.f32 %v890, %v1319
          %1321 = vdwg.mxu0
          %v1330 = vrot.slane %v817, 1
          %v1331 = vrot.slane %v817, 2
          %v1332 = vrot.slane %v817, 3
          %v1333 = vrot.slane %v817, 4
          %v1334 = vrot.slane %v817, 5
          %v1335 = vrot.slane %v817, 6
          %v1336 = vrot.slane %v817, 7
          %v1337 = vrot.slane %v818, 1
          %v1338 = vrot.slane %v818, 2
          %v1339 = vrot.slane %v818, 3
          %v1340 = vrot.slane %v818, 4
          %v1341 = vrot.slane %v818, 5
          %v1342 = vrot.slane %v818, 6
          %v1343 = vrot.slane %v818, 7
          %v1344 = vrot.slane %v819, 1
          %v1345 = vrot.slane %v819, 2
          %v1346 = vrot.slane %v819, 3
          %v1347 = vrot.slane %v819, 4
          %v1348 = vrot.slane %v819, 5
          %v1349 = vrot.slane %v819, 6
          %v1350 = vrot.slane %v819, 7
          %v1351 = vrot.slane %v820, 1
          %v1352 = vrot.slane %v820, 2
          %v1353 = vrot.slane %v820, 3
          %v1354 = vrot.slane %v820, 4
          %v1355 = vrot.slane %v820, 5
          %v1356 = vrot.slane %v820, 6
          %v1357 = vrot.slane %v820, 7
          %v1358 = vrot.slane %v821, 1
          %v1359 = vrot.slane %v821, 2
          %v1360 = vrot.slane %v821, 3
          %v1361 = vrot.slane %v821, 4
          %v1362 = vrot.slane %v821, 5
          %v1363 = vrot.slane %v821, 6
          %v1364 = vrot.slane %v821, 7
          %v1365 = vrot.slane %v822, 1
          %v1366 = vrot.slane %v822, 2
          %v1367 = vrot.slane %v822, 3
          %v1368 = vrot.slane %v822, 4
          %v1369 = vrot.slane %v822, 5
          %v1370 = vrot.slane %v822, 6
          %v1371 = vrot.slane %v822, 7
          %v1372 = vrot.slane %v823, 1
          %v1373 = vrot.slane %v823, 2
          %v1374 = vrot.slane %v823, 3
          %v1375 = vrot.slane %v823, 4
          %v1376 = vrot.slane %v823, 5
          %v1377 = vrot.slane %v823, 6
          %v1378 = vrot.slane %v823, 7
          %v1379 = vrot.slane %v824, 1
          %v1380 = vrot.slane %v824, 2
          %v1381 = vrot.slane %v824, 3
          %v1382 = vrot.slane %v824, 4
          %v1383 = vrot.slane %v824, 5
          %v1384 = vrot.slane %v824, 6
          %v1385 = vrot.slane %v824, 7
          %v1386 = vperm.slane %v817, 0
          %v1387 = vperm.slane %v1330, 0
          %v1388 = vperm.slane %v1331, 0
          %v1389 = vperm.slane %v1332, 0
          %v1390 = vperm.slane %v1333, 0
          %v1391 = vperm.slane %v1334, 0
          %v1392 = vperm.slane %v1335, 0
          %v1393 = vperm.slane %v1336, 0
          %v1394 = vperm.slane %v818, 0
          %v1395 = vperm.slane %v1337, 0
          %v1396 = vperm.slane %v1338, 0
          %v1397 = vperm.slane %v1339, 0
          %v1398 = vperm.slane %v1340, 0
          %v1399 = vperm.slane %v1341, 0
          %v1400 = vperm.slane %v1342, 0
          %v1401 = vperm.slane %v1343, 0
          %v1402 = vperm.slane %v819, 0
          %v1403 = vperm.slane %v1344, 0
          %v1404 = vperm.slane %v1345, 0
          %v1405 = vperm.slane %v1346, 0
          %v1406 = vperm.slane %v1347, 0
          %v1407 = vperm.slane %v1348, 0
          %v1408 = vperm.slane %v1349, 0
          %v1409 = vperm.slane %v1350, 0
          %v1410 = vperm.slane %v820, 0
          %v1411 = vperm.slane %v1351, 0
          %v1412 = vperm.slane %v1352, 0
          %v1413 = vperm.slane %v1353, 0
          %v1414 = vperm.slane %v1354, 0
          %v1415 = vperm.slane %v1355, 0
          %v1416 = vperm.slane %v1356, 0
          %v1417 = vperm.slane %v1357, 0
          %v1418 = vperm.slane %v821, 0
          %v1419 = vperm.slane %v1358, 0
          %v1420 = vperm.slane %v1359, 0
          %v1421 = vperm.slane %v1360, 0
          %v1422 = vperm.slane %v1361, 0
          %v1423 = vperm.slane %v1362, 0
          %v1424 = vperm.slane %v1363, 0
          %v1425 = vperm.slane %v1364, 0
          %v1426 = vperm.slane %v822, 0
          %v1427 = vperm.slane %v1365, 0
          %v1428 = vperm.slane %v1366, 0
          %v1429 = vperm.slane %v1367, 0
          %v1430 = vperm.slane %v1368, 0
          %v1431 = vperm.slane %v1369, 0
          %v1432 = vperm.slane %v1370, 0
          %v1433 = vperm.slane %v1371, 0
          %v1434 = vperm.slane %v823, 0
          %v1435 = vperm.slane %v1372, 0
          %v1436 = vperm.slane %v1373, 0
          %v1437 = vperm.slane %v1374, 0
          %v1438 = vperm.slane %v1375, 0
          %v1439 = vperm.slane %v1376, 0
          %v1440 = vperm.slane %v1377, 0
          %v1441 = vperm.slane %v1378, 0
          %v1442 = vperm.slane %v824, 0
          %v1443 = vperm.slane %v1379, 0
          %v1444 = vperm.slane %v1380, 0
          %v1445 = vperm.slane %v1381, 0
          %v1446 = vperm.slane %v1382, 0
          %v1447 = vperm.slane %v1383, 0
          %v1448 = vperm.slane %v1384, 0
          %v1449 = vperm.slane %v1385, 0
          %v1514 = vadd.f32 %v1386, %v809
          %v1515 = vadd.f32 %v1387, %v809
          %v1516 = vadd.f32 %v1388, %v809
          %v1517 = vadd.f32 %v1389, %v809
          %v1518 = vadd.f32 %v1390, %v809
          %v1519 = vadd.f32 %v1391, %v809
          %v1520 = vadd.f32 %v1392, %v809
          %v1521 = vadd.f32 %v1393, %v809
          %v1522 = vadd.f32 %v1394, %v810
          %v1523 = vadd.f32 %v1395, %v810
          %v1524 = vadd.f32 %v1396, %v810
          %v1525 = vadd.f32 %v1397, %v810
          %v1526 = vadd.f32 %v1398, %v810
          %v1527 = vadd.f32 %v1399, %v810
          %v1528 = vadd.f32 %v1400, %v810
          %v1529 = vadd.f32 %v1401, %v810
          %v1530 = vadd.f32 %v1402, %v811
          %v1531 = vadd.f32 %v1403, %v811
          %v1532 = vadd.f32 %v1404, %v811
          %v1533 = vadd.f32 %v1405, %v811
          %v1534 = vadd.f32 %v1406, %v811
          %v1535 = vadd.f32 %v1407, %v811
          %v1536 = vadd.f32 %v1408, %v811
          %v1537 = vadd.f32 %v1409, %v811
          %v1538 = vadd.f32 %v1410, %v812
          %v1539 = vadd.f32 %v1411, %v812
          %v1540 = vadd.f32 %v1412, %v812
          %v1541 = vadd.f32 %v1413, %v812
          %v1542 = vadd.f32 %v1414, %v812
          %v1543 = vadd.f32 %v1415, %v812
          %v1544 = vadd.f32 %v1416, %v812
          %v1545 = vadd.f32 %v1417, %v812
          %v1546 = vadd.f32 %v1418, %v813
          %v1547 = vadd.f32 %v1419, %v813
          %v1548 = vadd.f32 %v1420, %v813
          %v1549 = vadd.f32 %v1421, %v813
          %v1550 = vadd.f32 %v1422, %v813
          %v1551 = vadd.f32 %v1423, %v813
          %v1552 = vadd.f32 %v1424, %v813
          %v1553 = vadd.f32 %v1425, %v813
          %v1554 = vadd.f32 %v1426, %v814
          %v1555 = vadd.f32 %v1427, %v814
          %v1556 = vadd.f32 %v1428, %v814
          %v1557 = vadd.f32 %v1429, %v814
          %v1558 = vadd.f32 %v1430, %v814
          %v1559 = vadd.f32 %v1431, %v814
          %v1560 = vadd.f32 %v1432, %v814
          %v1561 = vadd.f32 %v1433, %v814
          %v1562 = vadd.f32 %v1434, %v815
          %v1563 = vadd.f32 %v1435, %v815
          %v1564 = vadd.f32 %v1436, %v815
          %v1565 = vadd.f32 %v1437, %v815
          %v1566 = vadd.f32 %v1438, %v815
          %v1567 = vadd.f32 %v1439, %v815
          %v1568 = vadd.f32 %v1440, %v815
          %v1569 = vadd.f32 %v1441, %v815
          %v1570 = vadd.f32 %v1442, %v816
          %v1571 = vadd.f32 %v1443, %v816
          %v1572 = vadd.f32 %v1444, %v816
          %v1573 = vadd.f32 %v1445, %v816
          %v1574 = vadd.f32 %v1446, %v816
          %v1575 = vadd.f32 %v1447, %v816
          %v1576 = vadd.f32 %v1448, %v816
          %v1577 = vadd.f32 %v1449, %v816
          %v1578 = vadd.f32 %v1514, %v1163
          %v1579 = vadd.f32 %v1515, %v1165
          %v1580 = vadd.f32 %v1516, %v1168
          %v1581 = vadd.f32 %v1517, %v1170
          %v1582 = vadd.f32 %v1518, %v1173
          %v1583 = vadd.f32 %v1519, %v1175
          %v1584 = vadd.f32 %v1520, %v1178
          %v1585 = vadd.f32 %v1521, %v1180
          %v1586 = vadd.f32 %v1522, %v1183
          %v1587 = vadd.f32 %v1523, %v1185
          %v1588 = vadd.f32 %v1524, %v1188
          %v1589 = vadd.f32 %v1525, %v1190
          %v1590 = vadd.f32 %v1526, %v1193
          %v1591 = vadd.f32 %v1527, %v1195
          %v1592 = vadd.f32 %v1528, %v1198
          %v1593 = vadd.f32 %v1529, %v1200
          %v1594 = vadd.f32 %v1530, %v1203
          %v1595 = vadd.f32 %v1531, %v1205
          %v1596 = vadd.f32 %v1532, %v1208
          %v1597 = vadd.f32 %v1533, %v1210
          %v1598 = vadd.f32 %v1534, %v1213
          %v1599 = vadd.f32 %v1535, %v1215
          %v1600 = vadd.f32 %v1536, %v1218
          %v1601 = vadd.f32 %v1537, %v1220
          %v1602 = vadd.f32 %v1538, %v1223
          %v1603 = vadd.f32 %v1539, %v1225
          %v1604 = vadd.f32 %v1540, %v1228
          %v1605 = vadd.f32 %v1541, %v1230
          %v1606 = vadd.f32 %v1542, %v1233
          %v1607 = vadd.f32 %v1543, %v1235
          %v1608 = vadd.f32 %v1544, %v1238
          %v1609 = vadd.f32 %v1545, %v1240
          %v1610 = vadd.f32 %v1546, %v1243
          %v1611 = vadd.f32 %v1547, %v1245
          %v1612 = vadd.f32 %v1548, %v1248
          %v1613 = vadd.f32 %v1549, %v1250
          %v1614 = vadd.f32 %v1550, %v1253
          %v1615 = vadd.f32 %v1551, %v1255
          %v1616 = vadd.f32 %v1552, %v1258
          %v1617 = vadd.f32 %v1553, %v1260
          %v1618 = vadd.f32 %v1554, %v1263
          %v1619 = vadd.f32 %v1555, %v1265
          %v1620 = vadd.f32 %v1556, %v1268
          %v1621 = vadd.f32 %v1557, %v1270
          %v1622 = vadd.f32 %v1558, %v1273
          %v1623 = vadd.f32 %v1559, %v1275
          %v1624 = vadd.f32 %v1560, %v1278
          %v1625 = vadd.f32 %v1561, %v1280
          %v1626 = vadd.f32 %v1562, %v1283
          %v1627 = vadd.f32 %v1563, %v1285
          %v1628 = vadd.f32 %v1564, %v1288
          %v1629 = vadd.f32 %v1565, %v1290
          %v1630 = vadd.f32 %v1566, %v1293
          %v1631 = vadd.f32 %v1567, %v1295
          %v1632 = vadd.f32 %v1568, %v1298
          %v1633 = vadd.f32 %v1569, %v1300
          %v1634 = vadd.f32 %v1570, %v1303
          %v1635 = vadd.f32 %v1571, %v1305
          %v1636 = vadd.f32 %v1572, %v1308
          %v1637 = vadd.f32 %v1573, %v1310
          %v1638 = vadd.f32 %v1574, %v1313
          %v1639 = vadd.f32 %v1575, %v1315
          %v1640 = vadd.f32 %v1576, %v1318
          %v1641 = vadd.f32 %v1577, %v1320
          %vm1642 = vcmp.ge.f32.partialorder %v1578, 0.0
          %vm1643 = vcmp.ge.f32.partialorder %v1579, 0.0
          %vm1644 = vcmp.ge.f32.partialorder %v1580, 0.0
          %vm1645 = vcmp.ge.f32.partialorder %v1581, 0.0
          %vm1646 = vcmp.ge.f32.partialorder %v1582, 0.0
          %vm1647 = vcmp.ge.f32.partialorder %v1583, 0.0
          %vm1648 = vcmp.ge.f32.partialorder %v1584, 0.0
          %vm1649 = vcmp.ge.f32.partialorder %v1585, 0.0
          %vm1650 = vcmp.ge.f32.partialorder %v1586, 0.0
          %vm1651 = vcmp.ge.f32.partialorder %v1587, 0.0
          %vm1652 = vcmp.ge.f32.partialorder %v1588, 0.0
          %vm1653 = vcmp.ge.f32.partialorder %v1589, 0.0
          %vm1654 = vcmp.ge.f32.partialorder %v1590, 0.0
          %vm1655 = vcmp.ge.f32.partialorder %v1591, 0.0
          %vm1656 = vcmp.ge.f32.partialorder %v1592, 0.0
          %vm1657 = vcmp.ge.f32.partialorder %v1593, 0.0
          %vm1658 = vcmp.ge.f32.partialorder %v1594, 0.0
          %vm1659 = vcmp.ge.f32.partialorder %v1595, 0.0
          %vm1660 = vcmp.ge.f32.partialorder %v1596, 0.0
          %vm1661 = vcmp.ge.f32.partialorder %v1597, 0.0
          %vm1662 = vcmp.ge.f32.partialorder %v1598, 0.0
          %vm1663 = vcmp.ge.f32.partialorder %v1599, 0.0
          %vm1664 = vcmp.ge.f32.partialorder %v1600, 0.0
          %vm1665 = vcmp.ge.f32.partialorder %v1601, 0.0
          %vm1666 = vcmp.ge.f32.partialorder %v1602, 0.0
          %vm1667 = vcmp.ge.f32.partialorder %v1603, 0.0
          %vm1668 = vcmp.ge.f32.partialorder %v1604, 0.0
          %vm1669 = vcmp.ge.f32.partialorder %v1605, 0.0
          %vm1670 = vcmp.ge.f32.partialorder %v1606, 0.0
          %vm1671 = vcmp.ge.f32.partialorder %v1607, 0.0
          %vm1672 = vcmp.ge.f32.partialorder %v1608, 0.0
          %vm1673 = vcmp.ge.f32.partialorder %v1609, 0.0
          %vm1674 = vcmp.ge.f32.partialorder %v1610, 0.0
          %vm1675 = vcmp.ge.f32.partialorder %v1611, 0.0
          %vm1676 = vcmp.ge.f32.partialorder %v1612, 0.0
          %vm1677 = vcmp.ge.f32.partialorder %v1613, 0.0
          %vm1678 = vcmp.ge.f32.partialorder %v1614, 0.0
          %vm1679 = vcmp.ge.f32.partialorder %v1615, 0.0
          %vm1680 = vcmp.ge.f32.partialorder %v1616, 0.0
          %vm1681 = vcmp.ge.f32.partialorder %v1617, 0.0
          %vm1682 = vcmp.ge.f32.partialorder %v1618, 0.0
          %vm1683 = vcmp.ge.f32.partialorder %v1619, 0.0
          %vm1684 = vcmp.ge.f32.partialorder %v1620, 0.0
          %vm1685 = vcmp.ge.f32.partialorder %v1621, 0.0
          %vm1686 = vcmp.ge.f32.partialorder %v1622, 0.0
          %vm1687 = vcmp.ge.f32.partialorder %v1623, 0.0
          %vm1688 = vcmp.ge.f32.partialorder %v1624, 0.0
          %vm1689 = vcmp.ge.f32.partialorder %v1625, 0.0
          %vm1690 = vcmp.ge.f32.partialorder %v1626, 0.0
          %vm1691 = vcmp.ge.f32.partialorder %v1627, 0.0
          %vm1692 = vcmp.ge.f32.partialorder %v1628, 0.0
          %vm1693 = vcmp.ge.f32.partialorder %v1629, 0.0
          %vm1694 = vcmp.ge.f32.partialorder %v1630, 0.0
          %vm1695 = vcmp.ge.f32.partialorder %v1631, 0.0
          %vm1696 = vcmp.ge.f32.partialorder %v1632, 0.0
          %vm1697 = vcmp.ge.f32.partialorder %v1633, 0.0
          %vm1698 = vcmp.ge.f32.partialorder %v1634, 0.0
          %vm1699 = vcmp.ge.f32.partialorder %v1635, 0.0
          %vm1700 = vcmp.ge.f32.partialorder %v1636, 0.0
          %vm1701 = vcmp.ge.f32.partialorder %v1637, 0.0
          %vm1702 = vcmp.ge.f32.partialorder %v1638, 0.0
          %vm1703 = vcmp.ge.f32.partialorder %v1639, 0.0
          %vm1704 = vcmp.ge.f32.partialorder %v1640, 0.0
          %vm1705 = vcmp.ge.f32.partialorder %v1641, 0.0
          %v1706 = vmul.f32 %v1578, 0.2
          %v1707 = vmul.f32 %v1579, 0.2
          %v1708 = vmul.f32 %v1580, 0.2
          %v1709 = vmul.f32 %v1581, 0.2
          %v1710 = vmul.f32 %v1582, 0.2
          %v1711 = vmul.f32 %v1583, 0.2
          %v1712 = vmul.f32 %v1584, 0.2
          %v1713 = vmul.f32 %v1585, 0.2
          %v1714 = vmul.f32 %v1586, 0.2
          %v1715 = vmul.f32 %v1587, 0.2
          %v1716 = vmul.f32 %v1588, 0.2
          %v1717 = vmul.f32 %v1589, 0.2
          %v1718 = vmul.f32 %v1590, 0.2
          %v1719 = vmul.f32 %v1591, 0.2
          %v1720 = vmul.f32 %v1592, 0.2
          %v1721 = vmul.f32 %v1593, 0.2
          %v1722 = vmul.f32 %v1594, 0.2
          %v1723 = vmul.f32 %v1595, 0.2
          %v1724 = vmul.f32 %v1596, 0.2
          %v1725 = vmul.f32 %v1597, 0.2
          %v1726 = vmul.f32 %v1598, 0.2
          %v1727 = vmul.f32 %v1599, 0.2
          %v1728 = vmul.f32 %v1600, 0.2
          %v1729 = vmul.f32 %v1601, 0.2
          %v1730 = vmul.f32 %v1602, 0.2
          %v1731 = vmul.f32 %v1603, 0.2
          %v1732 = vmul.f32 %v1604, 0.2
          %v1733 = vmul.f32 %v1605, 0.2
          %v1734 = vmul.f32 %v1606, 0.2
          %v1735 = vmul.f32 %v1607, 0.2
          %v1736 = vmul.f32 %v1608, 0.2
          %v1737 = vmul.f32 %v1609, 0.2
          %v1738 = vmul.f32 %v1610, 0.2
          %v1739 = vmul.f32 %v1611, 0.2
          %v1740 = vmul.f32 %v1612, 0.2
          %v1741 = vmul.f32 %v1613, 0.2
          %v1742 = vmul.f32 %v1614, 0.2
          %v1743 = vmul.f32 %v1615, 0.2
          %v1744 = vmul.f32 %v1616, 0.2
          %v1745 = vmul.f32 %v1617, 0.2
          %v1746 = vmul.f32 %v1618, 0.2
          %v1747 = vmul.f32 %v1619, 0.2
          %v1748 = vmul.f32 %v1620, 0.2
          %v1749 = vmul.f32 %v1621, 0.2
          %v1750 = vmul.f32 %v1622, 0.2
          %v1751 = vmul.f32 %v1623, 0.2
          %v1752 = vmul.f32 %v1624, 0.2
          %v1753 = vmul.f32 %v1625, 0.2
          %v1754 = vmul.f32 %v1626, 0.2
          %v1755 = vmul.f32 %v1627, 0.2
          %v1756 = vmul.f32 %v1628, 0.2
          %v1757 = vmul.f32 %v1629, 0.2
          %v1758 = vmul.f32 %v1630, 0.2
          %v1759 = vmul.f32 %v1631, 0.2
          %v1760 = vmul.f32 %v1632, 0.2
          %v1761 = vmul.f32 %v1633, 0.2
          %v1762 = vmul.f32 %v1634, 0.2
          %v1763 = vmul.f32 %v1635, 0.2
          %v1764 = vmul.f32 %v1636, 0.2
          %v1765 = vmul.f32 %v1637, 0.2
          %v1766 = vmul.f32 %v1638, 0.2
          %v1767 = vmul.f32 %v1639, 0.2
          %v1768 = vmul.f32 %v1640, 0.2
          %v1769 = vmul.f32 %v1641, 0.2
          %v1770 = vsel %vm1642, %v1578, %v1706
          %v1771 = vsel %vm1643, %v1579, %v1707
          %v1772 = vsel %vm1644, %v1580, %v1708
          %v1773 = vsel %vm1645, %v1581, %v1709
          %v1774 = vsel %vm1646, %v1582, %v1710
          %v1775 = vsel %vm1647, %v1583, %v1711
          %v1776 = vsel %vm1648, %v1584, %v1712
          %v1777 = vsel %vm1649, %v1585, %v1713
          %v1778 = vsel %vm1650, %v1586, %v1714
          %v1779 = vsel %vm1651, %v1587, %v1715
          %v1780 = vsel %vm1652, %v1588, %v1716
          %v1781 = vsel %vm1653, %v1589, %v1717
          %v1782 = vsel %vm1654, %v1590, %v1718
          %v1783 = vsel %vm1655, %v1591, %v1719
          %v1784 = vsel %vm1656, %v1592, %v1720
          %v1785 = vsel %vm1657, %v1593, %v1721
          %v1786 = vsel %vm1658, %v1594, %v1722
          %v1787 = vsel %vm1659, %v1595, %v1723
          %v1788 = vsel %vm1660, %v1596, %v1724
          %v1789 = vsel %vm1661, %v1597, %v1725
          %v1790 = vsel %vm1662, %v1598, %v1726
          %v1791 = vsel %vm1663, %v1599, %v1727
          %v1792 = vsel %vm1664, %v1600, %v1728
          %v1793 = vsel %vm1665, %v1601, %v1729
          %v1794 = vsel %vm1666, %v1602, %v1730
          %v1795 = vsel %vm1667, %v1603, %v1731
          %v1796 = vsel %vm1668, %v1604, %v1732
          %v1797 = vsel %vm1669, %v1605, %v1733
          %v1798 = vsel %vm1670, %v1606, %v1734
          %v1799 = vsel %vm1671, %v1607, %v1735
          %v1800 = vsel %vm1672, %v1608, %v1736
          %v1801 = vsel %vm1673, %v1609, %v1737
          %v1802 = vsel %vm1674, %v1610, %v1738
          %v1803 = vsel %vm1675, %v1611, %v1739
          %v1804 = vsel %vm1676, %v1612, %v1740
          %v1805 = vsel %vm1677, %v1613, %v1741
          %v1806 = vsel %vm1678, %v1614, %v1742
          %v1807 = vsel %vm1679, %v1615, %v1743
          %v1808 = vsel %vm1680, %v1616, %v1744
          %v1809 = vsel %vm1681, %v1617, %v1745
          %v1810 = vsel %vm1682, %v1618, %v1746
          %v1811 = vsel %vm1683, %v1619, %v1747
          %v1812 = vsel %vm1684, %v1620, %v1748
          %v1813 = vsel %vm1685, %v1621, %v1749
          %v1814 = vsel %vm1686, %v1622, %v1750
          %v1815 = vsel %vm1687, %v1623, %v1751
          %v1816 = vsel %vm1688, %v1624, %v1752
          %v1817 = vsel %vm1689, %v1625, %v1753
          %v1818 = vsel %vm1690, %v1626, %v1754
          %v1819 = vsel %vm1691, %v1627, %v1755
          %v1820 = vsel %vm1692, %v1628, %v1756
          %v1821 = vsel %vm1693, %v1629, %v1757
          %v1822 = vsel %vm1694, %v1630, %v1758
          %v1823 = vsel %vm1695, %v1631, %v1759
          %v1824 = vsel %vm1696, %v1632, %v1760
          %v1825 = vsel %vm1697, %v1633, %v1761
          %v1826 = vsel %vm1698, %v1634, %v1762
          %v1827 = vsel %vm1699, %v1635, %v1763
          %v1828 = vsel %vm1700, %v1636, %v1764
          %v1829 = vsel %vm1701, %v1637, %v1765
          %v1830 = vsel %vm1702, %v1638, %v1766
          %v1831 = vsel %vm1703, %v1639, %v1767
          %v1832 = vsel %vm1704, %v1640, %v1768
          %v1833 = vsel %vm1705, %v1641, %v1769
          %v1834 = vpack.c.bf16 %v1771, %v1770
          %v1835 = vpack.c.bf16 %v1773, %v1772
          %v1836 = vpack.c.bf16 %v1775, %v1774
          %v1837 = vpack.c.bf16 %v1777, %v1776
          %v1838 = vpack.c.bf16 %v1779, %v1778
          %v1839 = vpack.c.bf16 %v1781, %v1780
          %v1840 = vpack.c.bf16 %v1783, %v1782
          %v1841 = vpack.c.bf16 %v1785, %v1784
          %v1842 = vpack.c.bf16 %v1787, %v1786
          %v1843 = vpack.c.bf16 %v1789, %v1788
          %v1844 = vpack.c.bf16 %v1791, %v1790
          %v1845 = vpack.c.bf16 %v1793, %v1792
          %v1846 = vpack.c.bf16 %v1795, %v1794
          %v1847 = vpack.c.bf16 %v1797, %v1796
          %v1848 = vpack.c.bf16 %v1799, %v1798
          %v1849 = vpack.c.bf16 %v1801, %v1800
          %v1850 = vpack.c.bf16 %v1803, %v1802
          %v1851 = vpack.c.bf16 %v1805, %v1804
          %v1852 = vpack.c.bf16 %v1807, %v1806
          %v1853 = vpack.c.bf16 %v1809, %v1808
          %v1854 = vpack.c.bf16 %v1811, %v1810
          %v1855 = vpack.c.bf16 %v1813, %v1812
          %v1856 = vpack.c.bf16 %v1815, %v1814
          %v1857 = vpack.c.bf16 %v1817, %v1816
          %v1858 = vpack.c.bf16 %v1819, %v1818
          %v1859 = vpack.c.bf16 %v1821, %v1820
          %v1860 = vpack.c.bf16 %v1823, %v1822
          %v1861 = vpack.c.bf16 %v1825, %v1824
          %v1862 = vpack.c.bf16 %v1827, %v1826
          %v1863 = vpack.c.bf16 %v1829, %v1828
          %v1864 = vpack.c.bf16 %v1831, %v1830
          %v1865 = vpack.c.bf16 %v1833, %v1832
          %v1870 = vunpack.c.l.b16 %v614
          %v1871 = vunpack.c.l.b16 %v615
          %v1872 = vunpack.c.l.b16 %v616
          %v1873 = vunpack.c.l.b16 %v617
          %v1874 = vpack.c.b16 %v1871, %v1870
          %v1875 = vpack.c.b16 %v1873, %v1872
          %v1879 = vsel %vm573, %v1834, 0
          %v1882 = vsel %vm573, %v1835, 0
          %v1885 = vsel %vm573, %v1836, 0
          %v1888 = vsel %vm573, %v1837, 0
          %v1891 = vsel %vm573, %v1838, 0
          %v1894 = vsel %vm573, %v1839, 0
          %v1897 = vsel %vm573, %v1840, 0
          %v1900 = vsel %vm573, %v1841, 0
          %v1903 = vsel %vm573, %v1842, 0
          %v1906 = vsel %vm573, %v1843, 0
          %v1909 = vsel %vm573, %v1844, 0
          %v1912 = vsel %vm573, %v1845, 0
          %v1915 = vsel %vm573, %v1846, 0
          %v1918 = vsel %vm573, %v1847, 0
          %v1921 = vsel %vm573, %v1848, 0
          %v1924 = vsel %vm573, %v1849, 0
          %v1927 = vsel %vm573, %v1850, 0
          %v1930 = vsel %vm573, %v1851, 0
          %v1933 = vsel %vm573, %v1852, 0
          %v1936 = vsel %vm573, %v1853, 0
          %v1939 = vsel %vm573, %v1854, 0
          %v1942 = vsel %vm573, %v1855, 0
          %v1945 = vsel %vm573, %v1856, 0
          %v1948 = vsel %vm573, %v1857, 0
          %v1951 = vsel %vm573, %v1858, 0
          %v1954 = vsel %vm573, %v1859, 0
          %v1957 = vsel %vm573, %v1860, 0
          %v1960 = vsel %vm573, %v1861, 0
          %v1963 = vsel %vm573, %v1862, 0
          %v1966 = vsel %vm573, %v1863, 0
          %v1969 = vsel %vm573, %v1864, 0
          %v1972 = vsel %vm573, %v1865, 0
          %1974 = vmatpush.bf16.msra.mxu0 0
          %1975 = vmatpush.bf16.msra.mxu0 0
          %1976 = vmatpush.bf16.msra.mxu0 0
          %1977 = vmatpush.bf16.msra.mxu0 0
          %1978 = vmatpush.bf16.msra.mxu0 0
          %1979 = vmatpush.bf16.msra.mxu0 0
          %1980 = vmatpush.bf16.msra.mxu0 %v1875
          %1981 = vmatpush.bf16.msra.mxu0 %v1874
          %1982 = vmatmul.bf16.gmra.mxu0 %v1879
          %v1983 = vpop.f32.mrf.mxu0
          %v1984 = vadd.f32 0.0, %v1983
          %v1985 = vpop.f32.mrf.mxu0
          %v1986 = vadd.f32 0.0, %v1985
          %1987 = vmatmul.bf16.gmra.mxu0 %v1882
          %v1988 = vpop.f32.mrf.mxu0
          %v1989 = vadd.f32 0.0, %v1988
          %v1990 = vpop.f32.mrf.mxu0
          %v1991 = vadd.f32 0.0, %v1990
          %1992 = vmatmul.bf16.gmra.mxu0 %v1885
          %v1993 = vpop.f32.mrf.mxu0
          %v1994 = vadd.f32 0.0, %v1993
          %v1995 = vpop.f32.mrf.mxu0
          %v1996 = vadd.f32 0.0, %v1995
          %1997 = vmatmul.bf16.gmra.mxu0 %v1888
          %v1998 = vpop.f32.mrf.mxu0
          %v1999 = vadd.f32 0.0, %v1998
          %v2000 = vpop.f32.mrf.mxu0
          %v2001 = vadd.f32 0.0, %v2000
          %2002 = vmatmul.bf16.gmra.mxu0 %v1891
          %v2003 = vpop.f32.mrf.mxu0
          %v2004 = vadd.f32 0.0, %v2003
          %v2005 = vpop.f32.mrf.mxu0
          %v2006 = vadd.f32 0.0, %v2005
          %2007 = vmatmul.bf16.gmra.mxu0 %v1894
          %v2008 = vpop.f32.mrf.mxu0
          %v2009 = vadd.f32 0.0, %v2008
          %v2010 = vpop.f32.mrf.mxu0
          %v2011 = vadd.f32 0.0, %v2010
          %2012 = vmatmul.bf16.gmra.mxu0 %v1897
          %v2013 = vpop.f32.mrf.mxu0
          %v2014 = vadd.f32 0.0, %v2013
          %v2015 = vpop.f32.mrf.mxu0
          %v2016 = vadd.f32 0.0, %v2015
          %2017 = vmatmul.bf16.gmra.mxu0 %v1900
          %v2018 = vpop.f32.mrf.mxu0
          %v2019 = vadd.f32 0.0, %v2018
          %v2020 = vpop.f32.mrf.mxu0
          %v2021 = vadd.f32 0.0, %v2020
          %2022 = vmatmul.bf16.gmra.mxu0 %v1903
          %v2023 = vpop.f32.mrf.mxu0
          %v2024 = vadd.f32 0.0, %v2023
          %v2025 = vpop.f32.mrf.mxu0
          %v2026 = vadd.f32 0.0, %v2025
          %2027 = vmatmul.bf16.gmra.mxu0 %v1906
          %v2028 = vpop.f32.mrf.mxu0
          %v2029 = vadd.f32 0.0, %v2028
          %v2030 = vpop.f32.mrf.mxu0
          %v2031 = vadd.f32 0.0, %v2030
          %2032 = vmatmul.bf16.gmra.mxu0 %v1909
          %v2033 = vpop.f32.mrf.mxu0
          %v2034 = vadd.f32 0.0, %v2033
          %v2035 = vpop.f32.mrf.mxu0
          %v2036 = vadd.f32 0.0, %v2035
          %2037 = vmatmul.bf16.gmra.mxu0 %v1912
          %v2038 = vpop.f32.mrf.mxu0
          %v2039 = vadd.f32 0.0, %v2038
          %v2040 = vpop.f32.mrf.mxu0
          %v2041 = vadd.f32 0.0, %v2040
          %2042 = vmatmul.bf16.gmra.mxu0 %v1915
          %v2043 = vpop.f32.mrf.mxu0
          %v2044 = vadd.f32 0.0, %v2043
          %v2045 = vpop.f32.mrf.mxu0
          %v2046 = vadd.f32 0.0, %v2045
          %2047 = vmatmul.bf16.gmra.mxu0 %v1918
          %v2048 = vpop.f32.mrf.mxu0
          %v2049 = vadd.f32 0.0, %v2048
          %v2050 = vpop.f32.mrf.mxu0
          %v2051 = vadd.f32 0.0, %v2050
          %2052 = vmatmul.bf16.gmra.mxu0 %v1921
          %v2053 = vpop.f32.mrf.mxu0
          %v2054 = vadd.f32 0.0, %v2053
          %v2055 = vpop.f32.mrf.mxu0
          %v2056 = vadd.f32 0.0, %v2055
          %2057 = vmatmul.bf16.gmra.mxu0 %v1924
          %v2058 = vpop.f32.mrf.mxu0
          %v2059 = vadd.f32 0.0, %v2058
          %v2060 = vpop.f32.mrf.mxu0
          %v2061 = vadd.f32 0.0, %v2060
          %2062 = vmatmul.bf16.gmra.mxu0 %v1927
          %v2063 = vpop.f32.mrf.mxu0
          %v2064 = vadd.f32 0.0, %v2063
          %v2065 = vpop.f32.mrf.mxu0
          %v2066 = vadd.f32 0.0, %v2065
          %2067 = vmatmul.bf16.gmra.mxu0 %v1930
          %v2068 = vpop.f32.mrf.mxu0
          %v2069 = vadd.f32 0.0, %v2068
          %v2070 = vpop.f32.mrf.mxu0
          %v2071 = vadd.f32 0.0, %v2070
          %2072 = vmatmul.bf16.gmra.mxu0 %v1933
          %v2073 = vpop.f32.mrf.mxu0
          %v2074 = vadd.f32 0.0, %v2073
          %v2075 = vpop.f32.mrf.mxu0
          %v2076 = vadd.f32 0.0, %v2075
          %2077 = vmatmul.bf16.gmra.mxu0 %v1936
          %v2078 = vpop.f32.mrf.mxu0
          %v2079 = vadd.f32 0.0, %v2078
          %v2080 = vpop.f32.mrf.mxu0
          %v2081 = vadd.f32 0.0, %v2080
          %2082 = vmatmul.bf16.gmra.mxu0 %v1939
          %v2083 = vpop.f32.mrf.mxu0
          %v2084 = vadd.f32 0.0, %v2083
          %v2085 = vpop.f32.mrf.mxu0
          %v2086 = vadd.f32 0.0, %v2085
          %2087 = vmatmul.bf16.gmra.mxu0 %v1942
          %v2088 = vpop.f32.mrf.mxu0
          %v2089 = vadd.f32 0.0, %v2088
          %v2090 = vpop.f32.mrf.mxu0
          %v2091 = vadd.f32 0.0, %v2090
          %2092 = vmatmul.bf16.gmra.mxu0 %v1945
          %v2093 = vpop.f32.mrf.mxu0
          %v2094 = vadd.f32 0.0, %v2093
          %v2095 = vpop.f32.mrf.mxu0
          %v2096 = vadd.f32 0.0, %v2095
          %2097 = vmatmul.bf16.gmra.mxu0 %v1948
          %v2098 = vpop.f32.mrf.mxu0
          %v2099 = vadd.f32 0.0, %v2098
          %v2100 = vpop.f32.mrf.mxu0
          %v2101 = vadd.f32 0.0, %v2100
          %2102 = vmatmul.bf16.gmra.mxu0 %v1951
          %v2103 = vpop.f32.mrf.mxu0
          %v2104 = vadd.f32 0.0, %v2103
          %v2105 = vpop.f32.mrf.mxu0
          %v2106 = vadd.f32 0.0, %v2105
          %2107 = vmatmul.bf16.gmra.mxu0 %v1954
          %v2108 = vpop.f32.mrf.mxu0
          %v2109 = vadd.f32 0.0, %v2108
          %v2110 = vpop.f32.mrf.mxu0
          %v2111 = vadd.f32 0.0, %v2110
          %2112 = vmatmul.bf16.gmra.mxu0 %v1957
          %v2113 = vpop.f32.mrf.mxu0
          %v2114 = vadd.f32 0.0, %v2113
          %v2115 = vpop.f32.mrf.mxu0
          %v2116 = vadd.f32 0.0, %v2115
          %2117 = vmatmul.bf16.gmra.mxu0 %v1960
          %v2118 = vpop.f32.mrf.mxu0
          %v2119 = vadd.f32 0.0, %v2118
          %v2120 = vpop.f32.mrf.mxu0
          %v2121 = vadd.f32 0.0, %v2120
          %2122 = vmatmul.bf16.gmra.mxu0 %v1963
          %v2123 = vpop.f32.mrf.mxu0
          %v2124 = vadd.f32 0.0, %v2123
          %v2125 = vpop.f32.mrf.mxu0
          %v2126 = vadd.f32 0.0, %v2125
          %2127 = vmatmul.bf16.gmra.mxu0 %v1966
          %v2128 = vpop.f32.mrf.mxu0
          %v2129 = vadd.f32 0.0, %v2128
          %v2130 = vpop.f32.mrf.mxu0
          %v2131 = vadd.f32 0.0, %v2130
          %2132 = vmatmul.bf16.gmra.mxu0 %v1969
          %v2133 = vpop.f32.mrf.mxu0
          %v2134 = vadd.f32 0.0, %v2133
          %v2135 = vpop.f32.mrf.mxu0
          %v2136 = vadd.f32 0.0, %v2135
          %2137 = vmatmul.bf16.gmra.mxu0 %v1972
          %v2138 = vpop.f32.mrf.mxu0
          %v2139 = vadd.f32 0.0, %v2138
          %v2140 = vpop.f32.mrf.mxu0
          %v2141 = vadd.f32 0.0, %v2140
          %2142 = vdwg.mxu0
          %2143 = vadd.xlane.f32.xlu0 %v1984
          %v2144 = vpop.xlane.xlu0 %2143
          %2145 = vadd.xlane.f32.xlu0 %v1986
          %v2146 = vpop.xlane.xlu0 %2145
          %2147 = vadd.xlane.f32.xlu0 %v1989
          %v2148 = vpop.xlane.xlu0 %2147
          %2149 = vadd.xlane.f32.xlu0 %v1991
          %v2150 = vpop.xlane.xlu0 %2149
          %2151 = vadd.xlane.f32.xlu0 %v1994
          %v2152 = vpop.xlane.xlu0 %2151
          %2153 = vadd.xlane.f32.xlu0 %v1996
          %v2154 = vpop.xlane.xlu0 %2153
          %2155 = vadd.xlane.f32.xlu0 %v1999
          %v2156 = vpop.xlane.xlu0 %2155
          %2157 = vadd.xlane.f32.xlu0 %v2001
          %v2158 = vpop.xlane.xlu0 %2157
          %2159 = vadd.xlane.f32.xlu0 %v2004
          %v2160 = vpop.xlane.xlu0 %2159
          %2161 = vadd.xlane.f32.xlu0 %v2006
          %v2162 = vpop.xlane.xlu0 %2161
          %2163 = vadd.xlane.f32.xlu0 %v2009
          %v2164 = vpop.xlane.xlu0 %2163
          %2165 = vadd.xlane.f32.xlu0 %v2011
          %v2166 = vpop.xlane.xlu0 %2165
          %2167 = vadd.xlane.f32.xlu0 %v2014
          %v2168 = vpop.xlane.xlu0 %2167
          %2169 = vadd.xlane.f32.xlu0 %v2016
          %v2170 = vpop.xlane.xlu0 %2169
          %2171 = vadd.xlane.f32.xlu0 %v2019
          %v2172 = vpop.xlane.xlu0 %2171
          %2173 = vadd.xlane.f32.xlu0 %v2021
          %v2174 = vpop.xlane.xlu0 %2173
          %2175 = vadd.xlane.f32.xlu0 %v2024
          %v2176 = vpop.xlane.xlu0 %2175
          %2177 = vadd.xlane.f32.xlu0 %v2026
          %v2178 = vpop.xlane.xlu0 %2177
          %2179 = vadd.xlane.f32.xlu0 %v2029
          %v2180 = vpop.xlane.xlu0 %2179
          %2181 = vadd.xlane.f32.xlu0 %v2031
          %v2182 = vpop.xlane.xlu0 %2181
          %2183 = vadd.xlane.f32.xlu0 %v2034
          %v2184 = vpop.xlane.xlu0 %2183
          %2185 = vadd.xlane.f32.xlu0 %v2036
          %v2186 = vpop.xlane.xlu0 %2185
          %2187 = vadd.xlane.f32.xlu0 %v2039
          %v2188 = vpop.xlane.xlu0 %2187
          %2189 = vadd.xlane.f32.xlu0 %v2041
          %v2190 = vpop.xlane.xlu0 %2189
          %2191 = vadd.xlane.f32.xlu0 %v2044
          %v2192 = vpop.xlane.xlu0 %2191
          %2193 = vadd.xlane.f32.xlu0 %v2046
          %v2194 = vpop.xlane.xlu0 %2193
          %2195 = vadd.xlane.f32.xlu0 %v2049
          %v2196 = vpop.xlane.xlu0 %2195
          %2197 = vadd.xlane.f32.xlu0 %v2051
          %v2198 = vpop.xlane.xlu0 %2197
          %2199 = vadd.xlane.f32.xlu0 %v2054
          %v2200 = vpop.xlane.xlu0 %2199
          %2201 = vadd.xlane.f32.xlu0 %v2056
          %v2202 = vpop.xlane.xlu0 %2201
          %2203 = vadd.xlane.f32.xlu0 %v2059
          %v2204 = vpop.xlane.xlu0 %2203
          %2205 = vadd.xlane.f32.xlu0 %v2061
          %v2206 = vpop.xlane.xlu0 %2205
          %2207 = vadd.xlane.f32.xlu0 %v2064
          %v2208 = vpop.xlane.xlu0 %2207
          %2209 = vadd.xlane.f32.xlu0 %v2066
          %v2210 = vpop.xlane.xlu0 %2209
          %2211 = vadd.xlane.f32.xlu0 %v2069
          %v2212 = vpop.xlane.xlu0 %2211
          %2213 = vadd.xlane.f32.xlu0 %v2071
          %v2214 = vpop.xlane.xlu0 %2213
          %2215 = vadd.xlane.f32.xlu0 %v2074
          %v2216 = vpop.xlane.xlu0 %2215
          %2217 = vadd.xlane.f32.xlu0 %v2076
          %v2218 = vpop.xlane.xlu0 %2217
          %2219 = vadd.xlane.f32.xlu0 %v2079
          %v2220 = vpop.xlane.xlu0 %2219
          %2221 = vadd.xlane.f32.xlu0 %v2081
          %v2222 = vpop.xlane.xlu0 %2221
          %2223 = vadd.xlane.f32.xlu0 %v2084
          %v2224 = vpop.xlane.xlu0 %2223
          %2225 = vadd.xlane.f32.xlu0 %v2086
          %v2226 = vpop.xlane.xlu0 %2225
          %2227 = vadd.xlane.f32.xlu0 %v2089
          %v2228 = vpop.xlane.xlu0 %2227
          %2229 = vadd.xlane.f32.xlu0 %v2091
          %v2230 = vpop.xlane.xlu0 %2229
          %2231 = vadd.xlane.f32.xlu0 %v2094
          %v2232 = vpop.xlane.xlu0 %2231
          %2233 = vadd.xlane.f32.xlu0 %v2096
          %v2234 = vpop.xlane.xlu0 %2233
          %2235 = vadd.xlane.f32.xlu0 %v2099
          %v2236 = vpop.xlane.xlu0 %2235
          %2237 = vadd.xlane.f32.xlu0 %v2101
          %v2238 = vpop.xlane.xlu0 %2237
          %2239 = vadd.xlane.f32.xlu0 %v2104
          %v2240 = vpop.xlane.xlu0 %2239
          %2241 = vadd.xlane.f32.xlu0 %v2106
          %v2242 = vpop.xlane.xlu0 %2241
          %2243 = vadd.xlane.f32.xlu0 %v2109
          %v2244 = vpop.xlane.xlu0 %2243
          %2245 = vadd.xlane.f32.xlu0 %v2111
          %v2246 = vpop.xlane.xlu0 %2245
          %2247 = vadd.xlane.f32.xlu0 %v2114
          %v2248 = vpop.xlane.xlu0 %2247
          %2249 = vadd.xlane.f32.xlu0 %v2116
          %v2250 = vpop.xlane.xlu0 %2249
          %2251 = vadd.xlane.f32.xlu0 %v2119
          %v2252 = vpop.xlane.xlu0 %2251
          %2253 = vadd.xlane.f32.xlu0 %v2121
          %v2254 = vpop.xlane.xlu0 %2253
          %2255 = vadd.xlane.f32.xlu0 %v2124
          %v2256 = vpop.xlane.xlu0 %2255
          %2257 = vadd.xlane.f32.xlu0 %v2126
          %v2258 = vpop.xlane.xlu0 %2257
          %2259 = vadd.xlane.f32.xlu0 %v2129
          %v2260 = vpop.xlane.xlu0 %2259
          %2261 = vadd.xlane.f32.xlu0 %v2131
          %v2262 = vpop.xlane.xlu0 %2261
          %2263 = vadd.xlane.f32.xlu0 %v2134
          %v2264 = vpop.xlane.xlu0 %2263
          %2265 = vadd.xlane.f32.xlu0 %v2136
          %v2266 = vpop.xlane.xlu0 %2265
          %2267 = vadd.xlane.f32.xlu0 %v2139
          %v2268 = vpop.xlane.xlu0 %2267
          %2269 = vadd.xlane.f32.xlu0 %v2141
          %v2270 = vpop.xlane.xlu0 %2269
          %v2272 = vperm.slane %v619, 0
          %2273 = vset.pattern.permute.xlu0 0
          %2274 = vperm.xlu0 %2273, %v2272
          %v2275 = vpop.permute.xlu0 %2274
          %v2277 = vadd.f32 %v2144, %v2275
          %v2278 = vadd.f32 %v2146, %v2275
          %v2279 = vadd.f32 %v2148, %v2275
          %v2280 = vadd.f32 %v2150, %v2275
          %v2281 = vadd.f32 %v2152, %v2275
          %v2282 = vadd.f32 %v2154, %v2275
          %v2283 = vadd.f32 %v2156, %v2275
          %v2284 = vadd.f32 %v2158, %v2275
          %v2285 = vadd.f32 %v2160, %v2275
          %v2286 = vadd.f32 %v2162, %v2275
          %v2287 = vadd.f32 %v2164, %v2275
          %v2288 = vadd.f32 %v2166, %v2275
          %v2289 = vadd.f32 %v2168, %v2275
          %v2290 = vadd.f32 %v2170, %v2275
          %v2291 = vadd.f32 %v2172, %v2275
          %v2292 = vadd.f32 %v2174, %v2275
          %v2293 = vadd.f32 %v2176, %v2275
          %v2294 = vadd.f32 %v2178, %v2275
          %v2295 = vadd.f32 %v2180, %v2275
          %v2296 = vadd.f32 %v2182, %v2275
          %v2297 = vadd.f32 %v2184, %v2275
          %v2298 = vadd.f32 %v2186, %v2275
          %v2299 = vadd.f32 %v2188, %v2275
          %v2300 = vadd.f32 %v2190, %v2275
          %v2301 = vadd.f32 %v2192, %v2275
          %v2302 = vadd.f32 %v2194, %v2275
          %v2303 = vadd.f32 %v2196, %v2275
          %v2304 = vadd.f32 %v2198, %v2275
          %v2305 = vadd.f32 %v2200, %v2275
          %v2306 = vadd.f32 %v2202, %v2275
          %v2307 = vadd.f32 %v2204, %v2275
          %v2308 = vadd.f32 %v2206, %v2275
          %v2309 = vadd.f32 %v2208, %v2275
          %v2310 = vadd.f32 %v2210, %v2275
          %v2311 = vadd.f32 %v2212, %v2275
          %v2312 = vadd.f32 %v2214, %v2275
          %v2313 = vadd.f32 %v2216, %v2275
          %v2314 = vadd.f32 %v2218, %v2275
          %v2315 = vadd.f32 %v2220, %v2275
          %v2316 = vadd.f32 %v2222, %v2275
          %v2317 = vadd.f32 %v2224, %v2275
          %v2318 = vadd.f32 %v2226, %v2275
          %v2319 = vadd.f32 %v2228, %v2275
          %v2320 = vadd.f32 %v2230, %v2275
          %v2321 = vadd.f32 %v2232, %v2275
          %v2322 = vadd.f32 %v2234, %v2275
          %v2323 = vadd.f32 %v2236, %v2275
          %v2324 = vadd.f32 %v2238, %v2275
          %v2325 = vadd.f32 %v2240, %v2275
          %v2326 = vadd.f32 %v2242, %v2275
          %v2327 = vadd.f32 %v2244, %v2275
          %v2328 = vadd.f32 %v2246, %v2275
          %v2329 = vadd.f32 %v2248, %v2275
          %v2330 = vadd.f32 %v2250, %v2275
          %v2331 = vadd.f32 %v2252, %v2275
          %v2332 = vadd.f32 %v2254, %v2275
          %v2333 = vadd.f32 %v2256, %v2275
          %v2334 = vadd.f32 %v2258, %v2275
          %v2335 = vadd.f32 %v2260, %v2275
          %v2336 = vadd.f32 %v2262, %v2275
          %v2337 = vadd.f32 %v2264, %v2275
          %v2338 = vadd.f32 %v2266, %v2275
          %v2339 = vadd.f32 %v2268, %v2275
          %v2340 = vadd.f32 %v2270, %v2275
          %v2405 = vlaneseq
          %v2406 = vand.u32 %v2405, 127
          %v2407 = vperm.slane %v2277, %v2406
          %v2408 = vperm.slane %v2278, %v2406
          %v2409 = vperm.slane %v2279, %v2406
          %v2410 = vperm.slane %v2280, %v2406
          %v2411 = vperm.slane %v2281, %v2406
          %v2412 = vperm.slane %v2282, %v2406
          %v2413 = vperm.slane %v2283, %v2406
          %v2414 = vperm.slane %v2284, %v2406
          %v2415 = vperm.slane %v2285, %v2406
          %v2416 = vperm.slane %v2286, %v2406
          %v2417 = vperm.slane %v2287, %v2406
          %v2418 = vperm.slane %v2288, %v2406
          %v2419 = vperm.slane %v2289, %v2406
          %v2420 = vperm.slane %v2290, %v2406
          %v2421 = vperm.slane %v2291, %v2406
          %v2422 = vperm.slane %v2292, %v2406
          %v2423 = vperm.slane %v2293, %v2406
          %v2424 = vperm.slane %v2294, %v2406
          %v2425 = vperm.slane %v2295, %v2406
          %v2426 = vperm.slane %v2296, %v2406
          %v2427 = vperm.slane %v2297, %v2406
          %v2428 = vperm.slane %v2298, %v2406
          %v2429 = vperm.slane %v2299, %v2406
          %v2430 = vperm.slane %v2300, %v2406
          %v2431 = vperm.slane %v2301, %v2406
          %v2432 = vperm.slane %v2302, %v2406
          %v2433 = vperm.slane %v2303, %v2406
          %v2434 = vperm.slane %v2304, %v2406
          %v2435 = vperm.slane %v2305, %v2406
          %v2436 = vperm.slane %v2306, %v2406
          %v2437 = vperm.slane %v2307, %v2406
          %v2438 = vperm.slane %v2308, %v2406
          %v2439 = vperm.slane %v2309, %v2406
          %v2440 = vperm.slane %v2310, %v2406
          %v2441 = vperm.slane %v2311, %v2406
          %v2442 = vperm.slane %v2312, %v2406
          %v2443 = vperm.slane %v2313, %v2406
          %v2444 = vperm.slane %v2314, %v2406
          %v2445 = vperm.slane %v2315, %v2406
          %v2446 = vperm.slane %v2316, %v2406
          %v2447 = vperm.slane %v2317, %v2406
          %v2448 = vperm.slane %v2318, %v2406
          %v2449 = vperm.slane %v2319, %v2406
          %v2450 = vperm.slane %v2320, %v2406
          %v2451 = vperm.slane %v2321, %v2406
          %v2452 = vperm.slane %v2322, %v2406
          %v2453 = vperm.slane %v2323, %v2406
          %v2454 = vperm.slane %v2324, %v2406
          %v2455 = vperm.slane %v2325, %v2406
          %v2456 = vperm.slane %v2326, %v2406
          %v2457 = vperm.slane %v2327, %v2406
          %v2458 = vperm.slane %v2328, %v2406
          %v2459 = vperm.slane %v2329, %v2406
          %v2460 = vperm.slane %v2330, %v2406
          %v2461 = vperm.slane %v2331, %v2406
          %v2462 = vperm.slane %v2332, %v2406
          %v2463 = vperm.slane %v2333, %v2406
          %v2464 = vperm.slane %v2334, %v2406
          %v2465 = vperm.slane %v2335, %v2406
          %v2466 = vperm.slane %v2336, %v2406
          %v2467 = vperm.slane %v2337, %v2406
          %v2468 = vperm.slane %v2338, %v2406
          %v2469 = vperm.slane %v2339, %v2406
          %v2470 = vperm.slane %v2340, %v2406
          %vm2471 = vcmask 1041409
          %v2472 = vsel %vm2471, %v2408, %v2407
          %vm2473 = vcmask 1042434
          %v2474 = vsel %vm2473, %v2409, %v2472
          %vm2475 = vcmask 1043459
          %v2476 = vsel %vm2475, %v2410, %v2474
          %vm2477 = vcmask 1044484
          %v2478 = vsel %vm2477, %v2411, %v2476
          %vm2479 = vcmask 1045509
          %v2480 = vsel %vm2479, %v2412, %v2478
          %vm2481 = vcmask 1046534
          %v2482 = vsel %vm2481, %v2413, %v2480
          %vm2483 = vcmask 1047559
          %v2484 = vsel %vm2483, %v2414, %v2482
          %v2485 = vsel %vm2471, %v2416, %v2415
          %v2486 = vsel %vm2473, %v2417, %v2485
          %v2487 = vsel %vm2475, %v2418, %v2486
          %v2488 = vsel %vm2477, %v2419, %v2487
          %v2489 = vsel %vm2479, %v2420, %v2488
          %v2490 = vsel %vm2481, %v2421, %v2489
          %v2491 = vsel %vm2483, %v2422, %v2490
          %v2492 = vsel %vm2471, %v2424, %v2423
          %v2493 = vsel %vm2473, %v2425, %v2492
          %v2494 = vsel %vm2475, %v2426, %v2493
          %v2495 = vsel %vm2477, %v2427, %v2494
          %v2496 = vsel %vm2479, %v2428, %v2495
          %v2497 = vsel %vm2481, %v2429, %v2496
          %v2498 = vsel %vm2483, %v2430, %v2497
          %v2499 = vsel %vm2471, %v2432, %v2431
          %v2500 = vsel %vm2473, %v2433, %v2499
          %v2501 = vsel %vm2475, %v2434, %v2500
          %v2502 = vsel %vm2477, %v2435, %v2501
          %v2503 = vsel %vm2479, %v2436, %v2502
          %v2504 = vsel %vm2481, %v2437, %v2503
          %v2505 = vsel %vm2483, %v2438, %v2504
          %v2506 = vsel %vm2471, %v2440, %v2439
          %v2507 = vsel %vm2473, %v2441, %v2506
          %v2508 = vsel %vm2475, %v2442, %v2507
          %v2509 = vsel %vm2477, %v2443, %v2508
          %v2510 = vsel %vm2479, %v2444, %v2509
          %v2511 = vsel %vm2481, %v2445, %v2510
          %v2512 = vsel %vm2483, %v2446, %v2511
          %v2513 = vsel %vm2471, %v2448, %v2447
          %v2514 = vsel %vm2473, %v2449, %v2513
          %v2515 = vsel %vm2475, %v2450, %v2514
          %v2516 = vsel %vm2477, %v2451, %v2515
          %v2517 = vsel %vm2479, %v2452, %v2516
          %v2518 = vsel %vm2481, %v2453, %v2517
          %v2519 = vsel %vm2483, %v2454, %v2518
          %v2520 = vsel %vm2471, %v2456, %v2455
          %v2521 = vsel %vm2473, %v2457, %v2520
          %v2522 = vsel %vm2475, %v2458, %v2521
          %v2523 = vsel %vm2477, %v2459, %v2522
          %v2524 = vsel %vm2479, %v2460, %v2523
          %v2525 = vsel %vm2481, %v2461, %v2524
          %v2526 = vsel %vm2483, %v2462, %v2525
          %v2527 = vsel %vm2471, %v2464, %v2463
          %v2528 = vsel %vm2473, %v2465, %v2527
          %v2529 = vsel %vm2475, %v2466, %v2528
          %v2530 = vsel %vm2477, %v2467, %v2529
          %v2531 = vsel %vm2479, %v2468, %v2530
          %v2532 = vsel %vm2481, %v2469, %v2531
          %v2533 = vsel %vm2483, %v2470, %v2532
          %v2542 = vsel %vm1052, %v2484, -inf
          %2543 = vmax.xlane.f32.xlu0 %v2542
          %v2544 = vpop.xlane.xlu0 %2543
          %v2545 = vsel %vm1052, %v2491, -inf
          %2546 = vmax.xlane.f32.xlu0 %v2545
          %v2547 = vpop.xlane.xlu0 %2546
          %v2548 = vsel %vm1052, %v2498, -inf
          %2549 = vmax.xlane.f32.xlu0 %v2548
          %v2550 = vpop.xlane.xlu0 %2549
          %v2551 = vsel %vm1052, %v2505, -inf
          %2552 = vmax.xlane.f32.xlu0 %v2551
          %v2553 = vpop.xlane.xlu0 %2552
          %v2554 = vsel %vm1052, %v2512, -inf
          %2555 = vmax.xlane.f32.xlu0 %v2554
          %v2556 = vpop.xlane.xlu0 %2555
          %v2557 = vsel %vm1052, %v2519, -inf
          %2558 = vmax.xlane.f32.xlu0 %v2557
          %v2559 = vpop.xlane.xlu0 %2558
          %v2560 = vsel %vm1052, %v2526, -inf
          %2561 = vmax.xlane.f32.xlu0 %v2560
          %v2562 = vpop.xlane.xlu0 %2561
          %v2563 = vsel %vm1052, %v2533, -inf
          %2564 = vmax.xlane.f32.xlu0 %v2563
          %v2565 = vpop.xlane.xlu0 %2564
          %v2574 = vperm.slane %v2544, 0
          %v2575 = vperm.slane %v2544, 1
          %v2576 = vperm.slane %v2544, 2
          %v2577 = vperm.slane %v2544, 3
          %v2578 = vperm.slane %v2544, 4
          %v2579 = vperm.slane %v2544, 5
          %v2580 = vperm.slane %v2544, 6
          %v2581 = vperm.slane %v2544, 7
          %v2582 = vperm.slane %v2547, 0
          %v2583 = vperm.slane %v2547, 1
          %v2584 = vperm.slane %v2547, 2
          %v2585 = vperm.slane %v2547, 3
          %v2586 = vperm.slane %v2547, 4
          %v2587 = vperm.slane %v2547, 5
          %v2588 = vperm.slane %v2547, 6
          %v2589 = vperm.slane %v2547, 7
          %v2590 = vperm.slane %v2550, 0
          %v2591 = vperm.slane %v2550, 1
          %v2592 = vperm.slane %v2550, 2
          %v2593 = vperm.slane %v2550, 3
          %v2594 = vperm.slane %v2550, 4
          %v2595 = vperm.slane %v2550, 5
          %v2596 = vperm.slane %v2550, 6
          %v2597 = vperm.slane %v2550, 7
          %v2598 = vperm.slane %v2553, 0
          %v2599 = vperm.slane %v2553, 1
          %v2600 = vperm.slane %v2553, 2
          %v2601 = vperm.slane %v2553, 3
          %v2602 = vperm.slane %v2553, 4
          %v2603 = vperm.slane %v2553, 5
          %v2604 = vperm.slane %v2553, 6
          %v2605 = vperm.slane %v2553, 7
          %v2606 = vperm.slane %v2556, 0
          %v2607 = vperm.slane %v2556, 1
          %v2608 = vperm.slane %v2556, 2
          %v2609 = vperm.slane %v2556, 3
          %v2610 = vperm.slane %v2556, 4
          %v2611 = vperm.slane %v2556, 5
          %v2612 = vperm.slane %v2556, 6
          %v2613 = vperm.slane %v2556, 7
          %v2614 = vperm.slane %v2559, 0
          %v2615 = vperm.slane %v2559, 1
          %v2616 = vperm.slane %v2559, 2
          %v2617 = vperm.slane %v2559, 3
          %v2618 = vperm.slane %v2559, 4
          %v2619 = vperm.slane %v2559, 5
          %v2620 = vperm.slane %v2559, 6
          %v2621 = vperm.slane %v2559, 7
          %v2622 = vperm.slane %v2562, 0
          %v2623 = vperm.slane %v2562, 1
          %v2624 = vperm.slane %v2562, 2
          %v2625 = vperm.slane %v2562, 3
          %v2626 = vperm.slane %v2562, 4
          %v2627 = vperm.slane %v2562, 5
          %v2628 = vperm.slane %v2562, 6
          %v2629 = vperm.slane %v2562, 7
          %v2630 = vperm.slane %v2565, 0
          %v2631 = vperm.slane %v2565, 1
          %v2632 = vperm.slane %v2565, 2
          %v2633 = vperm.slane %v2565, 3
          %v2634 = vperm.slane %v2565, 4
          %v2635 = vperm.slane %v2565, 5
          %v2636 = vperm.slane %v2565, 6
          %v2637 = vperm.slane %v2565, 7
          %v2702 = vsub.f32 %v2277, %v2574
          %v2703 = vsub.f32 %v2278, %v2575
          %v2704 = vsub.f32 %v2279, %v2576
          %v2705 = vsub.f32 %v2280, %v2577
          %v2706 = vsub.f32 %v2281, %v2578
          %v2707 = vsub.f32 %v2282, %v2579
          %v2708 = vsub.f32 %v2283, %v2580
          %v2709 = vsub.f32 %v2284, %v2581
          %v2710 = vsub.f32 %v2285, %v2582
          %v2711 = vsub.f32 %v2286, %v2583
          %v2712 = vsub.f32 %v2287, %v2584
          %v2713 = vsub.f32 %v2288, %v2585
          %v2714 = vsub.f32 %v2289, %v2586
          %v2715 = vsub.f32 %v2290, %v2587
          %v2716 = vsub.f32 %v2291, %v2588
          %v2717 = vsub.f32 %v2292, %v2589
          %v2718 = vsub.f32 %v2293, %v2590
          %v2719 = vsub.f32 %v2294, %v2591
          %v2720 = vsub.f32 %v2295, %v2592
          %v2721 = vsub.f32 %v2296, %v2593
          %v2722 = vsub.f32 %v2297, %v2594
          %v2723 = vsub.f32 %v2298, %v2595
          %v2724 = vsub.f32 %v2299, %v2596
          %v2725 = vsub.f32 %v2300, %v2597
          %v2726 = vsub.f32 %v2301, %v2598
          %v2727 = vsub.f32 %v2302, %v2599
          %v2728 = vsub.f32 %v2303, %v2600
          %v2729 = vsub.f32 %v2304, %v2601
          %v2730 = vsub.f32 %v2305, %v2602
          %v2731 = vsub.f32 %v2306, %v2603
          %v2732 = vsub.f32 %v2307, %v2604
          %v2733 = vsub.f32 %v2308, %v2605
          %v2734 = vsub.f32 %v2309, %v2606
          %v2735 = vsub.f32 %v2310, %v2607
          %v2736 = vsub.f32 %v2311, %v2608
          %v2737 = vsub.f32 %v2312, %v2609
          %v2738 = vsub.f32 %v2313, %v2610
          %v2739 = vsub.f32 %v2314, %v2611
          %v2740 = vsub.f32 %v2315, %v2612
          %v2741 = vsub.f32 %v2316, %v2613
          %v2742 = vsub.f32 %v2317, %v2614
          %v2743 = vsub.f32 %v2318, %v2615
          %v2744 = vsub.f32 %v2319, %v2616
          %v2745 = vsub.f32 %v2320, %v2617
          %v2746 = vsub.f32 %v2321, %v2618
          %v2747 = vsub.f32 %v2322, %v2619
          %v2748 = vsub.f32 %v2323, %v2620
          %v2749 = vsub.f32 %v2324, %v2621
          %v2750 = vsub.f32 %v2325, %v2622
          %v2751 = vsub.f32 %v2326, %v2623
          %v2752 = vsub.f32 %v2327, %v2624
          %v2753 = vsub.f32 %v2328, %v2625
          %v2754 = vsub.f32 %v2329, %v2626
          %v2755 = vsub.f32 %v2330, %v2627
          %v2756 = vsub.f32 %v2331, %v2628
          %v2757 = vsub.f32 %v2332, %v2629
          %v2758 = vsub.f32 %v2333, %v2630
          %v2759 = vsub.f32 %v2334, %v2631
          %v2760 = vsub.f32 %v2335, %v2632
          %v2761 = vsub.f32 %v2336, %v2633
          %v2762 = vsub.f32 %v2337, %v2634
          %v2763 = vsub.f32 %v2338, %v2635
          %v2764 = vsub.f32 %v2339, %v2636
          %v2765 = vsub.f32 %v2340, %v2637
          %v2766 = vmul.f32 %v2702, 1.442695
          %v2767 = vpow.pop %v2766
          %v2768 = vmul.f32 %v2703, 1.442695
          %v2769 = vpow.pop %v2768
          %v2770 = vmul.f32 %v2704, 1.442695
          %v2771 = vpow.pop %v2770
          %v2772 = vmul.f32 %v2705, 1.442695
          %v2773 = vpow.pop %v2772
          %v2774 = vmul.f32 %v2706, 1.442695
          %v2775 = vpow.pop %v2774
          %v2776 = vmul.f32 %v2707, 1.442695
          %v2777 = vpow.pop %v2776
          %v2778 = vmul.f32 %v2708, 1.442695
          %v2779 = vpow.pop %v2778
          %v2780 = vmul.f32 %v2709, 1.442695
          %v2781 = vpow.pop %v2780
          %v2782 = vmul.f32 %v2710, 1.442695
          %v2783 = vpow.pop %v2782
          %v2784 = vmul.f32 %v2711, 1.442695
          %v2785 = vpow.pop %v2784
          %v2786 = vmul.f32 %v2712, 1.442695
          %v2787 = vpow.pop %v2786
          %v2788 = vmul.f32 %v2713, 1.442695
          %v2789 = vpow.pop %v2788
          %v2790 = vmul.f32 %v2714, 1.442695
          %v2791 = vpow.pop %v2790
          %v2792 = vmul.f32 %v2715, 1.442695
          %v2793 = vpow.pop %v2792
          %v2794 = vmul.f32 %v2716, 1.442695
          %v2795 = vpow.pop %v2794
          %v2796 = vmul.f32 %v2717, 1.442695
          %v2797 = vpow.pop %v2796
          %v2798 = vmul.f32 %v2718, 1.442695
          %v2799 = vpow.pop %v2798
          %v2800 = vmul.f32 %v2719, 1.442695
          %v2801 = vpow.pop %v2800
          %v2802 = vmul.f32 %v2720, 1.442695
          %v2803 = vpow.pop %v2802
          %v2804 = vmul.f32 %v2721, 1.442695
          %v2805 = vpow.pop %v2804
          %v2806 = vmul.f32 %v2722, 1.442695
          %v2807 = vpow.pop %v2806
          %v2808 = vmul.f32 %v2723, 1.442695
          %v2809 = vpow.pop %v2808
          %v2810 = vmul.f32 %v2724, 1.442695
          %v2811 = vpow.pop %v2810
          %v2812 = vmul.f32 %v2725, 1.442695
          %v2813 = vpow.pop %v2812
          %v2814 = vmul.f32 %v2726, 1.442695
          %v2815 = vpow.pop %v2814
          %v2816 = vmul.f32 %v2727, 1.442695
          %v2817 = vpow.pop %v2816
          %v2818 = vmul.f32 %v2728, 1.442695
          %v2819 = vpow.pop %v2818
          %v2820 = vmul.f32 %v2729, 1.442695
          %v2821 = vpow.pop %v2820
          %v2822 = vmul.f32 %v2730, 1.442695
          %v2823 = vpow.pop %v2822
          %v2824 = vmul.f32 %v2731, 1.442695
          %v2825 = vpow.pop %v2824
          %v2826 = vmul.f32 %v2732, 1.442695
          %v2827 = vpow.pop %v2826
          %v2828 = vmul.f32 %v2733, 1.442695
          %v2829 = vpow.pop %v2828
          %v2830 = vmul.f32 %v2734, 1.442695
          %v2831 = vpow.pop %v2830
          %v2832 = vmul.f32 %v2735, 1.442695
          %v2833 = vpow.pop %v2832
          %v2834 = vmul.f32 %v2736, 1.442695
          %v2835 = vpow.pop %v2834
          %v2836 = vmul.f32 %v2737, 1.442695
          %v2837 = vpow.pop %v2836
          %v2838 = vmul.f32 %v2738, 1.442695
          %v2839 = vpow.pop %v2838
          %v2840 = vmul.f32 %v2739, 1.442695
          %v2841 = vpow.pop %v2840
          %v2842 = vmul.f32 %v2740, 1.442695
          %v2843 = vpow.pop %v2842
          %v2844 = vmul.f32 %v2741, 1.442695
          %v2845 = vpow.pop %v2844
          %v2846 = vmul.f32 %v2742, 1.442695
          %v2847 = vpow.pop %v2846
          %v2848 = vmul.f32 %v2743, 1.442695
          %v2849 = vpow.pop %v2848
          %v2850 = vmul.f32 %v2744, 1.442695
          %v2851 = vpow.pop %v2850
          %v2852 = vmul.f32 %v2745, 1.442695
          %v2853 = vpow.pop %v2852
          %v2854 = vmul.f32 %v2746, 1.442695
          %v2855 = vpow.pop %v2854
          %v2856 = vmul.f32 %v2747, 1.442695
          %v2857 = vpow.pop %v2856
          %v2858 = vmul.f32 %v2748, 1.442695
          %v2859 = vpow.pop %v2858
          %v2860 = vmul.f32 %v2749, 1.442695
          %v2861 = vpow.pop %v2860
          %v2862 = vmul.f32 %v2750, 1.442695
          %v2863 = vpow.pop %v2862
          %v2864 = vmul.f32 %v2751, 1.442695
          %v2865 = vpow.pop %v2864
          %v2866 = vmul.f32 %v2752, 1.442695
          %v2867 = vpow.pop %v2866
          %v2868 = vmul.f32 %v2753, 1.442695
          %v2869 = vpow.pop %v2868
          %v2870 = vmul.f32 %v2754, 1.442695
          %v2871 = vpow.pop %v2870
          %v2872 = vmul.f32 %v2755, 1.442695
          %v2873 = vpow.pop %v2872
          %v2874 = vmul.f32 %v2756, 1.442695
          %v2875 = vpow.pop %v2874
          %v2876 = vmul.f32 %v2757, 1.442695
          %v2877 = vpow.pop %v2876
          %v2878 = vmul.f32 %v2758, 1.442695
          %v2879 = vpow.pop %v2878
          %v2880 = vmul.f32 %v2759, 1.442695
          %v2881 = vpow.pop %v2880
          %v2882 = vmul.f32 %v2760, 1.442695
          %v2883 = vpow.pop %v2882
          %v2884 = vmul.f32 %v2761, 1.442695
          %v2885 = vpow.pop %v2884
          %v2886 = vmul.f32 %v2762, 1.442695
          %v2887 = vpow.pop %v2886
          %v2888 = vmul.f32 %v2763, 1.442695
          %v2889 = vpow.pop %v2888
          %v2890 = vmul.f32 %v2764, 1.442695
          %v2891 = vpow.pop %v2890
          %v2892 = vmul.f32 %v2765, 1.442695
          %v2893 = vpow.pop %v2892
          %2958 = vset.pattern.permute.xlu0 0
          %2959 = vperm.xlu0 %2958, %v2767
          %v2960 = vpop.permute.xlu0 %2959
          %2961 = vset.pattern.permute.xlu0 0
          %2962 = vperm.xlu0 %2961, %v2769
          %v2963 = vpop.permute.xlu0 %2962
          %2964 = vset.pattern.permute.xlu0 0
          %2965 = vperm.xlu0 %2964, %v2771
          %v2966 = vpop.permute.xlu0 %2965
          %2967 = vset.pattern.permute.xlu0 0
          %2968 = vperm.xlu0 %2967, %v2773
          %v2969 = vpop.permute.xlu0 %2968
          %2970 = vset.pattern.permute.xlu0 0
          %2971 = vperm.xlu0 %2970, %v2775
          %v2972 = vpop.permute.xlu0 %2971
          %2973 = vset.pattern.permute.xlu0 0
          %2974 = vperm.xlu0 %2973, %v2777
          %v2975 = vpop.permute.xlu0 %2974
          %2976 = vset.pattern.permute.xlu0 0
          %2977 = vperm.xlu0 %2976, %v2779
          %v2978 = vpop.permute.xlu0 %2977
          %2979 = vset.pattern.permute.xlu0 0
          %2980 = vperm.xlu0 %2979, %v2781
          %v2981 = vpop.permute.xlu0 %2980
          %2982 = vset.pattern.permute.xlu0 0
          %2983 = vperm.xlu0 %2982, %v2783
          %v2984 = vpop.permute.xlu0 %2983
          %2985 = vset.pattern.permute.xlu0 0
          %2986 = vperm.xlu0 %2985, %v2785
          %v2987 = vpop.permute.xlu0 %2986
          %2988 = vset.pattern.permute.xlu0 0
          %2989 = vperm.xlu0 %2988, %v2787
          %v2990 = vpop.permute.xlu0 %2989
          %2991 = vset.pattern.permute.xlu0 0
          %2992 = vperm.xlu0 %2991, %v2789
          %v2993 = vpop.permute.xlu0 %2992
          %2994 = vset.pattern.permute.xlu0 0
          %2995 = vperm.xlu0 %2994, %v2791
          %v2996 = vpop.permute.xlu0 %2995
          %2997 = vset.pattern.permute.xlu0 0
          %2998 = vperm.xlu0 %2997, %v2793
          %v2999 = vpop.permute.xlu0 %2998
          %3000 = vset.pattern.permute.xlu0 0
          %3001 = vperm.xlu0 %3000, %v2795
          %v3002 = vpop.permute.xlu0 %3001
          %3003 = vset.pattern.permute.xlu0 0
          %3004 = vperm.xlu0 %3003, %v2797
          %v3005 = vpop.permute.xlu0 %3004
          %3006 = vset.pattern.permute.xlu0 0
          %3007 = vperm.xlu0 %3006, %v2799
          %v3008 = vpop.permute.xlu0 %3007
          %3009 = vset.pattern.permute.xlu0 0
          %3010 = vperm.xlu0 %3009, %v2801
          %v3011 = vpop.permute.xlu0 %3010
          %3012 = vset.pattern.permute.xlu0 0
          %3013 = vperm.xlu0 %3012, %v2803
          %v3014 = vpop.permute.xlu0 %3013
          %3015 = vset.pattern.permute.xlu0 0
          %3016 = vperm.xlu0 %3015, %v2805
          %v3017 = vpop.permute.xlu0 %3016
          %3018 = vset.pattern.permute.xlu0 0
          %3019 = vperm.xlu0 %3018, %v2807
          %v3020 = vpop.permute.xlu0 %3019
          %3021 = vset.pattern.permute.xlu0 0
          %3022 = vperm.xlu0 %3021, %v2809
          %v3023 = vpop.permute.xlu0 %3022
          %3024 = vset.pattern.permute.xlu0 0
          %3025 = vperm.xlu0 %3024, %v2811
          %v3026 = vpop.permute.xlu0 %3025
          %3027 = vset.pattern.permute.xlu0 0
          %3028 = vperm.xlu0 %3027, %v2813
          %v3029 = vpop.permute.xlu0 %3028
          %3030 = vset.pattern.permute.xlu0 0
          %3031 = vperm.xlu0 %3030, %v2815
          %v3032 = vpop.permute.xlu0 %3031
          %3033 = vset.pattern.permute.xlu0 0
          %3034 = vperm.xlu0 %3033, %v2817
          %v3035 = vpop.permute.xlu0 %3034
          %3036 = vset.pattern.permute.xlu0 0
          %3037 = vperm.xlu0 %3036, %v2819
          %v3038 = vpop.permute.xlu0 %3037
          %3039 = vset.pattern.permute.xlu0 0
          %3040 = vperm.xlu0 %3039, %v2821
          %v3041 = vpop.permute.xlu0 %3040
          %3042 = vset.pattern.permute.xlu0 0
          %3043 = vperm.xlu0 %3042, %v2823
          %v3044 = vpop.permute.xlu0 %3043
          %3045 = vset.pattern.permute.xlu0 0
          %3046 = vperm.xlu0 %3045, %v2825
          %v3047 = vpop.permute.xlu0 %3046
          %3048 = vset.pattern.permute.xlu0 0
          %3049 = vperm.xlu0 %3048, %v2827
          %v3050 = vpop.permute.xlu0 %3049
          %3051 = vset.pattern.permute.xlu0 0
          %3052 = vperm.xlu0 %3051, %v2829
          %v3053 = vpop.permute.xlu0 %3052
          %3054 = vset.pattern.permute.xlu0 0
          %3055 = vperm.xlu0 %3054, %v2831
          %v3056 = vpop.permute.xlu0 %3055
          %3057 = vset.pattern.permute.xlu0 0
          %3058 = vperm.xlu0 %3057, %v2833
          %v3059 = vpop.permute.xlu0 %3058
          %3060 = vset.pattern.permute.xlu0 0
          %3061 = vperm.xlu0 %3060, %v2835
          %v3062 = vpop.permute.xlu0 %3061
          %3063 = vset.pattern.permute.xlu0 0
          %3064 = vperm.xlu0 %3063, %v2837
          %v3065 = vpop.permute.xlu0 %3064
          %3066 = vset.pattern.permute.xlu0 0
          %3067 = vperm.xlu0 %3066, %v2839
          %v3068 = vpop.permute.xlu0 %3067
          %3069 = vset.pattern.permute.xlu0 0
          %3070 = vperm.xlu0 %3069, %v2841
          %v3071 = vpop.permute.xlu0 %3070
          %3072 = vset.pattern.permute.xlu0 0
          %3073 = vperm.xlu0 %3072, %v2843
          %v3074 = vpop.permute.xlu0 %3073
          %3075 = vset.pattern.permute.xlu0 0
          %3076 = vperm.xlu0 %3075, %v2845
          %v3077 = vpop.permute.xlu0 %3076
          %3078 = vset.pattern.permute.xlu0 0
          %3079 = vperm.xlu0 %3078, %v2847
          %v3080 = vpop.permute.xlu0 %3079
          %3081 = vset.pattern.permute.xlu0 0
          %3082 = vperm.xlu0 %3081, %v2849
          %v3083 = vpop.permute.xlu0 %3082
          %3084 = vset.pattern.permute.xlu0 0
          %3085 = vperm.xlu0 %3084, %v2851
          %v3086 = vpop.permute.xlu0 %3085
          %3087 = vset.pattern.permute.xlu0 0
          %3088 = vperm.xlu0 %3087, %v2853
          %v3089 = vpop.permute.xlu0 %3088
          %3090 = vset.pattern.permute.xlu0 0
          %3091 = vperm.xlu0 %3090, %v2855
          %v3092 = vpop.permute.xlu0 %3091
          %3093 = vset.pattern.permute.xlu0 0
          %3094 = vperm.xlu0 %3093, %v2857
          %v3095 = vpop.permute.xlu0 %3094
          %3096 = vset.pattern.permute.xlu0 0
          %3097 = vperm.xlu0 %3096, %v2859
          %v3098 = vpop.permute.xlu0 %3097
          %3099 = vset.pattern.permute.xlu0 0
          %3100 = vperm.xlu0 %3099, %v2861
          %v3101 = vpop.permute.xlu0 %3100
          %3102 = vset.pattern.permute.xlu0 0
          %3103 = vperm.xlu0 %3102, %v2863
          %v3104 = vpop.permute.xlu0 %3103
          %3105 = vset.pattern.permute.xlu0 0
          %3106 = vperm.xlu0 %3105, %v2865
          %v3107 = vpop.permute.xlu0 %3106
          %3108 = vset.pattern.permute.xlu0 0
          %3109 = vperm.xlu0 %3108, %v2867
          %v3110 = vpop.permute.xlu0 %3109
          %3111 = vset.pattern.permute.xlu0 0
          %3112 = vperm.xlu0 %3111, %v2869
          %v3113 = vpop.permute.xlu0 %3112
          %3114 = vset.pattern.permute.xlu0 0
          %3115 = vperm.xlu0 %3114, %v2871
          %v3116 = vpop.permute.xlu0 %3115
          %3117 = vset.pattern.permute.xlu0 0
          %3118 = vperm.xlu0 %3117, %v2873
          %v3119 = vpop.permute.xlu0 %3118
          %3120 = vset.pattern.permute.xlu0 0
          %3121 = vperm.xlu0 %3120, %v2875
          %v3122 = vpop.permute.xlu0 %3121
          %3123 = vset.pattern.permute.xlu0 0
          %3124 = vperm.xlu0 %3123, %v2877
          %v3125 = vpop.permute.xlu0 %3124
          %3126 = vset.pattern.permute.xlu0 0
          %3127 = vperm.xlu0 %3126, %v2879
          %v3128 = vpop.permute.xlu0 %3127
          %3129 = vset.pattern.permute.xlu0 0
          %3130 = vperm.xlu0 %3129, %v2881
          %v3131 = vpop.permute.xlu0 %3130
          %3132 = vset.pattern.permute.xlu0 0
          %3133 = vperm.xlu0 %3132, %v2883
          %v3134 = vpop.permute.xlu0 %3133
          %3135 = vset.pattern.permute.xlu0 0
          %3136 = vperm.xlu0 %3135, %v2885
          %v3137 = vpop.permute.xlu0 %3136
          %3138 = vset.pattern.permute.xlu0 0
          %3139 = vperm.xlu0 %3138, %v2887
          %v3140 = vpop.permute.xlu0 %3139
          %3141 = vset.pattern.permute.xlu0 0
          %3142 = vperm.xlu0 %3141, %v2889
          %v3143 = vpop.permute.xlu0 %3142
          %3144 = vset.pattern.permute.xlu0 0
          %3145 = vperm.xlu0 %3144, %v2891
          %v3146 = vpop.permute.xlu0 %3145
          %3147 = vset.pattern.permute.xlu0 0
          %3148 = vperm.xlu0 %3147, %v2893
          %v3149 = vpop.permute.xlu0 %3148
          %v3150 = vperm.slane %v2960, %v2406
          %v3151 = vperm.slane %v2963, %v2406
          %v3152 = vperm.slane %v2966, %v2406
          %v3153 = vperm.slane %v2969, %v2406
          %v3154 = vperm.slane %v2972, %v2406
          %v3155 = vperm.slane %v2975, %v2406
          %v3156 = vperm.slane %v2978, %v2406
          %v3157 = vperm.slane %v2981, %v2406
          %v3158 = vperm.slane %v2984, %v2406
          %v3159 = vperm.slane %v2987, %v2406
          %v3160 = vperm.slane %v2990, %v2406
          %v3161 = vperm.slane %v2993, %v2406
          %v3162 = vperm.slane %v2996, %v2406
          %v3163 = vperm.slane %v2999, %v2406
          %v3164 = vperm.slane %v3002, %v2406
          %v3165 = vperm.slane %v3005, %v2406
          %v3166 = vperm.slane %v3008, %v2406
          %v3167 = vperm.slane %v3011, %v2406
          %v3168 = vperm.slane %v3014, %v2406
          %v3169 = vperm.slane %v3017, %v2406
          %v3170 = vperm.slane %v3020, %v2406
          %v3171 = vperm.slane %v3023, %v2406
          %v3172 = vperm.slane %v3026, %v2406
          %v3173 = vperm.slane %v3029, %v2406
          %v3174 = vperm.slane %v3032, %v2406
          %v3175 = vperm.slane %v3035, %v2406
          %v3176 = vperm.slane %v3038, %v2406
          %v3177 = vperm.slane %v3041, %v2406
          %v3178 = vperm.slane %v3044, %v2406
          %v3179 = vperm.slane %v3047, %v2406
          %v3180 = vperm.slane %v3050, %v2406
          %v3181 = vperm.slane %v3053, %v2406
          %v3182 = vperm.slane %v3056, %v2406
          %v3183 = vperm.slane %v3059, %v2406
          %v3184 = vperm.slane %v3062, %v2406
          %v3185 = vperm.slane %v3065, %v2406
          %v3186 = vperm.slane %v3068, %v2406
          %v3187 = vperm.slane %v3071, %v2406
          %v3188 = vperm.slane %v3074, %v2406
          %v3189 = vperm.slane %v3077, %v2406
          %v3190 = vperm.slane %v3080, %v2406
          %v3191 = vperm.slane %v3083, %v2406
          %v3192 = vperm.slane %v3086, %v2406
          %v3193 = vperm.slane %v3089, %v2406
          %v3194 = vperm.slane %v3092, %v2406
          %v3195 = vperm.slane %v3095, %v2406
          %v3196 = vperm.slane %v3098, %v2406
          %v3197 = vperm.slane %v3101, %v2406
          %v3198 = vperm.slane %v3104, %v2406
          %v3199 = vperm.slane %v3107, %v2406
          %v3200 = vperm.slane %v3110, %v2406
          %v3201 = vperm.slane %v3113, %v2406
          %v3202 = vperm.slane %v3116, %v2406
          %v3203 = vperm.slane %v3119, %v2406
          %v3204 = vperm.slane %v3122, %v2406
          %v3205 = vperm.slane %v3125, %v2406
          %v3206 = vperm.slane %v3128, %v2406
          %v3207 = vperm.slane %v3131, %v2406
          %v3208 = vperm.slane %v3134, %v2406
          %v3209 = vperm.slane %v3137, %v2406
          %v3210 = vperm.slane %v3140, %v2406
          %v3211 = vperm.slane %v3143, %v2406
          %v3212 = vperm.slane %v3146, %v2406
          %v3213 = vperm.slane %v3149, %v2406
          %v3214 = vsel %vm2471, %v3151, %v3150
          %v3215 = vsel %vm2473, %v3152, %v3214
          %v3216 = vsel %vm2475, %v3153, %v3215
          %v3217 = vsel %vm2477, %v3154, %v3216
          %v3218 = vsel %vm2479, %v3155, %v3217
          %v3219 = vsel %vm2481, %v3156, %v3218
          %v3220 = vsel %vm2483, %v3157, %v3219
          %v3221 = vsel %vm2471, %v3159, %v3158
          %v3222 = vsel %vm2473, %v3160, %v3221
          %v3223 = vsel %vm2475, %v3161, %v3222
          %v3224 = vsel %vm2477, %v3162, %v3223
          %v3225 = vsel %vm2479, %v3163, %v3224
          %v3226 = vsel %vm2481, %v3164, %v3225
          %v3227 = vsel %vm2483, %v3165, %v3226
          %v3228 = vsel %vm2471, %v3167, %v3166
          %v3229 = vsel %vm2473, %v3168, %v3228
          %v3230 = vsel %vm2475, %v3169, %v3229
          %v3231 = vsel %vm2477, %v3170, %v3230
          %v3232 = vsel %vm2479, %v3171, %v3231
          %v3233 = vsel %vm2481, %v3172, %v3232
          %v3234 = vsel %vm2483, %v3173, %v3233
          %v3235 = vsel %vm2471, %v3175, %v3174
          %v3236 = vsel %vm2473, %v3176, %v3235
          %v3237 = vsel %vm2475, %v3177, %v3236
          %v3238 = vsel %vm2477, %v3178, %v3237
          %v3239 = vsel %vm2479, %v3179, %v3238
          %v3240 = vsel %vm2481, %v3180, %v3239
          %v3241 = vsel %vm2483, %v3181, %v3240
          %v3242 = vsel %vm2471, %v3183, %v3182
          %v3243 = vsel %vm2473, %v3184, %v3242
          %v3244 = vsel %vm2475, %v3185, %v3243
          %v3245 = vsel %vm2477, %v3186, %v3244
          %v3246 = vsel %vm2479, %v3187, %v3245
          %v3247 = vsel %vm2481, %v3188, %v3246
          %v3248 = vsel %vm2483, %v3189, %v3247
          %v3249 = vsel %vm2471, %v3191, %v3190
          %v3250 = vsel %vm2473, %v3192, %v3249
          %v3251 = vsel %vm2475, %v3193, %v3250
          %v3252 = vsel %vm2477, %v3194, %v3251
          %v3253 = vsel %vm2479, %v3195, %v3252
          %v3254 = vsel %vm2481, %v3196, %v3253
          %v3255 = vsel %vm2483, %v3197, %v3254
          %v3256 = vsel %vm2471, %v3199, %v3198
          %v3257 = vsel %vm2473, %v3200, %v3256
          %v3258 = vsel %vm2475, %v3201, %v3257
          %v3259 = vsel %vm2477, %v3202, %v3258
          %v3260 = vsel %vm2479, %v3203, %v3259
          %v3261 = vsel %vm2481, %v3204, %v3260
          %v3262 = vsel %vm2483, %v3205, %v3261
          %v3263 = vsel %vm2471, %v3207, %v3206
          %v3264 = vsel %vm2473, %v3208, %v3263
          %v3265 = vsel %vm2475, %v3209, %v3264
          %v3266 = vsel %vm2477, %v3210, %v3265
          %v3267 = vsel %vm2479, %v3211, %v3266
          %v3268 = vsel %vm2481, %v3212, %v3267
          %v3269 = vsel %vm2483, %v3213, %v3268
          %v3278 = vsel %vm1052, %v3220, 0.0
          %3279 = vadd.xlane.f32.xlu0 %v3278
          %v3280 = vpop.xlane.xlu0 %3279
          %v3281 = vsel %vm1052, %v3227, 0.0
          %3282 = vadd.xlane.f32.xlu0 %v3281
          %v3283 = vpop.xlane.xlu0 %3282
          %v3284 = vsel %vm1052, %v3234, 0.0
          %3285 = vadd.xlane.f32.xlu0 %v3284
          %v3286 = vpop.xlane.xlu0 %3285
          %v3287 = vsel %vm1052, %v3241, 0.0
          %3288 = vadd.xlane.f32.xlu0 %v3287
          %v3289 = vpop.xlane.xlu0 %3288
          %v3290 = vsel %vm1052, %v3248, 0.0
          %3291 = vadd.xlane.f32.xlu0 %v3290
          %v3292 = vpop.xlane.xlu0 %3291
          %v3293 = vsel %vm1052, %v3255, 0.0
          %3294 = vadd.xlane.f32.xlu0 %v3293
          %v3295 = vpop.xlane.xlu0 %3294
          %v3296 = vsel %vm1052, %v3262, 0.0
          %3297 = vadd.xlane.f32.xlu0 %v3296
          %v3298 = vpop.xlane.xlu0 %3297
          %v3299 = vsel %vm1052, %v3269, 0.0
          %3300 = vadd.xlane.f32.xlu0 %v3299
          %v3301 = vpop.xlane.xlu0 %3300
          %v3302 = vrcp.pop %v3280
          %v3303 = vrcp.pop %v3283
          %v3304 = vrcp.pop %v3286
          %v3305 = vrcp.pop %v3289
          %v3306 = vrcp.pop %v3292
          %v3307 = vrcp.pop %v3295
          %v3308 = vrcp.pop %v3298
          %v3309 = vrcp.pop %v3301
          %v3318 = vperm.slane %v3302, 0
          %v3319 = vperm.slane %v3302, 1
          %v3320 = vperm.slane %v3302, 2
          %v3321 = vperm.slane %v3302, 3
          %v3322 = vperm.slane %v3302, 4
          %v3323 = vperm.slane %v3302, 5
          %v3324 = vperm.slane %v3302, 6
          %v3325 = vperm.slane %v3302, 7
          %v3326 = vperm.slane %v3303, 0
          %v3327 = vperm.slane %v3303, 1
          %v3328 = vperm.slane %v3303, 2
          %v3329 = vperm.slane %v3303, 3
          %v3330 = vperm.slane %v3303, 4
          %v3331 = vperm.slane %v3303, 5
          %v3332 = vperm.slane %v3303, 6
          %v3333 = vperm.slane %v3303, 7
          %v3334 = vperm.slane %v3304, 0
          %v3335 = vperm.slane %v3304, 1
          %v3336 = vperm.slane %v3304, 2
          %v3337 = vperm.slane %v3304, 3
          %v3338 = vperm.slane %v3304, 4
          %v3339 = vperm.slane %v3304, 5
          %v3340 = vperm.slane %v3304, 6
          %v3341 = vperm.slane %v3304, 7
          %v3342 = vperm.slane %v3305, 0
          %v3343 = vperm.slane %v3305, 1
          %v3344 = vperm.slane %v3305, 2
          %v3345 = vperm.slane %v3305, 3
          %v3346 = vperm.slane %v3305, 4
          %v3347 = vperm.slane %v3305, 5
          %v3348 = vperm.slane %v3305, 6
          %v3349 = vperm.slane %v3305, 7
          %v3350 = vperm.slane %v3306, 0
          %v3351 = vperm.slane %v3306, 1
          %v3352 = vperm.slane %v3306, 2
          %v3353 = vperm.slane %v3306, 3
          %v3354 = vperm.slane %v3306, 4
          %v3355 = vperm.slane %v3306, 5
          %v3356 = vperm.slane %v3306, 6
          %v3357 = vperm.slane %v3306, 7
          %v3358 = vperm.slane %v3307, 0
          %v3359 = vperm.slane %v3307, 1
          %v3360 = vperm.slane %v3307, 2
          %v3361 = vperm.slane %v3307, 3
          %v3362 = vperm.slane %v3307, 4
          %v3363 = vperm.slane %v3307, 5
          %v3364 = vperm.slane %v3307, 6
          %v3365 = vperm.slane %v3307, 7
          %v3366 = vperm.slane %v3308, 0
          %v3367 = vperm.slane %v3308, 1
          %v3368 = vperm.slane %v3308, 2
          %v3369 = vperm.slane %v3308, 3
          %v3370 = vperm.slane %v3308, 4
          %v3371 = vperm.slane %v3308, 5
          %v3372 = vperm.slane %v3308, 6
          %v3373 = vperm.slane %v3308, 7
          %v3374 = vperm.slane %v3309, 0
          %v3375 = vperm.slane %v3309, 1
          %v3376 = vperm.slane %v3309, 2
          %v3377 = vperm.slane %v3309, 3
          %v3378 = vperm.slane %v3309, 4
          %v3379 = vperm.slane %v3309, 5
          %v3380 = vperm.slane %v3309, 6
          %v3381 = vperm.slane %v3309, 7
          %v3446 = vmul.f32 %v2767, %v3318
          %v3447 = vmul.f32 %v2769, %v3319
          %v3448 = vmul.f32 %v2771, %v3320
          %v3449 = vmul.f32 %v2773, %v3321
          %v3450 = vmul.f32 %v2775, %v3322
          %v3451 = vmul.f32 %v2777, %v3323
          %v3452 = vmul.f32 %v2779, %v3324
          %v3453 = vmul.f32 %v2781, %v3325
          %v3454 = vmul.f32 %v2783, %v3326
          %v3455 = vmul.f32 %v2785, %v3327
          %v3456 = vmul.f32 %v2787, %v3328
          %v3457 = vmul.f32 %v2789, %v3329
          %v3458 = vmul.f32 %v2791, %v3330
          %v3459 = vmul.f32 %v2793, %v3331
          %v3460 = vmul.f32 %v2795, %v3332
          %v3461 = vmul.f32 %v2797, %v3333
          %v3462 = vmul.f32 %v2799, %v3334
          %v3463 = vmul.f32 %v2801, %v3335
          %v3464 = vmul.f32 %v2803, %v3336
          %v3465 = vmul.f32 %v2805, %v3337
          %v3466 = vmul.f32 %v2807, %v3338
          %v3467 = vmul.f32 %v2809, %v3339
          %v3468 = vmul.f32 %v2811, %v3340
          %v3469 = vmul.f32 %v2813, %v3341
          %v3470 = vmul.f32 %v2815, %v3342
          %v3471 = vmul.f32 %v2817, %v3343
          %v3472 = vmul.f32 %v2819, %v3344
          %v3473 = vmul.f32 %v2821, %v3345
          %v3474 = vmul.f32 %v2823, %v3346
          %v3475 = vmul.f32 %v2825, %v3347
          %v3476 = vmul.f32 %v2827, %v3348
          %v3477 = vmul.f32 %v2829, %v3349
          %v3478 = vmul.f32 %v2831, %v3350
          %v3479 = vmul.f32 %v2833, %v3351
          %v3480 = vmul.f32 %v2835, %v3352
          %v3481 = vmul.f32 %v2837, %v3353
          %v3482 = vmul.f32 %v2839, %v3354
          %v3483 = vmul.f32 %v2841, %v3355
          %v3484 = vmul.f32 %v2843, %v3356
          %v3485 = vmul.f32 %v2845, %v3357
          %v3486 = vmul.f32 %v2847, %v3358
          %v3487 = vmul.f32 %v2849, %v3359
          %v3488 = vmul.f32 %v2851, %v3360
          %v3489 = vmul.f32 %v2853, %v3361
          %v3490 = vmul.f32 %v2855, %v3362
          %v3491 = vmul.f32 %v2857, %v3363
          %v3492 = vmul.f32 %v2859, %v3364
          %v3493 = vmul.f32 %v2861, %v3365
          %v3494 = vmul.f32 %v2863, %v3366
          %v3495 = vmul.f32 %v2865, %v3367
          %v3496 = vmul.f32 %v2867, %v3368
          %v3497 = vmul.f32 %v2869, %v3369
          %v3498 = vmul.f32 %v2871, %v3370
          %v3499 = vmul.f32 %v2873, %v3371
          %v3500 = vmul.f32 %v2875, %v3372
          %v3501 = vmul.f32 %v2877, %v3373
          %v3502 = vmul.f32 %v2879, %v3374
          %v3503 = vmul.f32 %v2881, %v3375
          %v3504 = vmul.f32 %v2883, %v3376
          %v3505 = vmul.f32 %v2885, %v3377
          %v3506 = vmul.f32 %v2887, %v3378
          %v3507 = vmul.f32 %v2889, %v3379
          %v3508 = vmul.f32 %v2891, %v3380
          %v3509 = vmul.f32 %v2893, %v3381
          %3511 = vset.pattern.permute.xlu0 0
          %3512 = vperm.xlu0 %3511, %v3446
          %v3513 = vpop.permute.xlu0 %3512
          %3516 = vset.pattern.permute.xlu0 0
          %3517 = vperm.xlu0 %3516, %v3447
          %v3518 = vpop.permute.xlu0 %3517
          %3521 = vset.pattern.permute.xlu0 0
          %3522 = vperm.xlu0 %3521, %v3448
          %v3523 = vpop.permute.xlu0 %3522
          %3526 = vset.pattern.permute.xlu0 0
          %3527 = vperm.xlu0 %3526, %v3449
          %v3528 = vpop.permute.xlu0 %3527
          %3531 = vset.pattern.permute.xlu0 0
          %3532 = vperm.xlu0 %3531, %v3450
          %v3533 = vpop.permute.xlu0 %3532
          %3536 = vset.pattern.permute.xlu0 0
          %3537 = vperm.xlu0 %3536, %v3451
          %v3538 = vpop.permute.xlu0 %3537
          %3541 = vset.pattern.permute.xlu0 0
          %3542 = vperm.xlu0 %3541, %v3452
          %v3543 = vpop.permute.xlu0 %3542
          %3546 = vset.pattern.permute.xlu0 0
          %3547 = vperm.xlu0 %3546, %v3453
          %v3548 = vpop.permute.xlu0 %3547
          %3551 = vset.pattern.permute.xlu0 0
          %3552 = vperm.xlu0 %3551, %v3454
          %v3553 = vpop.permute.xlu0 %3552
          %3556 = vset.pattern.permute.xlu0 0
          %3557 = vperm.xlu0 %3556, %v3455
          %v3558 = vpop.permute.xlu0 %3557
          %3561 = vset.pattern.permute.xlu0 0
          %3562 = vperm.xlu0 %3561, %v3456
          %v3563 = vpop.permute.xlu0 %3562
          %3566 = vset.pattern.permute.xlu0 0
          %3567 = vperm.xlu0 %3566, %v3457
          %v3568 = vpop.permute.xlu0 %3567
          %3571 = vset.pattern.permute.xlu0 0
          %3572 = vperm.xlu0 %3571, %v3458
          %v3573 = vpop.permute.xlu0 %3572
          %3576 = vset.pattern.permute.xlu0 0
          %3577 = vperm.xlu0 %3576, %v3459
          %v3578 = vpop.permute.xlu0 %3577
          %3581 = vset.pattern.permute.xlu0 0
          %3582 = vperm.xlu0 %3581, %v3460
          %v3583 = vpop.permute.xlu0 %3582
          %3586 = vset.pattern.permute.xlu0 0
          %3587 = vperm.xlu0 %3586, %v3461
          %v3588 = vpop.permute.xlu0 %3587
          %3591 = vset.pattern.permute.xlu0 0
          %3592 = vperm.xlu0 %3591, %v3462
          %v3593 = vpop.permute.xlu0 %3592
          %3596 = vset.pattern.permute.xlu0 0
          %3597 = vperm.xlu0 %3596, %v3463
          %v3598 = vpop.permute.xlu0 %3597
          %3601 = vset.pattern.permute.xlu0 0
          %3602 = vperm.xlu0 %3601, %v3464
          %v3603 = vpop.permute.xlu0 %3602
          %3606 = vset.pattern.permute.xlu0 0
          %3607 = vperm.xlu0 %3606, %v3465
          %v3608 = vpop.permute.xlu0 %3607
          %3611 = vset.pattern.permute.xlu0 0
          %3612 = vperm.xlu0 %3611, %v3466
          %v3613 = vpop.permute.xlu0 %3612
          %3616 = vset.pattern.permute.xlu0 0
          %3617 = vperm.xlu0 %3616, %v3467
          %v3618 = vpop.permute.xlu0 %3617
          %3621 = vset.pattern.permute.xlu0 0
          %3622 = vperm.xlu0 %3621, %v3468
          %v3623 = vpop.permute.xlu0 %3622
          %3626 = vset.pattern.permute.xlu0 0
          %3627 = vperm.xlu0 %3626, %v3469
          %v3628 = vpop.permute.xlu0 %3627
          %3631 = vset.pattern.permute.xlu0 0
          %3632 = vperm.xlu0 %3631, %v3470
          %v3633 = vpop.permute.xlu0 %3632
          %3636 = vset.pattern.permute.xlu0 0
          %3637 = vperm.xlu0 %3636, %v3471
          %v3638 = vpop.permute.xlu0 %3637
          %3641 = vset.pattern.permute.xlu0 0
          %3642 = vperm.xlu0 %3641, %v3472
          %v3643 = vpop.permute.xlu0 %3642
          %3646 = vset.pattern.permute.xlu0 0
          %3647 = vperm.xlu0 %3646, %v3473
          %v3648 = vpop.permute.xlu0 %3647
          %3651 = vset.pattern.permute.xlu0 0
          %3652 = vperm.xlu0 %3651, %v3474
          %v3653 = vpop.permute.xlu0 %3652
          %3656 = vset.pattern.permute.xlu0 0
          %3657 = vperm.xlu0 %3656, %v3475
          %v3658 = vpop.permute.xlu0 %3657
          %3661 = vset.pattern.permute.xlu0 0
          %3662 = vperm.xlu0 %3661, %v3476
          %v3663 = vpop.permute.xlu0 %3662
          %3666 = vset.pattern.permute.xlu0 0
          %3667 = vperm.xlu0 %3666, %v3477
          %v3668 = vpop.permute.xlu0 %3667
          %3671 = vset.pattern.permute.xlu0 0
          %3672 = vperm.xlu0 %3671, %v3478
          %v3673 = vpop.permute.xlu0 %3672
          %3676 = vset.pattern.permute.xlu0 0
          %3677 = vperm.xlu0 %3676, %v3479
          %v3678 = vpop.permute.xlu0 %3677
          %3681 = vset.pattern.permute.xlu0 0
          %3682 = vperm.xlu0 %3681, %v3480
          %v3683 = vpop.permute.xlu0 %3682
          %3686 = vset.pattern.permute.xlu0 0
          %3687 = vperm.xlu0 %3686, %v3481
          %v3688 = vpop.permute.xlu0 %3687
          %3691 = vset.pattern.permute.xlu0 0
          %3692 = vperm.xlu0 %3691, %v3482
          %v3693 = vpop.permute.xlu0 %3692
          %3696 = vset.pattern.permute.xlu0 0
          %3697 = vperm.xlu0 %3696, %v3483
          %v3698 = vpop.permute.xlu0 %3697
          %3701 = vset.pattern.permute.xlu0 0
          %3702 = vperm.xlu0 %3701, %v3484
          %v3703 = vpop.permute.xlu0 %3702
          %3706 = vset.pattern.permute.xlu0 0
          %3707 = vperm.xlu0 %3706, %v3485
          %v3708 = vpop.permute.xlu0 %3707
          %3711 = vset.pattern.permute.xlu0 0
          %3712 = vperm.xlu0 %3711, %v3486
          %v3713 = vpop.permute.xlu0 %3712
          %3716 = vset.pattern.permute.xlu0 0
          %3717 = vperm.xlu0 %3716, %v3487
          %v3718 = vpop.permute.xlu0 %3717
          %3721 = vset.pattern.permute.xlu0 0
          %3722 = vperm.xlu0 %3721, %v3488
          %v3723 = vpop.permute.xlu0 %3722
          %3726 = vset.pattern.permute.xlu0 0
          %3727 = vperm.xlu0 %3726, %v3489
          %v3728 = vpop.permute.xlu0 %3727
          %3731 = vset.pattern.permute.xlu0 0
          %3732 = vperm.xlu0 %3731, %v3490
          %v3733 = vpop.permute.xlu0 %3732
          %3736 = vset.pattern.permute.xlu0 0
          %3737 = vperm.xlu0 %3736, %v3491
          %v3738 = vpop.permute.xlu0 %3737
          %3741 = vset.pattern.permute.xlu0 0
          %3742 = vperm.xlu0 %3741, %v3492
          %v3743 = vpop.permute.xlu0 %3742
          %3746 = vset.pattern.permute.xlu0 0
          %3747 = vperm.xlu0 %3746, %v3493
          %v3748 = vpop.permute.xlu0 %3747
          %3751 = vset.pattern.permute.xlu0 0
          %3752 = vperm.xlu0 %3751, %v3494
          %v3753 = vpop.permute.xlu0 %3752
          %3756 = vset.pattern.permute.xlu0 0
          %3757 = vperm.xlu0 %3756, %v3495
          %v3758 = vpop.permute.xlu0 %3757
          %3761 = vset.pattern.permute.xlu0 0
          %3762 = vperm.xlu0 %3761, %v3496
          %v3763 = vpop.permute.xlu0 %3762
          %3766 = vset.pattern.permute.xlu0 0
          %3767 = vperm.xlu0 %3766, %v3497
          %v3768 = vpop.permute.xlu0 %3767
          %3771 = vset.pattern.permute.xlu0 0
          %3772 = vperm.xlu0 %3771, %v3498
          %v3773 = vpop.permute.xlu0 %3772
          %3776 = vset.pattern.permute.xlu0 0
          %3777 = vperm.xlu0 %3776, %v3499
          %v3778 = vpop.permute.xlu0 %3777
          %3781 = vset.pattern.permute.xlu0 0
          %3782 = vperm.xlu0 %3781, %v3500
          %v3783 = vpop.permute.xlu0 %3782
          %3786 = vset.pattern.permute.xlu0 0
          %3787 = vperm.xlu0 %3786, %v3501
          %v3788 = vpop.permute.xlu0 %3787
          %3791 = vset.pattern.permute.xlu0 0
          %3792 = vperm.xlu0 %3791, %v3502
          %v3793 = vpop.permute.xlu0 %3792
          %3796 = vset.pattern.permute.xlu0 0
          %3797 = vperm.xlu0 %3796, %v3503
          %v3798 = vpop.permute.xlu0 %3797
          %3801 = vset.pattern.permute.xlu0 0
          %3802 = vperm.xlu0 %3801, %v3504
          %v3803 = vpop.permute.xlu0 %3802
          %3806 = vset.pattern.permute.xlu0 0
          %3807 = vperm.xlu0 %3806, %v3505
          %v3808 = vpop.permute.xlu0 %3807
          %3811 = vset.pattern.permute.xlu0 0
          %3812 = vperm.xlu0 %3811, %v3506
          %v3813 = vpop.permute.xlu0 %3812
          %3816 = vset.pattern.permute.xlu0 0
          %3817 = vperm.xlu0 %3816, %v3507
          %v3818 = vpop.permute.xlu0 %3817
          %3821 = vset.pattern.permute.xlu0 0
          %3822 = vperm.xlu0 %3821, %v3508
          %v3823 = vpop.permute.xlu0 %3822
          %3826 = vset.pattern.permute.xlu0 0
          %3827 = vperm.xlu0 %3826, %v3509
          %v3828 = vpop.permute.xlu0 %3827
          %v3830 = vmul.f32 %v3513, %v1770
          %v3831 = vmul.f32 %v3518, %v1771
          %v3832 = vmul.f32 %v3523, %v1772
          %v3833 = vmul.f32 %v3528, %v1773
          %v3834 = vmul.f32 %v3533, %v1774
          %v3835 = vmul.f32 %v3538, %v1775
          %v3836 = vmul.f32 %v3543, %v1776
          %v3837 = vmul.f32 %v3548, %v1777
          %v3838 = vmul.f32 %v3553, %v1778
          %v3839 = vmul.f32 %v3558, %v1779
          %v3840 = vmul.f32 %v3563, %v1780
          %v3841 = vmul.f32 %v3568, %v1781
          %v3842 = vmul.f32 %v3573, %v1782
          %v3843 = vmul.f32 %v3578, %v1783
          %v3844 = vmul.f32 %v3583, %v1784
          %v3845 = vmul.f32 %v3588, %v1785
          %v3846 = vmul.f32 %v3593, %v1786
          %v3847 = vmul.f32 %v3598, %v1787
          %v3848 = vmul.f32 %v3603, %v1788
          %v3849 = vmul.f32 %v3608, %v1789
          %v3850 = vmul.f32 %v3613, %v1790
          %v3851 = vmul.f32 %v3618, %v1791
          %v3852 = vmul.f32 %v3623, %v1792
          %v3853 = vmul.f32 %v3628, %v1793
          %v3854 = vmul.f32 %v3633, %v1794
          %v3855 = vmul.f32 %v3638, %v1795
          %v3856 = vmul.f32 %v3643, %v1796
          %v3857 = vmul.f32 %v3648, %v1797
          %v3858 = vmul.f32 %v3653, %v1798
          %v3859 = vmul.f32 %v3658, %v1799
          %v3860 = vmul.f32 %v3663, %v1800
          %v3861 = vmul.f32 %v3668, %v1801
          %v3862 = vmul.f32 %v3673, %v1802
          %v3863 = vmul.f32 %v3678, %v1803
          %v3864 = vmul.f32 %v3683, %v1804
          %v3865 = vmul.f32 %v3688, %v1805
          %v3866 = vmul.f32 %v3693, %v1806
          %v3867 = vmul.f32 %v3698, %v1807
          %v3868 = vmul.f32 %v3703, %v1808
          %v3869 = vmul.f32 %v3708, %v1809
          %v3870 = vmul.f32 %v3713, %v1810
          %v3871 = vmul.f32 %v3718, %v1811
          %v3872 = vmul.f32 %v3723, %v1812
          %v3873 = vmul.f32 %v3728, %v1813
          %v3874 = vmul.f32 %v3733, %v1814
          %v3875 = vmul.f32 %v3738, %v1815
          %v3876 = vmul.f32 %v3743, %v1816
          %v3877 = vmul.f32 %v3748, %v1817
          %v3878 = vmul.f32 %v3753, %v1818
          %v3879 = vmul.f32 %v3758, %v1819
          %v3880 = vmul.f32 %v3763, %v1820
          %v3881 = vmul.f32 %v3768, %v1821
          %v3882 = vmul.f32 %v3773, %v1822
          %v3883 = vmul.f32 %v3778, %v1823
          %v3884 = vmul.f32 %v3783, %v1824
          %v3885 = vmul.f32 %v3788, %v1825
          %v3886 = vmul.f32 %v3793, %v1826
          %v3887 = vmul.f32 %v3798, %v1827
          %v3888 = vmul.f32 %v3803, %v1828
          %v3889 = vmul.f32 %v3808, %v1829
          %v3890 = vmul.f32 %v3813, %v1830
          %v3891 = vmul.f32 %v3818, %v1831
          %v3892 = vmul.f32 %v3823, %v1832
          %v3893 = vmul.f32 %v3828, %v1833
          %vm3894 = vcmask 523520
          %v3895 = vsel %vm3894, %v3830, 0.0
          %v3896 = vrot.slane %v3895, 4
          %v3897 = vadd.f32 %v3895, %v3896
          %v3898 = vrot.slane %v3897, 2
          %v3899 = vadd.f32 %v3897, %v3898
          %v3900 = vrot.slane %v3899, 1
          %v3901 = vadd.f32 %v3899, %v3900
          %v3902 = vsel %vm3894, %v3831, 0.0
          %v3903 = vrot.slane %v3902, 4
          %v3904 = vadd.f32 %v3902, %v3903
          %v3905 = vrot.slane %v3904, 2
          %v3906 = vadd.f32 %v3904, %v3905
          %v3907 = vrot.slane %v3906, 1
          %v3908 = vadd.f32 %v3906, %v3907
          %v3909 = vsel %vm3894, %v3832, 0.0
          %v3910 = vrot.slane %v3909, 4
          %v3911 = vadd.f32 %v3909, %v3910
          %v3912 = vrot.slane %v3911, 2
          %v3913 = vadd.f32 %v3911, %v3912
          %v3914 = vrot.slane %v3913, 1
          %v3915 = vadd.f32 %v3913, %v3914
          %v3916 = vsel %vm3894, %v3833, 0.0
          %v3917 = vrot.slane %v3916, 4
          %v3918 = vadd.f32 %v3916, %v3917
          %v3919 = vrot.slane %v3918, 2
          %v3920 = vadd.f32 %v3918, %v3919
          %v3921 = vrot.slane %v3920, 1
          %v3922 = vadd.f32 %v3920, %v3921
          %v3923 = vsel %vm3894, %v3834, 0.0
          %v3924 = vrot.slane %v3923, 4
          %v3925 = vadd.f32 %v3923, %v3924
          %v3926 = vrot.slane %v3925, 2
          %v3927 = vadd.f32 %v3925, %v3926
          %v3928 = vrot.slane %v3927, 1
          %v3929 = vadd.f32 %v3927, %v3928
          %v3930 = vsel %vm3894, %v3835, 0.0
          %v3931 = vrot.slane %v3930, 4
          %v3932 = vadd.f32 %v3930, %v3931
          %v3933 = vrot.slane %v3932, 2
          %v3934 = vadd.f32 %v3932, %v3933
          %v3935 = vrot.slane %v3934, 1
          %v3936 = vadd.f32 %v3934, %v3935
          %v3937 = vsel %vm3894, %v3836, 0.0
          %v3938 = vrot.slane %v3937, 4
          %v3939 = vadd.f32 %v3937, %v3938
          %v3940 = vrot.slane %v3939, 2
          %v3941 = vadd.f32 %v3939, %v3940
          %v3942 = vrot.slane %v3941, 1
          %v3943 = vadd.f32 %v3941, %v3942
          %v3944 = vsel %vm3894, %v3837, 0.0
          %v3945 = vrot.slane %v3944, 4
          %v3946 = vadd.f32 %v3944, %v3945
          %v3947 = vrot.slane %v3946, 2
          %v3948 = vadd.f32 %v3946, %v3947
          %v3949 = vrot.slane %v3948, 1
          %v3950 = vadd.f32 %v3948, %v3949
          %v3951 = vsel %vm3894, %v3838, 0.0
          %v3952 = vrot.slane %v3951, 4
          %v3953 = vadd.f32 %v3951, %v3952
          %v3954 = vrot.slane %v3953, 2
          %v3955 = vadd.f32 %v3953, %v3954
          %v3956 = vrot.slane %v3955, 1
          %v3957 = vadd.f32 %v3955, %v3956
          %v3958 = vsel %vm3894, %v3839, 0.0
          %v3959 = vrot.slane %v3958, 4
          %v3960 = vadd.f32 %v3958, %v3959
          %v3961 = vrot.slane %v3960, 2
          %v3962 = vadd.f32 %v3960, %v3961
          %v3963 = vrot.slane %v3962, 1
          %v3964 = vadd.f32 %v3962, %v3963
          %v3965 = vsel %vm3894, %v3840, 0.0
          %v3966 = vrot.slane %v3965, 4
          %v3967 = vadd.f32 %v3965, %v3966
          %v3968 = vrot.slane %v3967, 2
          %v3969 = vadd.f32 %v3967, %v3968
          %v3970 = vrot.slane %v3969, 1
          %v3971 = vadd.f32 %v3969, %v3970
          %v3972 = vsel %vm3894, %v3841, 0.0
          %v3973 = vrot.slane %v3972, 4
          %v3974 = vadd.f32 %v3972, %v3973
          %v3975 = vrot.slane %v3974, 2
          %v3976 = vadd.f32 %v3974, %v3975
          %v3977 = vrot.slane %v3976, 1
          %v3978 = vadd.f32 %v3976, %v3977
          %v3979 = vsel %vm3894, %v3842, 0.0
          %v3980 = vrot.slane %v3979, 4
          %v3981 = vadd.f32 %v3979, %v3980
          %v3982 = vrot.slane %v3981, 2
          %v3983 = vadd.f32 %v3981, %v3982
          %v3984 = vrot.slane %v3983, 1
          %v3985 = vadd.f32 %v3983, %v3984
          %v3986 = vsel %vm3894, %v3843, 0.0
          %v3987 = vrot.slane %v3986, 4
          %v3988 = vadd.f32 %v3986, %v3987
          %v3989 = vrot.slane %v3988, 2
          %v3990 = vadd.f32 %v3988, %v3989
          %v3991 = vrot.slane %v3990, 1
          %v3992 = vadd.f32 %v3990, %v3991
          %v3993 = vsel %vm3894, %v3844, 0.0
          %v3994 = vrot.slane %v3993, 4
          %v3995 = vadd.f32 %v3993, %v3994
          %v3996 = vrot.slane %v3995, 2
          %v3997 = vadd.f32 %v3995, %v3996
          %v3998 = vrot.slane %v3997, 1
          %v3999 = vadd.f32 %v3997, %v3998
          %v4000 = vsel %vm3894, %v3845, 0.0
          %v4001 = vrot.slane %v4000, 4
          %v4002 = vadd.f32 %v4000, %v4001
          %v4003 = vrot.slane %v4002, 2
          %v4004 = vadd.f32 %v4002, %v4003
          %v4005 = vrot.slane %v4004, 1
          %v4006 = vadd.f32 %v4004, %v4005
          %v4007 = vsel %vm3894, %v3846, 0.0
          %v4008 = vrot.slane %v4007, 4
          %v4009 = vadd.f32 %v4007, %v4008
          %v4010 = vrot.slane %v4009, 2
          %v4011 = vadd.f32 %v4009, %v4010
          %v4012 = vrot.slane %v4011, 1
          %v4013 = vadd.f32 %v4011, %v4012
          %v4014 = vsel %vm3894, %v3847, 0.0
          %v4015 = vrot.slane %v4014, 4
          %v4016 = vadd.f32 %v4014, %v4015
          %v4017 = vrot.slane %v4016, 2
          %v4018 = vadd.f32 %v4016, %v4017
          %v4019 = vrot.slane %v4018, 1
          %v4020 = vadd.f32 %v4018, %v4019
          %v4021 = vsel %vm3894, %v3848, 0.0
          %v4022 = vrot.slane %v4021, 4
          %v4023 = vadd.f32 %v4021, %v4022
          %v4024 = vrot.slane %v4023, 2
          %v4025 = vadd.f32 %v4023, %v4024
          %v4026 = vrot.slane %v4025, 1
          %v4027 = vadd.f32 %v4025, %v4026
          %v4028 = vsel %vm3894, %v3849, 0.0
          %v4029 = vrot.slane %v4028, 4
          %v4030 = vadd.f32 %v4028, %v4029
          %v4031 = vrot.slane %v4030, 2
          %v4032 = vadd.f32 %v4030, %v4031
          %v4033 = vrot.slane %v4032, 1
          %v4034 = vadd.f32 %v4032, %v4033
          %v4035 = vsel %vm3894, %v3850, 0.0
          %v4036 = vrot.slane %v4035, 4
          %v4037 = vadd.f32 %v4035, %v4036
          %v4038 = vrot.slane %v4037, 2
          %v4039 = vadd.f32 %v4037, %v4038
          %v4040 = vrot.slane %v4039, 1
          %v4041 = vadd.f32 %v4039, %v4040
          %v4042 = vsel %vm3894, %v3851, 0.0
          %v4043 = vrot.slane %v4042, 4
          %v4044 = vadd.f32 %v4042, %v4043
          %v4045 = vrot.slane %v4044, 2
          %v4046 = vadd.f32 %v4044, %v4045
          %v4047 = vrot.slane %v4046, 1
          %v4048 = vadd.f32 %v4046, %v4047
          %v4049 = vsel %vm3894, %v3852, 0.0
          %v4050 = vrot.slane %v4049, 4
          %v4051 = vadd.f32 %v4049, %v4050
          %v4052 = vrot.slane %v4051, 2
          %v4053 = vadd.f32 %v4051, %v4052
          %v4054 = vrot.slane %v4053, 1
          %v4055 = vadd.f32 %v4053, %v4054
          %v4056 = vsel %vm3894, %v3853, 0.0
          %v4057 = vrot.slane %v4056, 4
          %v4058 = vadd.f32 %v4056, %v4057
          %v4059 = vrot.slane %v4058, 2
          %v4060 = vadd.f32 %v4058, %v4059
          %v4061 = vrot.slane %v4060, 1
          %v4062 = vadd.f32 %v4060, %v4061
          %v4063 = vsel %vm3894, %v3854, 0.0
          %v4064 = vrot.slane %v4063, 4
          %v4065 = vadd.f32 %v4063, %v4064
          %v4066 = vrot.slane %v4065, 2
          %v4067 = vadd.f32 %v4065, %v4066
          %v4068 = vrot.slane %v4067, 1
          %v4069 = vadd.f32 %v4067, %v4068
          %v4070 = vsel %vm3894, %v3855, 0.0
          %v4071 = vrot.slane %v4070, 4
          %v4072 = vadd.f32 %v4070, %v4071
          %v4073 = vrot.slane %v4072, 2
          %v4074 = vadd.f32 %v4072, %v4073
          %v4075 = vrot.slane %v4074, 1
          %v4076 = vadd.f32 %v4074, %v4075
          %v4077 = vsel %vm3894, %v3856, 0.0
          %v4078 = vrot.slane %v4077, 4
          %v4079 = vadd.f32 %v4077, %v4078
          %v4080 = vrot.slane %v4079, 2
          %v4081 = vadd.f32 %v4079, %v4080
          %v4082 = vrot.slane %v4081, 1
          %v4083 = vadd.f32 %v4081, %v4082
          %v4084 = vsel %vm3894, %v3857, 0.0
          %v4085 = vrot.slane %v4084, 4
          %v4086 = vadd.f32 %v4084, %v4085
          %v4087 = vrot.slane %v4086, 2
          %v4088 = vadd.f32 %v4086, %v4087
          %v4089 = vrot.slane %v4088, 1
          %v4090 = vadd.f32 %v4088, %v4089
          %v4091 = vsel %vm3894, %v3858, 0.0
          %v4092 = vrot.slane %v4091, 4
          %v4093 = vadd.f32 %v4091, %v4092
          %v4094 = vrot.slane %v4093, 2
          %v4095 = vadd.f32 %v4093, %v4094
          %v4096 = vrot.slane %v4095, 1
          %v4097 = vadd.f32 %v4095, %v4096
          %v4098 = vsel %vm3894, %v3859, 0.0
          %v4099 = vrot.slane %v4098, 4
          %v4100 = vadd.f32 %v4098, %v4099
          %v4101 = vrot.slane %v4100, 2
          %v4102 = vadd.f32 %v4100, %v4101
          %v4103 = vrot.slane %v4102, 1
          %v4104 = vadd.f32 %v4102, %v4103
          %v4105 = vsel %vm3894, %v3860, 0.0
          %v4106 = vrot.slane %v4105, 4
          %v4107 = vadd.f32 %v4105, %v4106
          %v4108 = vrot.slane %v4107, 2
          %v4109 = vadd.f32 %v4107, %v4108
          %v4110 = vrot.slane %v4109, 1
          %v4111 = vadd.f32 %v4109, %v4110
          %v4112 = vsel %vm3894, %v3861, 0.0
          %v4113 = vrot.slane %v4112, 4
          %v4114 = vadd.f32 %v4112, %v4113
          %v4115 = vrot.slane %v4114, 2
          %v4116 = vadd.f32 %v4114, %v4115
          %v4117 = vrot.slane %v4116, 1
          %v4118 = vadd.f32 %v4116, %v4117
          %v4119 = vsel %vm3894, %v3862, 0.0
          %v4120 = vrot.slane %v4119, 4
          %v4121 = vadd.f32 %v4119, %v4120
          %v4122 = vrot.slane %v4121, 2
          %v4123 = vadd.f32 %v4121, %v4122
          %v4124 = vrot.slane %v4123, 1
          %v4125 = vadd.f32 %v4123, %v4124
          %v4126 = vsel %vm3894, %v3863, 0.0
          %v4127 = vrot.slane %v4126, 4
          %v4128 = vadd.f32 %v4126, %v4127
          %v4129 = vrot.slane %v4128, 2
          %v4130 = vadd.f32 %v4128, %v4129
          %v4131 = vrot.slane %v4130, 1
          %v4132 = vadd.f32 %v4130, %v4131
          %v4133 = vsel %vm3894, %v3864, 0.0
          %v4134 = vrot.slane %v4133, 4
          %v4135 = vadd.f32 %v4133, %v4134
          %v4136 = vrot.slane %v4135, 2
          %v4137 = vadd.f32 %v4135, %v4136
          %v4138 = vrot.slane %v4137, 1
          %v4139 = vadd.f32 %v4137, %v4138
          %v4140 = vsel %vm3894, %v3865, 0.0
          %v4141 = vrot.slane %v4140, 4
          %v4142 = vadd.f32 %v4140, %v4141
          %v4143 = vrot.slane %v4142, 2
          %v4144 = vadd.f32 %v4142, %v4143
          %v4145 = vrot.slane %v4144, 1
          %v4146 = vadd.f32 %v4144, %v4145
          %v4147 = vsel %vm3894, %v3866, 0.0
          %v4148 = vrot.slane %v4147, 4
          %v4149 = vadd.f32 %v4147, %v4148
          %v4150 = vrot.slane %v4149, 2
          %v4151 = vadd.f32 %v4149, %v4150
          %v4152 = vrot.slane %v4151, 1
          %v4153 = vadd.f32 %v4151, %v4152
          %v4154 = vsel %vm3894, %v3867, 0.0
          %v4155 = vrot.slane %v4154, 4
          %v4156 = vadd.f32 %v4154, %v4155
          %v4157 = vrot.slane %v4156, 2
          %v4158 = vadd.f32 %v4156, %v4157
          %v4159 = vrot.slane %v4158, 1
          %v4160 = vadd.f32 %v4158, %v4159
          %v4161 = vsel %vm3894, %v3868, 0.0
          %v4162 = vrot.slane %v4161, 4
          %v4163 = vadd.f32 %v4161, %v4162
          %v4164 = vrot.slane %v4163, 2
          %v4165 = vadd.f32 %v4163, %v4164
          %v4166 = vrot.slane %v4165, 1
          %v4167 = vadd.f32 %v4165, %v4166
          %v4168 = vsel %vm3894, %v3869, 0.0
          %v4169 = vrot.slane %v4168, 4
          %v4170 = vadd.f32 %v4168, %v4169
          %v4171 = vrot.slane %v4170, 2
          %v4172 = vadd.f32 %v4170, %v4171
          %v4173 = vrot.slane %v4172, 1
          %v4174 = vadd.f32 %v4172, %v4173
          %v4175 = vsel %vm3894, %v3870, 0.0
          %v4176 = vrot.slane %v4175, 4
          %v4177 = vadd.f32 %v4175, %v4176
          %v4178 = vrot.slane %v4177, 2
          %v4179 = vadd.f32 %v4177, %v4178
          %v4180 = vrot.slane %v4179, 1
          %v4181 = vadd.f32 %v4179, %v4180
          %v4182 = vsel %vm3894, %v3871, 0.0
          %v4183 = vrot.slane %v4182, 4
          %v4184 = vadd.f32 %v4182, %v4183
          %v4185 = vrot.slane %v4184, 2
          %v4186 = vadd.f32 %v4184, %v4185
          %v4187 = vrot.slane %v4186, 1
          %v4188 = vadd.f32 %v4186, %v4187
          %v4189 = vsel %vm3894, %v3872, 0.0
          %v4190 = vrot.slane %v4189, 4
          %v4191 = vadd.f32 %v4189, %v4190
          %v4192 = vrot.slane %v4191, 2
          %v4193 = vadd.f32 %v4191, %v4192
          %v4194 = vrot.slane %v4193, 1
          %v4195 = vadd.f32 %v4193, %v4194
          %v4196 = vsel %vm3894, %v3873, 0.0
          %v4197 = vrot.slane %v4196, 4
          %v4198 = vadd.f32 %v4196, %v4197
          %v4199 = vrot.slane %v4198, 2
          %v4200 = vadd.f32 %v4198, %v4199
          %v4201 = vrot.slane %v4200, 1
          %v4202 = vadd.f32 %v4200, %v4201
          %v4203 = vsel %vm3894, %v3874, 0.0
          %v4204 = vrot.slane %v4203, 4
          %v4205 = vadd.f32 %v4203, %v4204
          %v4206 = vrot.slane %v4205, 2
          %v4207 = vadd.f32 %v4205, %v4206
          %v4208 = vrot.slane %v4207, 1
          %v4209 = vadd.f32 %v4207, %v4208
          %v4210 = vsel %vm3894, %v3875, 0.0
          %v4211 = vrot.slane %v4210, 4
          %v4212 = vadd.f32 %v4210, %v4211
          %v4213 = vrot.slane %v4212, 2
          %v4214 = vadd.f32 %v4212, %v4213
          %v4215 = vrot.slane %v4214, 1
          %v4216 = vadd.f32 %v4214, %v4215
          %v4217 = vsel %vm3894, %v3876, 0.0
          %v4218 = vrot.slane %v4217, 4
          %v4219 = vadd.f32 %v4217, %v4218
          %v4220 = vrot.slane %v4219, 2
          %v4221 = vadd.f32 %v4219, %v4220
          %v4222 = vrot.slane %v4221, 1
          %v4223 = vadd.f32 %v4221, %v4222
          %v4224 = vsel %vm3894, %v3877, 0.0
          %v4225 = vrot.slane %v4224, 4
          %v4226 = vadd.f32 %v4224, %v4225
          %v4227 = vrot.slane %v4226, 2
          %v4228 = vadd.f32 %v4226, %v4227
          %v4229 = vrot.slane %v4228, 1
          %v4230 = vadd.f32 %v4228, %v4229
          %v4231 = vsel %vm3894, %v3878, 0.0
          %v4232 = vrot.slane %v4231, 4
          %v4233 = vadd.f32 %v4231, %v4232
          %v4234 = vrot.slane %v4233, 2
          %v4235 = vadd.f32 %v4233, %v4234
          %v4236 = vrot.slane %v4235, 1
          %v4237 = vadd.f32 %v4235, %v4236
          %v4238 = vsel %vm3894, %v3879, 0.0
          %v4239 = vrot.slane %v4238, 4
          %v4240 = vadd.f32 %v4238, %v4239
          %v4241 = vrot.slane %v4240, 2
          %v4242 = vadd.f32 %v4240, %v4241
          %v4243 = vrot.slane %v4242, 1
          %v4244 = vadd.f32 %v4242, %v4243
          %v4245 = vsel %vm3894, %v3880, 0.0
          %v4246 = vrot.slane %v4245, 4
          %v4247 = vadd.f32 %v4245, %v4246
          %v4248 = vrot.slane %v4247, 2
          %v4249 = vadd.f32 %v4247, %v4248
          %v4250 = vrot.slane %v4249, 1
          %v4251 = vadd.f32 %v4249, %v4250
          %v4252 = vsel %vm3894, %v3881, 0.0
          %v4253 = vrot.slane %v4252, 4
          %v4254 = vadd.f32 %v4252, %v4253
          %v4255 = vrot.slane %v4254, 2
          %v4256 = vadd.f32 %v4254, %v4255
          %v4257 = vrot.slane %v4256, 1
          %v4258 = vadd.f32 %v4256, %v4257
          %v4259 = vsel %vm3894, %v3882, 0.0
          %v4260 = vrot.slane %v4259, 4
          %v4261 = vadd.f32 %v4259, %v4260
          %v4262 = vrot.slane %v4261, 2
          %v4263 = vadd.f32 %v4261, %v4262
          %v4264 = vrot.slane %v4263, 1
          %v4265 = vadd.f32 %v4263, %v4264
          %v4266 = vsel %vm3894, %v3883, 0.0
          %v4267 = vrot.slane %v4266, 4
          %v4268 = vadd.f32 %v4266, %v4267
          %v4269 = vrot.slane %v4268, 2
          %v4270 = vadd.f32 %v4268, %v4269
          %v4271 = vrot.slane %v4270, 1
          %v4272 = vadd.f32 %v4270, %v4271
          %v4273 = vsel %vm3894, %v3884, 0.0
          %v4274 = vrot.slane %v4273, 4
          %v4275 = vadd.f32 %v4273, %v4274
          %v4276 = vrot.slane %v4275, 2
          %v4277 = vadd.f32 %v4275, %v4276
          %v4278 = vrot.slane %v4277, 1
          %v4279 = vadd.f32 %v4277, %v4278
          %v4280 = vsel %vm3894, %v3885, 0.0
          %v4281 = vrot.slane %v4280, 4
          %v4282 = vadd.f32 %v4280, %v4281
          %v4283 = vrot.slane %v4282, 2
          %v4284 = vadd.f32 %v4282, %v4283
          %v4285 = vrot.slane %v4284, 1
          %v4286 = vadd.f32 %v4284, %v4285
          %v4287 = vsel %vm3894, %v3886, 0.0
          %v4288 = vrot.slane %v4287, 4
          %v4289 = vadd.f32 %v4287, %v4288
          %v4290 = vrot.slane %v4289, 2
          %v4291 = vadd.f32 %v4289, %v4290
          %v4292 = vrot.slane %v4291, 1
          %v4293 = vadd.f32 %v4291, %v4292
          %v4294 = vsel %vm3894, %v3887, 0.0
          %v4295 = vrot.slane %v4294, 4
          %v4296 = vadd.f32 %v4294, %v4295
          %v4297 = vrot.slane %v4296, 2
          %v4298 = vadd.f32 %v4296, %v4297
          %v4299 = vrot.slane %v4298, 1
          %v4300 = vadd.f32 %v4298, %v4299
          %v4301 = vsel %vm3894, %v3888, 0.0
          %v4302 = vrot.slane %v4301, 4
          %v4303 = vadd.f32 %v4301, %v4302
          %v4304 = vrot.slane %v4303, 2
          %v4305 = vadd.f32 %v4303, %v4304
          %v4306 = vrot.slane %v4305, 1
          %v4307 = vadd.f32 %v4305, %v4306
          %v4308 = vsel %vm3894, %v3889, 0.0
          %v4309 = vrot.slane %v4308, 4
          %v4310 = vadd.f32 %v4308, %v4309
          %v4311 = vrot.slane %v4310, 2
          %v4312 = vadd.f32 %v4310, %v4311
          %v4313 = vrot.slane %v4312, 1
          %v4314 = vadd.f32 %v4312, %v4313
          %v4315 = vsel %vm3894, %v3890, 0.0
          %v4316 = vrot.slane %v4315, 4
          %v4317 = vadd.f32 %v4315, %v4316
          %v4318 = vrot.slane %v4317, 2
          %v4319 = vadd.f32 %v4317, %v4318
          %v4320 = vrot.slane %v4319, 1
          %v4321 = vadd.f32 %v4319, %v4320
          %v4322 = vsel %vm3894, %v3891, 0.0
          %v4323 = vrot.slane %v4322, 4
          %v4324 = vadd.f32 %v4322, %v4323
          %v4325 = vrot.slane %v4324, 2
          %v4326 = vadd.f32 %v4324, %v4325
          %v4327 = vrot.slane %v4326, 1
          %v4328 = vadd.f32 %v4326, %v4327
          %v4329 = vsel %vm3894, %v3892, 0.0
          %v4330 = vrot.slane %v4329, 4
          %v4331 = vadd.f32 %v4329, %v4330
          %v4332 = vrot.slane %v4331, 2
          %v4333 = vadd.f32 %v4331, %v4332
          %v4334 = vrot.slane %v4333, 1
          %v4335 = vadd.f32 %v4333, %v4334
          %v4336 = vsel %vm3894, %v3893, 0.0
          %v4337 = vrot.slane %v4336, 4
          %v4338 = vadd.f32 %v4336, %v4337
          %v4339 = vrot.slane %v4338, 2
          %v4340 = vadd.f32 %v4338, %v4339
          %v4341 = vrot.slane %v4340, 1
          %v4342 = vadd.f32 %v4340, %v4341
          %4343 = vrot.lane.b32.xlu0 %v817, 96
          %v4344 = vpop.permute.xlu0 %4343
          %4345 = vrot.lane.b32.xlu0 %v1330, 96
          %v4346 = vpop.permute.xlu0 %4345
          %4347 = vrot.lane.b32.xlu0 %v1331, 96
          %v4348 = vpop.permute.xlu0 %4347
          %4349 = vrot.lane.b32.xlu0 %v1332, 96
          %v4350 = vpop.permute.xlu0 %4349
          %4351 = vrot.lane.b32.xlu0 %v1333, 96
          %v4352 = vpop.permute.xlu0 %4351
          %4353 = vrot.lane.b32.xlu0 %v1334, 96
          %v4354 = vpop.permute.xlu0 %4353
          %4355 = vrot.lane.b32.xlu0 %v1335, 96
          %v4356 = vpop.permute.xlu0 %4355
          %4357 = vrot.lane.b32.xlu0 %v1336, 96
          %v4358 = vpop.permute.xlu0 %4357
          %4359 = vrot.lane.b32.xlu0 %v818, 96
          %v4360 = vpop.permute.xlu0 %4359
          %4361 = vrot.lane.b32.xlu0 %v1337, 96
          %v4362 = vpop.permute.xlu0 %4361
          %4363 = vrot.lane.b32.xlu0 %v1338, 96
          %v4364 = vpop.permute.xlu0 %4363
          %4365 = vrot.lane.b32.xlu0 %v1339, 96
          %v4366 = vpop.permute.xlu0 %4365
          %4367 = vrot.lane.b32.xlu0 %v1340, 96
          %v4368 = vpop.permute.xlu0 %4367
          %4369 = vrot.lane.b32.xlu0 %v1341, 96
          %v4370 = vpop.permute.xlu0 %4369
          %4371 = vrot.lane.b32.xlu0 %v1342, 96
          %v4372 = vpop.permute.xlu0 %4371
          %4373 = vrot.lane.b32.xlu0 %v1343, 96
          %v4374 = vpop.permute.xlu0 %4373
          %4375 = vrot.lane.b32.xlu0 %v819, 96
          %v4376 = vpop.permute.xlu0 %4375
          %4377 = vrot.lane.b32.xlu0 %v1344, 96
          %v4378 = vpop.permute.xlu0 %4377
          %4379 = vrot.lane.b32.xlu0 %v1345, 96
          %v4380 = vpop.permute.xlu0 %4379
          %4381 = vrot.lane.b32.xlu0 %v1346, 96
          %v4382 = vpop.permute.xlu0 %4381
          %4383 = vrot.lane.b32.xlu0 %v1347, 96
          %v4384 = vpop.permute.xlu0 %4383
          %4385 = vrot.lane.b32.xlu0 %v1348, 96
          %v4386 = vpop.permute.xlu0 %4385
          %4387 = vrot.lane.b32.xlu0 %v1349, 96
          %v4388 = vpop.permute.xlu0 %4387
          %4389 = vrot.lane.b32.xlu0 %v1350, 96
          %v4390 = vpop.permute.xlu0 %4389
          %4391 = vrot.lane.b32.xlu0 %v820, 96
          %v4392 = vpop.permute.xlu0 %4391
          %4393 = vrot.lane.b32.xlu0 %v1351, 96
          %v4394 = vpop.permute.xlu0 %4393
          %4395 = vrot.lane.b32.xlu0 %v1352, 96
          %v4396 = vpop.permute.xlu0 %4395
          %4397 = vrot.lane.b32.xlu0 %v1353, 96
          %v4398 = vpop.permute.xlu0 %4397
          %4399 = vrot.lane.b32.xlu0 %v1354, 96
          %v4400 = vpop.permute.xlu0 %4399
          %4401 = vrot.lane.b32.xlu0 %v1355, 96
          %v4402 = vpop.permute.xlu0 %4401
          %4403 = vrot.lane.b32.xlu0 %v1356, 96
          %v4404 = vpop.permute.xlu0 %4403
          %4405 = vrot.lane.b32.xlu0 %v1357, 96
          %v4406 = vpop.permute.xlu0 %4405
          %4407 = vrot.lane.b32.xlu0 %v821, 96
          %v4408 = vpop.permute.xlu0 %4407
          %4409 = vrot.lane.b32.xlu0 %v1358, 96
          %v4410 = vpop.permute.xlu0 %4409
          %4411 = vrot.lane.b32.xlu0 %v1359, 96
          %v4412 = vpop.permute.xlu0 %4411
          %4413 = vrot.lane.b32.xlu0 %v1360, 96
          %v4414 = vpop.permute.xlu0 %4413
          %4415 = vrot.lane.b32.xlu0 %v1361, 96
          %v4416 = vpop.permute.xlu0 %4415
          %4417 = vrot.lane.b32.xlu0 %v1362, 96
          %v4418 = vpop.permute.xlu0 %4417
          %4419 = vrot.lane.b32.xlu0 %v1363, 96
          %v4420 = vpop.permute.xlu0 %4419
          %4421 = vrot.lane.b32.xlu0 %v1364, 96
          %v4422 = vpop.permute.xlu0 %4421
          %4423 = vrot.lane.b32.xlu0 %v822, 96
          %v4424 = vpop.permute.xlu0 %4423
          %4425 = vrot.lane.b32.xlu0 %v1365, 96
          %v4426 = vpop.permute.xlu0 %4425
          %4427 = vrot.lane.b32.xlu0 %v1366, 96
          %v4428 = vpop.permute.xlu0 %4427
          %4429 = vrot.lane.b32.xlu0 %v1367, 96
          %v4430 = vpop.permute.xlu0 %4429
          %4431 = vrot.lane.b32.xlu0 %v1368, 96
          %v4432 = vpop.permute.xlu0 %4431
          %4433 = vrot.lane.b32.xlu0 %v1369, 96
          %v4434 = vpop.permute.xlu0 %4433
          %4435 = vrot.lane.b32.xlu0 %v1370, 96
          %v4436 = vpop.permute.xlu0 %4435
          %4437 = vrot.lane.b32.xlu0 %v1371, 96
          %v4438 = vpop.permute.xlu0 %4437
          %4439 = vrot.lane.b32.xlu0 %v823, 96
          %v4440 = vpop.permute.xlu0 %4439
          %4441 = vrot.lane.b32.xlu0 %v1372, 96
          %v4442 = vpop.permute.xlu0 %4441
          %4443 = vrot.lane.b32.xlu0 %v1373, 96
          %v4444 = vpop.permute.xlu0 %4443
          %4445 = vrot.lane.b32.xlu0 %v1374, 96
          %v4446 = vpop.permute.xlu0 %4445
          %4447 = vrot.lane.b32.xlu0 %v1375, 96
          %v4448 = vpop.permute.xlu0 %4447
          %4449 = vrot.lane.b32.xlu0 %v1376, 96
          %v4450 = vpop.permute.xlu0 %4449
          %4451 = vrot.lane.b32.xlu0 %v1377, 96
          %v4452 = vpop.permute.xlu0 %4451
          %4453 = vrot.lane.b32.xlu0 %v1378, 96
          %v4454 = vpop.permute.xlu0 %4453
          %4455 = vrot.lane.b32.xlu0 %v824, 96
          %v4456 = vpop.permute.xlu0 %4455
          %4457 = vrot.lane.b32.xlu0 %v1379, 96
          %v4458 = vpop.permute.xlu0 %4457
          %4459 = vrot.lane.b32.xlu0 %v1380, 96
          %v4460 = vpop.permute.xlu0 %4459
          %4461 = vrot.lane.b32.xlu0 %v1381, 96
          %v4462 = vpop.permute.xlu0 %4461
          %4463 = vrot.lane.b32.xlu0 %v1382, 96
          %v4464 = vpop.permute.xlu0 %4463
          %4465 = vrot.lane.b32.xlu0 %v1383, 96
          %v4466 = vpop.permute.xlu0 %4465
          %4467 = vrot.lane.b32.xlu0 %v1384, 96
          %v4468 = vpop.permute.xlu0 %4467
          %4469 = vrot.lane.b32.xlu0 %v1385, 96
          %v4470 = vpop.permute.xlu0 %4469
          %v4535 = vadd.f32 %v3901, %v4344
          %v4536 = vadd.f32 %v3908, %v4346
          %v4537 = vadd.f32 %v3915, %v4348
          %v4538 = vadd.f32 %v3922, %v4350
          %v4539 = vadd.f32 %v3929, %v4352
          %v4540 = vadd.f32 %v3936, %v4354
          %v4541 = vadd.f32 %v3943, %v4356
          %v4542 = vadd.f32 %v3950, %v4358
          %v4543 = vadd.f32 %v3957, %v4360
          %v4544 = vadd.f32 %v3964, %v4362
          %v4545 = vadd.f32 %v3971, %v4364
          %v4546 = vadd.f32 %v3978, %v4366
          %v4547 = vadd.f32 %v3985, %v4368
          %v4548 = vadd.f32 %v3992, %v4370
          %v4549 = vadd.f32 %v3999, %v4372
          %v4550 = vadd.f32 %v4006, %v4374
          %v4551 = vadd.f32 %v4013, %v4376
          %v4552 = vadd.f32 %v4020, %v4378
          %v4553 = vadd.f32 %v4027, %v4380
          %v4554 = vadd.f32 %v4034, %v4382
          %v4555 = vadd.f32 %v4041, %v4384
          %v4556 = vadd.f32 %v4048, %v4386
          %v4557 = vadd.f32 %v4055, %v4388
          %v4558 = vadd.f32 %v4062, %v4390
          %v4559 = vadd.f32 %v4069, %v4392
          %v4560 = vadd.f32 %v4076, %v4394
          %v4561 = vadd.f32 %v4083, %v4396
          %v4562 = vadd.f32 %v4090, %v4398
          %v4563 = vadd.f32 %v4097, %v4400
          %v4564 = vadd.f32 %v4104, %v4402
          %v4565 = vadd.f32 %v4111, %v4404
          %v4566 = vadd.f32 %v4118, %v4406
          %v4567 = vadd.f32 %v4125, %v4408
          %v4568 = vadd.f32 %v4132, %v4410
          %v4569 = vadd.f32 %v4139, %v4412
          %v4570 = vadd.f32 %v4146, %v4414
          %v4571 = vadd.f32 %v4153, %v4416
          %v4572 = vadd.f32 %v4160, %v4418
          %v4573 = vadd.f32 %v4167, %v4420
          %v4574 = vadd.f32 %v4174, %v4422
          %v4575 = vadd.f32 %v4181, %v4424
          %v4576 = vadd.f32 %v4188, %v4426
          %v4577 = vadd.f32 %v4195, %v4428
          %v4578 = vadd.f32 %v4202, %v4430
          %v4579 = vadd.f32 %v4209, %v4432
          %v4580 = vadd.f32 %v4216, %v4434
          %v4581 = vadd.f32 %v4223, %v4436
          %v4582 = vadd.f32 %v4230, %v4438
          %v4583 = vadd.f32 %v4237, %v4440
          %v4584 = vadd.f32 %v4244, %v4442
          %v4585 = vadd.f32 %v4251, %v4444
          %v4586 = vadd.f32 %v4258, %v4446
          %v4587 = vadd.f32 %v4265, %v4448
          %v4588 = vadd.f32 %v4272, %v4450
          %v4589 = vadd.f32 %v4279, %v4452
          %v4590 = vadd.f32 %v4286, %v4454
          %v4591 = vadd.f32 %v4293, %v4456
          %v4592 = vadd.f32 %v4300, %v4458
          %v4593 = vadd.f32 %v4307, %v4460
          %v4594 = vadd.f32 %v4314, %v4462
          %v4595 = vadd.f32 %v4321, %v4464
          %v4596 = vadd.f32 %v4328, %v4466
          %v4597 = vadd.f32 %v4335, %v4468
          %v4598 = vadd.f32 %v4342, %v4470
          %vm4599 = vcmp.ge.f32.partialorder %v4535, 0.0
          %vm4600 = vcmp.ge.f32.partialorder %v4536, 0.0
          %vm4601 = vcmp.ge.f32.partialorder %v4537, 0.0
          %vm4602 = vcmp.ge.f32.partialorder %v4538, 0.0
          %vm4603 = vcmp.ge.f32.partialorder %v4539, 0.0
          %vm4604 = vcmp.ge.f32.partialorder %v4540, 0.0
          %vm4605 = vcmp.ge.f32.partialorder %v4541, 0.0
          %vm4606 = vcmp.ge.f32.partialorder %v4542, 0.0
          %vm4607 = vcmp.ge.f32.partialorder %v4543, 0.0
          %vm4608 = vcmp.ge.f32.partialorder %v4544, 0.0
          %vm4609 = vcmp.ge.f32.partialorder %v4545, 0.0
          %vm4610 = vcmp.ge.f32.partialorder %v4546, 0.0
          %vm4611 = vcmp.ge.f32.partialorder %v4547, 0.0
          %vm4612 = vcmp.ge.f32.partialorder %v4548, 0.0
          %vm4613 = vcmp.ge.f32.partialorder %v4549, 0.0
          %vm4614 = vcmp.ge.f32.partialorder %v4550, 0.0
          %vm4615 = vcmp.ge.f32.partialorder %v4551, 0.0
          %vm4616 = vcmp.ge.f32.partialorder %v4552, 0.0
          %vm4617 = vcmp.ge.f32.partialorder %v4553, 0.0
          %vm4618 = vcmp.ge.f32.partialorder %v4554, 0.0
          %vm4619 = vcmp.ge.f32.partialorder %v4555, 0.0
          %vm4620 = vcmp.ge.f32.partialorder %v4556, 0.0
          %vm4621 = vcmp.ge.f32.partialorder %v4557, 0.0
          %vm4622 = vcmp.ge.f32.partialorder %v4558, 0.0
          %vm4623 = vcmp.ge.f32.partialorder %v4559, 0.0
          %vm4624 = vcmp.ge.f32.partialorder %v4560, 0.0
          %vm4625 = vcmp.ge.f32.partialorder %v4561, 0.0
          %vm4626 = vcmp.ge.f32.partialorder %v4562, 0.0
          %vm4627 = vcmp.ge.f32.partialorder %v4563, 0.0
          %vm4628 = vcmp.ge.f32.partialorder %v4564, 0.0
          %vm4629 = vcmp.ge.f32.partialorder %v4565, 0.0
          %vm4630 = vcmp.ge.f32.partialorder %v4566, 0.0
          %vm4631 = vcmp.ge.f32.partialorder %v4567, 0.0
          %vm4632 = vcmp.ge.f32.partialorder %v4568, 0.0
          %vm4633 = vcmp.ge.f32.partialorder %v4569, 0.0
          %vm4634 = vcmp.ge.f32.partialorder %v4570, 0.0
          %vm4635 = vcmp.ge.f32.partialorder %v4571, 0.0
          %vm4636 = vcmp.ge.f32.partialorder %v4572, 0.0
          %vm4637 = vcmp.ge.f32.partialorder %v4573, 0.0
          %vm4638 = vcmp.ge.f32.partialorder %v4574, 0.0
          %vm4639 = vcmp.ge.f32.partialorder %v4575, 0.0
          %vm4640 = vcmp.ge.f32.partialorder %v4576, 0.0
          %vm4641 = vcmp.ge.f32.partialorder %v4577, 0.0
          %vm4642 = vcmp.ge.f32.partialorder %v4578, 0.0
          %vm4643 = vcmp.ge.f32.partialorder %v4579, 0.0
          %vm4644 = vcmp.ge.f32.partialorder %v4580, 0.0
          %vm4645 = vcmp.ge.f32.partialorder %v4581, 0.0
          %vm4646 = vcmp.ge.f32.partialorder %v4582, 0.0
          %vm4647 = vcmp.ge.f32.partialorder %v4583, 0.0
          %vm4648 = vcmp.ge.f32.partialorder %v4584, 0.0
          %vm4649 = vcmp.ge.f32.partialorder %v4585, 0.0
          %vm4650 = vcmp.ge.f32.partialorder %v4586, 0.0
          %vm4651 = vcmp.ge.f32.partialorder %v4587, 0.0
          %vm4652 = vcmp.ge.f32.partialorder %v4588, 0.0
          %vm4653 = vcmp.ge.f32.partialorder %v4589, 0.0
          %vm4654 = vcmp.ge.f32.partialorder %v4590, 0.0
          %vm4655 = vcmp.ge.f32.partialorder %v4591, 0.0
          %vm4656 = vcmp.ge.f32.partialorder %v4592, 0.0
          %vm4657 = vcmp.ge.f32.partialorder %v4593, 0.0
          %vm4658 = vcmp.ge.f32.partialorder %v4594, 0.0
          %vm4659 = vcmp.ge.f32.partialorder %v4595, 0.0
          %vm4660 = vcmp.ge.f32.partialorder %v4596, 0.0
          %vm4661 = vcmp.ge.f32.partialorder %v4597, 0.0
          %vm4662 = vcmp.ge.f32.partialorder %v4598, 0.0
          %v4663 = vmul.f32 %v4535, 0.2
          %v4664 = vmul.f32 %v4536, 0.2
          %v4665 = vmul.f32 %v4537, 0.2
          %v4666 = vmul.f32 %v4538, 0.2
          %v4667 = vmul.f32 %v4539, 0.2
          %v4668 = vmul.f32 %v4540, 0.2
          %v4669 = vmul.f32 %v4541, 0.2
          %v4670 = vmul.f32 %v4542, 0.2
          %v4671 = vmul.f32 %v4543, 0.2
          %v4672 = vmul.f32 %v4544, 0.2
          %v4673 = vmul.f32 %v4545, 0.2
          %v4674 = vmul.f32 %v4546, 0.2
          %v4675 = vmul.f32 %v4547, 0.2
          %v4676 = vmul.f32 %v4548, 0.2
          %v4677 = vmul.f32 %v4549, 0.2
          %v4678 = vmul.f32 %v4550, 0.2
          %v4679 = vmul.f32 %v4551, 0.2
          %v4680 = vmul.f32 %v4552, 0.2
          %v4681 = vmul.f32 %v4553, 0.2
          %v4682 = vmul.f32 %v4554, 0.2
          %v4683 = vmul.f32 %v4555, 0.2
          %v4684 = vmul.f32 %v4556, 0.2
          %v4685 = vmul.f32 %v4557, 0.2
          %v4686 = vmul.f32 %v4558, 0.2
          %v4687 = vmul.f32 %v4559, 0.2
          %v4688 = vmul.f32 %v4560, 0.2
          %v4689 = vmul.f32 %v4561, 0.2
          %v4690 = vmul.f32 %v4562, 0.2
          %v4691 = vmul.f32 %v4563, 0.2
          %v4692 = vmul.f32 %v4564, 0.2
          %v4693 = vmul.f32 %v4565, 0.2
          %v4694 = vmul.f32 %v4566, 0.2
          %v4695 = vmul.f32 %v4567, 0.2
          %v4696 = vmul.f32 %v4568, 0.2
          %v4697 = vmul.f32 %v4569, 0.2
          %v4698 = vmul.f32 %v4570, 0.2
          %v4699 = vmul.f32 %v4571, 0.2
          %v4700 = vmul.f32 %v4572, 0.2
          %v4701 = vmul.f32 %v4573, 0.2
          %v4702 = vmul.f32 %v4574, 0.2
          %v4703 = vmul.f32 %v4575, 0.2
          %v4704 = vmul.f32 %v4576, 0.2
          %v4705 = vmul.f32 %v4577, 0.2
          %v4706 = vmul.f32 %v4578, 0.2
          %v4707 = vmul.f32 %v4579, 0.2
          %v4708 = vmul.f32 %v4580, 0.2
          %v4709 = vmul.f32 %v4581, 0.2
          %v4710 = vmul.f32 %v4582, 0.2
          %v4711 = vmul.f32 %v4583, 0.2
          %v4712 = vmul.f32 %v4584, 0.2
          %v4713 = vmul.f32 %v4585, 0.2
          %v4714 = vmul.f32 %v4586, 0.2
          %v4715 = vmul.f32 %v4587, 0.2
          %v4716 = vmul.f32 %v4588, 0.2
          %v4717 = vmul.f32 %v4589, 0.2
          %v4718 = vmul.f32 %v4590, 0.2
          %v4719 = vmul.f32 %v4591, 0.2
          %v4720 = vmul.f32 %v4592, 0.2
          %v4721 = vmul.f32 %v4593, 0.2
          %v4722 = vmul.f32 %v4594, 0.2
          %v4723 = vmul.f32 %v4595, 0.2
          %v4724 = vmul.f32 %v4596, 0.2
          %v4725 = vmul.f32 %v4597, 0.2
          %v4726 = vmul.f32 %v4598, 0.2
          %v4727 = vsel %vm4599, %v4535, %v4663
          %v4728 = vsel %vm4600, %v4536, %v4664
          %v4729 = vsel %vm4601, %v4537, %v4665
          %v4730 = vsel %vm4602, %v4538, %v4666
          %v4731 = vsel %vm4603, %v4539, %v4667
          %v4732 = vsel %vm4604, %v4540, %v4668
          %v4733 = vsel %vm4605, %v4541, %v4669
          %v4734 = vsel %vm4606, %v4542, %v4670
          %v4735 = vsel %vm4607, %v4543, %v4671
          %v4736 = vsel %vm4608, %v4544, %v4672
          %v4737 = vsel %vm4609, %v4545, %v4673
          %v4738 = vsel %vm4610, %v4546, %v4674
          %v4739 = vsel %vm4611, %v4547, %v4675
          %v4740 = vsel %vm4612, %v4548, %v4676
          %v4741 = vsel %vm4613, %v4549, %v4677
          %v4742 = vsel %vm4614, %v4550, %v4678
          %v4743 = vsel %vm4615, %v4551, %v4679
          %v4744 = vsel %vm4616, %v4552, %v4680
          %v4745 = vsel %vm4617, %v4553, %v4681
          %v4746 = vsel %vm4618, %v4554, %v4682
          %v4747 = vsel %vm4619, %v4555, %v4683
          %v4748 = vsel %vm4620, %v4556, %v4684
          %v4749 = vsel %vm4621, %v4557, %v4685
          %v4750 = vsel %vm4622, %v4558, %v4686
          %v4751 = vsel %vm4623, %v4559, %v4687
          %v4752 = vsel %vm4624, %v4560, %v4688
          %v4753 = vsel %vm4625, %v4561, %v4689
          %v4754 = vsel %vm4626, %v4562, %v4690
          %v4755 = vsel %vm4627, %v4563, %v4691
          %v4756 = vsel %vm4628, %v4564, %v4692
          %v4757 = vsel %vm4629, %v4565, %v4693
          %v4758 = vsel %vm4630, %v4566, %v4694
          %v4759 = vsel %vm4631, %v4567, %v4695
          %v4760 = vsel %vm4632, %v4568, %v4696
          %v4761 = vsel %vm4633, %v4569, %v4697
          %v4762 = vsel %vm4634, %v4570, %v4698
          %v4763 = vsel %vm4635, %v4571, %v4699
          %v4764 = vsel %vm4636, %v4572, %v4700
          %v4765 = vsel %vm4637, %v4573, %v4701
          %v4766 = vsel %vm4638, %v4574, %v4702
          %v4767 = vsel %vm4639, %v4575, %v4703
          %v4768 = vsel %vm4640, %v4576, %v4704
          %v4769 = vsel %vm4641, %v4577, %v4705
          %v4770 = vsel %vm4642, %v4578, %v4706
          %v4771 = vsel %vm4643, %v4579, %v4707
          %v4772 = vsel %vm4644, %v4580, %v4708
          %v4773 = vsel %vm4645, %v4581, %v4709
          %v4774 = vsel %vm4646, %v4582, %v4710
          %v4775 = vsel %vm4647, %v4583, %v4711
          %v4776 = vsel %vm4648, %v4584, %v4712
          %v4777 = vsel %vm4649, %v4585, %v4713
          %v4778 = vsel %vm4650, %v4586, %v4714
          %v4779 = vsel %vm4651, %v4587, %v4715
          %v4780 = vsel %vm4652, %v4588, %v4716
          %v4781 = vsel %vm4653, %v4589, %v4717
          %v4782 = vsel %vm4654, %v4590, %v4718
          %v4783 = vsel %vm4655, %v4591, %v4719
          %v4784 = vsel %vm4656, %v4592, %v4720
          %v4785 = vsel %vm4657, %v4593, %v4721
          %v4786 = vsel %vm4658, %v4594, %v4722
          %v4787 = vsel %vm4659, %v4595, %v4723
          %v4788 = vsel %vm4660, %v4596, %v4724
          %v4789 = vsel %vm4661, %v4597, %v4725
          %v4790 = vsel %vm4662, %v4598, %v4726
          %v4791 = vld [vmem:[#allocation2] sm:$0xff]
          %v4792 = vld [vmem:[#allocation2 + $0x8] sm:$0xff]
          %v4793 = vld [vmem:[#allocation2 + $0x10] sm:$0xff]
          %v4794 = vld [vmem:[#allocation2 + $0x18] sm:$0xff]
          %v4795 = vld [vmem:[#allocation2 + $0x20] sm:$0xff]
          %v4796 = vld [vmem:[#allocation2 + $0x28] sm:$0xff]
          %v4797 = vld [vmem:[#allocation2 + $0x30] sm:$0xff]
          %v4798 = vld [vmem:[#allocation2 + $0x38] sm:$0xff]
          %v4807 = vrot.slane %v4791, 1
          %v4808 = vrot.slane %v4791, 2
          %v4809 = vrot.slane %v4791, 3
          %v4810 = vrot.slane %v4791, 4
          %v4811 = vrot.slane %v4791, 5
          %v4812 = vrot.slane %v4791, 6
          %v4813 = vrot.slane %v4791, 7
          %v4814 = vrot.slane %v4792, 1
          %v4815 = vrot.slane %v4792, 2
          %v4816 = vrot.slane %v4792, 3
          %v4817 = vrot.slane %v4792, 4
          %v4818 = vrot.slane %v4792, 5
          %v4819 = vrot.slane %v4792, 6
          %v4820 = vrot.slane %v4792, 7
          %v4821 = vrot.slane %v4793, 1
          %v4822 = vrot.slane %v4793, 2
          %v4823 = vrot.slane %v4793, 3
          %v4824 = vrot.slane %v4793, 4
          %v4825 = vrot.slane %v4793, 5
          %v4826 = vrot.slane %v4793, 6
          %v4827 = vrot.slane %v4793, 7
          %v4828 = vrot.slane %v4794, 1
          %v4829 = vrot.slane %v4794, 2
          %v4830 = vrot.slane %v4794, 3
          %v4831 = vrot.slane %v4794, 4
          %v4832 = vrot.slane %v4794, 5
          %v4833 = vrot.slane %v4794, 6
          %v4834 = vrot.slane %v4794, 7
          %v4835 = vrot.slane %v4795, 1
          %v4836 = vrot.slane %v4795, 2
          %v4837 = vrot.slane %v4795, 3
          %v4838 = vrot.slane %v4795, 4
          %v4839 = vrot.slane %v4795, 5
          %v4840 = vrot.slane %v4795, 6
          %v4841 = vrot.slane %v4795, 7
          %v4842 = vrot.slane %v4796, 1
          %v4843 = vrot.slane %v4796, 2
          %v4844 = vrot.slane %v4796, 3
          %v4845 = vrot.slane %v4796, 4
          %v4846 = vrot.slane %v4796, 5
          %v4847 = vrot.slane %v4796, 6
          %v4848 = vrot.slane %v4796, 7
          %v4849 = vrot.slane %v4797, 1
          %v4850 = vrot.slane %v4797, 2
          %v4851 = vrot.slane %v4797, 3
          %v4852 = vrot.slane %v4797, 4
          %v4853 = vrot.slane %v4797, 5
          %v4854 = vrot.slane %v4797, 6
          %v4855 = vrot.slane %v4797, 7
          %v4856 = vrot.slane %v4798, 1
          %v4857 = vrot.slane %v4798, 2
          %v4858 = vrot.slane %v4798, 3
          %v4859 = vrot.slane %v4798, 4
          %v4860 = vrot.slane %v4798, 5
          %v4861 = vrot.slane %v4798, 6
          %v4862 = vrot.slane %v4798, 7
          %4863 = vrot.lane.b32.xlu0 %v4791, 32
          %v4864 = vpop.permute.xlu0 %4863
          %4865 = vrot.lane.b32.xlu0 %v4807, 32
          %v4866 = vpop.permute.xlu0 %4865
          %4867 = vrot.lane.b32.xlu0 %v4808, 32
          %v4868 = vpop.permute.xlu0 %4867
          %4869 = vrot.lane.b32.xlu0 %v4809, 32
          %v4870 = vpop.permute.xlu0 %4869
          %4871 = vrot.lane.b32.xlu0 %v4810, 32
          %v4872 = vpop.permute.xlu0 %4871
          %4873 = vrot.lane.b32.xlu0 %v4811, 32
          %v4874 = vpop.permute.xlu0 %4873
          %4875 = vrot.lane.b32.xlu0 %v4812, 32
          %v4876 = vpop.permute.xlu0 %4875
          %4877 = vrot.lane.b32.xlu0 %v4813, 32
          %v4878 = vpop.permute.xlu0 %4877
          %4879 = vrot.lane.b32.xlu0 %v4792, 32
          %v4880 = vpop.permute.xlu0 %4879
          %4881 = vrot.lane.b32.xlu0 %v4814, 32
          %v4882 = vpop.permute.xlu0 %4881
          %4883 = vrot.lane.b32.xlu0 %v4815, 32
          %v4884 = vpop.permute.xlu0 %4883
          %4885 = vrot.lane.b32.xlu0 %v4816, 32
          %v4886 = vpop.permute.xlu0 %4885
          %4887 = vrot.lane.b32.xlu0 %v4817, 32
          %v4888 = vpop.permute.xlu0 %4887
          %4889 = vrot.lane.b32.xlu0 %v4818, 32
          %v4890 = vpop.permute.xlu0 %4889
          %4891 = vrot.lane.b32.xlu0 %v4819, 32
          %v4892 = vpop.permute.xlu0 %4891
          %4893 = vrot.lane.b32.xlu0 %v4820, 32
          %v4894 = vpop.permute.xlu0 %4893
          %4895 = vrot.lane.b32.xlu0 %v4793, 32
          %v4896 = vpop.permute.xlu0 %4895
          %4897 = vrot.lane.b32.xlu0 %v4821, 32
          %v4898 = vpop.permute.xlu0 %4897
          %4899 = vrot.lane.b32.xlu0 %v4822, 32
          %v4900 = vpop.permute.xlu0 %4899
          %4901 = vrot.lane.b32.xlu0 %v4823, 32
          %v4902 = vpop.permute.xlu0 %4901
          %4903 = vrot.lane.b32.xlu0 %v4824, 32
          %v4904 = vpop.permute.xlu0 %4903
          %4905 = vrot.lane.b32.xlu0 %v4825, 32
          %v4906 = vpop.permute.xlu0 %4905
          %4907 = vrot.lane.b32.xlu0 %v4826, 32
          %v4908 = vpop.permute.xlu0 %4907
          %4909 = vrot.lane.b32.xlu0 %v4827, 32
          %v4910 = vpop.permute.xlu0 %4909
          %4911 = vrot.lane.b32.xlu0 %v4794, 32
          %v4912 = vpop.permute.xlu0 %4911
          %4913 = vrot.lane.b32.xlu0 %v4828, 32
          %v4914 = vpop.permute.xlu0 %4913
          %4915 = vrot.lane.b32.xlu0 %v4829, 32
          %v4916 = vpop.permute.xlu0 %4915
          %4917 = vrot.lane.b32.xlu0 %v4830, 32
          %v4918 = vpop.permute.xlu0 %4917
          %4919 = vrot.lane.b32.xlu0 %v4831, 32
          %v4920 = vpop.permute.xlu0 %4919
          %4921 = vrot.lane.b32.xlu0 %v4832, 32
          %v4922 = vpop.permute.xlu0 %4921
          %4923 = vrot.lane.b32.xlu0 %v4833, 32
          %v4924 = vpop.permute.xlu0 %4923
          %4925 = vrot.lane.b32.xlu0 %v4834, 32
          %v4926 = vpop.permute.xlu0 %4925
          %4927 = vrot.lane.b32.xlu0 %v4795, 32
          %v4928 = vpop.permute.xlu0 %4927
          %4929 = vrot.lane.b32.xlu0 %v4835, 32
          %v4930 = vpop.permute.xlu0 %4929
          %4931 = vrot.lane.b32.xlu0 %v4836, 32
          %v4932 = vpop.permute.xlu0 %4931
          %4933 = vrot.lane.b32.xlu0 %v4837, 32
          %v4934 = vpop.permute.xlu0 %4933
          %4935 = vrot.lane.b32.xlu0 %v4838, 32
          %v4936 = vpop.permute.xlu0 %4935
          %4937 = vrot.lane.b32.xlu0 %v4839, 32
          %v4938 = vpop.permute.xlu0 %4937
          %4939 = vrot.lane.b32.xlu0 %v4840, 32
          %v4940 = vpop.permute.xlu0 %4939
          %4941 = vrot.lane.b32.xlu0 %v4841, 32
          %v4942 = vpop.permute.xlu0 %4941
          %4943 = vrot.lane.b32.xlu0 %v4796, 32
          %v4944 = vpop.permute.xlu0 %4943
          %4945 = vrot.lane.b32.xlu0 %v4842, 32
          %v4946 = vpop.permute.xlu0 %4945
          %4947 = vrot.lane.b32.xlu0 %v4843, 32
          %v4948 = vpop.permute.xlu0 %4947
          %4949 = vrot.lane.b32.xlu0 %v4844, 32
          %v4950 = vpop.permute.xlu0 %4949
          %4951 = vrot.lane.b32.xlu0 %v4845, 32
          %v4952 = vpop.permute.xlu0 %4951
          %4953 = vrot.lane.b32.xlu0 %v4846, 32
          %v4954 = vpop.permute.xlu0 %4953
          %4955 = vrot.lane.b32.xlu0 %v4847, 32
          %v4956 = vpop.permute.xlu0 %4955
          %4957 = vrot.lane.b32.xlu0 %v4848, 32
          %v4958 = vpop.permute.xlu0 %4957
          %4959 = vrot.lane.b32.xlu0 %v4797, 32
          %v4960 = vpop.permute.xlu0 %4959
          %4961 = vrot.lane.b32.xlu0 %v4849, 32
          %v4962 = vpop.permute.xlu0 %4961
          %4963 = vrot.lane.b32.xlu0 %v4850, 32
          %v4964 = vpop.permute.xlu0 %4963
          %4965 = vrot.lane.b32.xlu0 %v4851, 32
          %v4966 = vpop.permute.xlu0 %4965
          %4967 = vrot.lane.b32.xlu0 %v4852, 32
          %v4968 = vpop.permute.xlu0 %4967
          %4969 = vrot.lane.b32.xlu0 %v4853, 32
          %v4970 = vpop.permute.xlu0 %4969
          %4971 = vrot.lane.b32.xlu0 %v4854, 32
          %v4972 = vpop.permute.xlu0 %4971
          %4973 = vrot.lane.b32.xlu0 %v4855, 32
          %v4974 = vpop.permute.xlu0 %4973
          %4975 = vrot.lane.b32.xlu0 %v4798, 32
          %v4976 = vpop.permute.xlu0 %4975
          %4977 = vrot.lane.b32.xlu0 %v4856, 32
          %v4978 = vpop.permute.xlu0 %4977
          %4979 = vrot.lane.b32.xlu0 %v4857, 32
          %v4980 = vpop.permute.xlu0 %4979
          %4981 = vrot.lane.b32.xlu0 %v4858, 32
          %v4982 = vpop.permute.xlu0 %4981
          %4983 = vrot.lane.b32.xlu0 %v4859, 32
          %v4984 = vpop.permute.xlu0 %4983
          %4985 = vrot.lane.b32.xlu0 %v4860, 32
          %v4986 = vpop.permute.xlu0 %4985
          %4987 = vrot.lane.b32.xlu0 %v4861, 32
          %v4988 = vpop.permute.xlu0 %4987
          %4989 = vrot.lane.b32.xlu0 %v4862, 32
          %v4990 = vpop.permute.xlu0 %4989
          %v5055 = vadd.f32 %v4727, %v4864
          %v5056 = vadd.f32 %v4728, %v4866
          %v5057 = vadd.f32 %v4729, %v4868
          %v5058 = vadd.f32 %v4730, %v4870
          %v5059 = vadd.f32 %v4731, %v4872
          %v5060 = vadd.f32 %v4732, %v4874
          %v5061 = vadd.f32 %v4733, %v4876
          %v5062 = vadd.f32 %v4734, %v4878
          %v5063 = vadd.f32 %v4735, %v4880
          %v5064 = vadd.f32 %v4736, %v4882
          %v5065 = vadd.f32 %v4737, %v4884
          %v5066 = vadd.f32 %v4738, %v4886
          %v5067 = vadd.f32 %v4739, %v4888
          %v5068 = vadd.f32 %v4740, %v4890
          %v5069 = vadd.f32 %v4741, %v4892
          %v5070 = vadd.f32 %v4742, %v4894
          %v5071 = vadd.f32 %v4743, %v4896
          %v5072 = vadd.f32 %v4744, %v4898
          %v5073 = vadd.f32 %v4745, %v4900
          %v5074 = vadd.f32 %v4746, %v4902
          %v5075 = vadd.f32 %v4747, %v4904
          %v5076 = vadd.f32 %v4748, %v4906
          %v5077 = vadd.f32 %v4749, %v4908
          %v5078 = vadd.f32 %v4750, %v4910
          %v5079 = vadd.f32 %v4751, %v4912
          %v5080 = vadd.f32 %v4752, %v4914
          %v5081 = vadd.f32 %v4753, %v4916
          %v5082 = vadd.f32 %v4754, %v4918
          %v5083 = vadd.f32 %v4755, %v4920
          %v5084 = vadd.f32 %v4756, %v4922
          %v5085 = vadd.f32 %v4757, %v4924
          %v5086 = vadd.f32 %v4758, %v4926
          %v5087 = vadd.f32 %v4759, %v4928
          %v5088 = vadd.f32 %v4760, %v4930
          %v5089 = vadd.f32 %v4761, %v4932
          %v5090 = vadd.f32 %v4762, %v4934
          %v5091 = vadd.f32 %v4763, %v4936
          %v5092 = vadd.f32 %v4764, %v4938
          %v5093 = vadd.f32 %v4765, %v4940
          %v5094 = vadd.f32 %v4766, %v4942
          %v5095 = vadd.f32 %v4767, %v4944
          %v5096 = vadd.f32 %v4768, %v4946
          %v5097 = vadd.f32 %v4769, %v4948
          %v5098 = vadd.f32 %v4770, %v4950
          %v5099 = vadd.f32 %v4771, %v4952
          %v5100 = vadd.f32 %v4772, %v4954
          %v5101 = vadd.f32 %v4773, %v4956
          %v5102 = vadd.f32 %v4774, %v4958
          %v5103 = vadd.f32 %v4775, %v4960
          %v5104 = vadd.f32 %v4776, %v4962
          %v5105 = vadd.f32 %v4777, %v4964
          %v5106 = vadd.f32 %v4778, %v4966
          %v5107 = vadd.f32 %v4779, %v4968
          %v5108 = vadd.f32 %v4780, %v4970
          %v5109 = vadd.f32 %v4781, %v4972
          %v5110 = vadd.f32 %v4782, %v4974
          %v5111 = vadd.f32 %v4783, %v4976
          %v5112 = vadd.f32 %v4784, %v4978
          %v5113 = vadd.f32 %v4785, %v4980
          %v5114 = vadd.f32 %v4786, %v4982
          %v5115 = vadd.f32 %v4787, %v4984
          %v5116 = vadd.f32 %v4788, %v4986
          %v5117 = vadd.f32 %v4789, %v4988
          %v5118 = vadd.f32 %v4790, %v4990
          %v5119 = vmax.f32 %v5055, 0.0
          %v5120 = vmax.f32 %v5056, 0.0
          %v5121 = vmax.f32 %v5057, 0.0
          %v5122 = vmax.f32 %v5058, 0.0
          %v5123 = vmax.f32 %v5059, 0.0
          %v5124 = vmax.f32 %v5060, 0.0
          %v5125 = vmax.f32 %v5061, 0.0
          %v5126 = vmax.f32 %v5062, 0.0
          %v5127 = vmax.f32 %v5063, 0.0
          %v5128 = vmax.f32 %v5064, 0.0
          %v5129 = vmax.f32 %v5065, 0.0
          %v5130 = vmax.f32 %v5066, 0.0
          %v5131 = vmax.f32 %v5067, 0.0
          %v5132 = vmax.f32 %v5068, 0.0
          %v5133 = vmax.f32 %v5069, 0.0
          %v5134 = vmax.f32 %v5070, 0.0
          %v5135 = vmax.f32 %v5071, 0.0
          %v5136 = vmax.f32 %v5072, 0.0
          %v5137 = vmax.f32 %v5073, 0.0
          %v5138 = vmax.f32 %v5074, 0.0
          %v5139 = vmax.f32 %v5075, 0.0
          %v5140 = vmax.f32 %v5076, 0.0
          %v5141 = vmax.f32 %v5077, 0.0
          %v5142 = vmax.f32 %v5078, 0.0
          %v5143 = vmax.f32 %v5079, 0.0
          %v5144 = vmax.f32 %v5080, 0.0
          %v5145 = vmax.f32 %v5081, 0.0
          %v5146 = vmax.f32 %v5082, 0.0
          %v5147 = vmax.f32 %v5083, 0.0
          %v5148 = vmax.f32 %v5084, 0.0
          %v5149 = vmax.f32 %v5085, 0.0
          %v5150 = vmax.f32 %v5086, 0.0
          %v5151 = vmax.f32 %v5087, 0.0
          %v5152 = vmax.f32 %v5088, 0.0
          %v5153 = vmax.f32 %v5089, 0.0
          %v5154 = vmax.f32 %v5090, 0.0
          %v5155 = vmax.f32 %v5091, 0.0
          %v5156 = vmax.f32 %v5092, 0.0
          %v5157 = vmax.f32 %v5093, 0.0
          %v5158 = vmax.f32 %v5094, 0.0
          %v5159 = vmax.f32 %v5095, 0.0
          %v5160 = vmax.f32 %v5096, 0.0
          %v5161 = vmax.f32 %v5097, 0.0
          %v5162 = vmax.f32 %v5098, 0.0
          %v5163 = vmax.f32 %v5099, 0.0
          %v5164 = vmax.f32 %v5100, 0.0
          %v5165 = vmax.f32 %v5101, 0.0
          %v5166 = vmax.f32 %v5102, 0.0
          %v5167 = vmax.f32 %v5103, 0.0
          %v5168 = vmax.f32 %v5104, 0.0
          %v5169 = vmax.f32 %v5105, 0.0
          %v5170 = vmax.f32 %v5106, 0.0
          %v5171 = vmax.f32 %v5107, 0.0
          %v5172 = vmax.f32 %v5108, 0.0
          %v5173 = vmax.f32 %v5109, 0.0
          %v5174 = vmax.f32 %v5110, 0.0
          %v5175 = vmax.f32 %v5111, 0.0
          %v5176 = vmax.f32 %v5112, 0.0
          %v5177 = vmax.f32 %v5113, 0.0
          %v5178 = vmax.f32 %v5114, 0.0
          %v5179 = vmax.f32 %v5115, 0.0
          %v5180 = vmax.f32 %v5116, 0.0
          %v5181 = vmax.f32 %v5117, 0.0
          %v5182 = vmax.f32 %v5118, 0.0
          %v5247 = vrot.slane %v5120, 7
          %v5248 = vsel %vm2471, %v5247, %v5119
          %v5249 = vrot.slane %v5121, 6
          %v5250 = vsel %vm2473, %v5249, %v5248
          %v5251 = vrot.slane %v5122, 5
          %v5252 = vsel %vm2475, %v5251, %v5250
          %v5253 = vrot.slane %v5123, 4
          %v5254 = vsel %vm2477, %v5253, %v5252
          %v5255 = vrot.slane %v5124, 3
          %v5256 = vsel %vm2479, %v5255, %v5254
          %v5257 = vrot.slane %v5125, 2
          %v5258 = vsel %vm2481, %v5257, %v5256
          %v5259 = vrot.slane %v5126, 1
          %v5260 = vsel %vm2483, %v5259, %v5258
          %v5261 = vrot.slane %v5128, 7
          %v5262 = vsel %vm2471, %v5261, %v5127
          %v5263 = vrot.slane %v5129, 6
          %v5264 = vsel %vm2473, %v5263, %v5262
          %v5265 = vrot.slane %v5130, 5
          %v5266 = vsel %vm2475, %v5265, %v5264
          %v5267 = vrot.slane %v5131, 4
          %v5268 = vsel %vm2477, %v5267, %v5266
          %v5269 = vrot.slane %v5132, 3
          %v5270 = vsel %vm2479, %v5269, %v5268
          %v5271 = vrot.slane %v5133, 2
          %v5272 = vsel %vm2481, %v5271, %v5270
          %v5273 = vrot.slane %v5134, 1
          %v5274 = vsel %vm2483, %v5273, %v5272
          %v5275 = vrot.slane %v5136, 7
          %v5276 = vsel %vm2471, %v5275, %v5135
          %v5277 = vrot.slane %v5137, 6
          %v5278 = vsel %vm2473, %v5277, %v5276
          %v5279 = vrot.slane %v5138, 5
          %v5280 = vsel %vm2475, %v5279, %v5278
          %v5281 = vrot.slane %v5139, 4
          %v5282 = vsel %vm2477, %v5281, %v5280
          %v5283 = vrot.slane %v5140, 3
          %v5284 = vsel %vm2479, %v5283, %v5282
          %v5285 = vrot.slane %v5141, 2
          %v5286 = vsel %vm2481, %v5285, %v5284
          %v5287 = vrot.slane %v5142, 1
          %v5288 = vsel %vm2483, %v5287, %v5286
          %v5289 = vrot.slane %v5144, 7
          %v5290 = vsel %vm2471, %v5289, %v5143
          %v5291 = vrot.slane %v5145, 6
          %v5292 = vsel %vm2473, %v5291, %v5290
          %v5293 = vrot.slane %v5146, 5
          %v5294 = vsel %vm2475, %v5293, %v5292
          %v5295 = vrot.slane %v5147, 4
          %v5296 = vsel %vm2477, %v5295, %v5294
          %v5297 = vrot.slane %v5148, 3
          %v5298 = vsel %vm2479, %v5297, %v5296
          %v5299 = vrot.slane %v5149, 2
          %v5300 = vsel %vm2481, %v5299, %v5298
          %v5301 = vrot.slane %v5150, 1
          %v5302 = vsel %vm2483, %v5301, %v5300
          %v5303 = vrot.slane %v5152, 7
          %v5304 = vsel %vm2471, %v5303, %v5151
          %v5305 = vrot.slane %v5153, 6
          %v5306 = vsel %vm2473, %v5305, %v5304
          %v5307 = vrot.slane %v5154, 5
          %v5308 = vsel %vm2475, %v5307, %v5306
          %v5309 = vrot.slane %v5155, 4
          %v5310 = vsel %vm2477, %v5309, %v5308
          %v5311 = vrot.slane %v5156, 3
          %v5312 = vsel %vm2479, %v5311, %v5310
          %v5313 = vrot.slane %v5157, 2
          %v5314 = vsel %vm2481, %v5313, %v5312
          %v5315 = vrot.slane %v5158, 1
          %v5316 = vsel %vm2483, %v5315, %v5314
          %v5317 = vrot.slane %v5160, 7
          %v5318 = vsel %vm2471, %v5317, %v5159
          %v5319 = vrot.slane %v5161, 6
          %v5320 = vsel %vm2473, %v5319, %v5318
          %v5321 = vrot.slane %v5162, 5
          %v5322 = vsel %vm2475, %v5321, %v5320
          %v5323 = vrot.slane %v5163, 4
          %v5324 = vsel %vm2477, %v5323, %v5322
          %v5325 = vrot.slane %v5164, 3
          %v5326 = vsel %vm2479, %v5325, %v5324
          %v5327 = vrot.slane %v5165, 2
          %v5328 = vsel %vm2481, %v5327, %v5326
          %v5329 = vrot.slane %v5166, 1
          %v5330 = vsel %vm2483, %v5329, %v5328
          %v5331 = vrot.slane %v5168, 7
          %v5332 = vsel %vm2471, %v5331, %v5167
          %v5333 = vrot.slane %v5169, 6
          %v5334 = vsel %vm2473, %v5333, %v5332
          %v5335 = vrot.slane %v5170, 5
          %v5336 = vsel %vm2475, %v5335, %v5334
          %v5337 = vrot.slane %v5171, 4
          %v5338 = vsel %vm2477, %v5337, %v5336
          %v5339 = vrot.slane %v5172, 3
          %v5340 = vsel %vm2479, %v5339, %v5338
          %v5341 = vrot.slane %v5173, 2
          %v5342 = vsel %vm2481, %v5341, %v5340
          %v5343 = vrot.slane %v5174, 1
          %v5344 = vsel %vm2483, %v5343, %v5342
          %v5345 = vrot.slane %v5176, 7
          %v5346 = vsel %vm2471, %v5345, %v5175
          %v5347 = vrot.slane %v5177, 6
          %v5348 = vsel %vm2473, %v5347, %v5346
          %v5349 = vrot.slane %v5178, 5
          %v5350 = vsel %vm2475, %v5349, %v5348
          %v5351 = vrot.slane %v5179, 4
          %v5352 = vsel %vm2477, %v5351, %v5350
          %v5353 = vrot.slane %v5180, 3
          %v5354 = vsel %vm2479, %v5353, %v5352
          %v5355 = vrot.slane %v5181, 2
          %v5356 = vsel %vm2481, %v5355, %v5354
          %v5357 = vrot.slane %v5182, 1
          %v5358 = vsel %vm2483, %v5357, %v5356
          %5359 = vrot.lane.b32.xlu0 %v5260, 96
          %v5360 = vpop.permute.xlu0 %5359
          %5361 = vrot.lane.b32.xlu0 %v5274, 96
          %v5362 = vpop.permute.xlu0 %5361
          %5363 = vrot.lane.b32.xlu0 %v5288, 96
          %v5364 = vpop.permute.xlu0 %5363
          %5365 = vrot.lane.b32.xlu0 %v5302, 96
          %v5366 = vpop.permute.xlu0 %5365
          %5367 = vrot.lane.b32.xlu0 %v5316, 96
          %v5368 = vpop.permute.xlu0 %5367
          %5369 = vrot.lane.b32.xlu0 %v5330, 96
          %v5370 = vpop.permute.xlu0 %5369
          %5371 = vrot.lane.b32.xlu0 %v5344, 96
          %v5372 = vpop.permute.xlu0 %5371
          %5373 = vrot.lane.b32.xlu0 %v5358, 96
          %v5374 = vpop.permute.xlu0 %5373
          %5383 = vst.msk [vmem:[#allocation3] sm:$0xff] %vm573, %v5360
          %5384 = vst.msk [vmem:[#allocation3 + $0x8] sm:$0xff] %vm573, %v5362
          %5385 = vst.msk [vmem:[#allocation3 + $0x10] sm:$0xff] %vm573, %v5364
          %5386 = vst.msk [vmem:[#allocation3 + $0x18] sm:$0xff] %vm573, %v5366
          %5387 = vst.msk [vmem:[#allocation3 + $0x20] sm:$0xff] %vm573, %v5368
          %5388 = vst.msk [vmem:[#allocation3 + $0x28] sm:$0xff] %vm573, %v5370
          %5389 = vst.msk [vmem:[#allocation3 + $0x30] sm:$0xff] %vm573, %v5372
          %5390 = vst.msk [vmem:[#allocation3 + $0x38] sm:$0xff] %vm573, %v5374
        $region77: #{tpu_custom_call.1} parent=71 // loop_footer
          %s595 = sadd.s32 1, %s591
        $region78: #{tpu_custom_call.1} parent=71 // loop_footer_branch
          %590 = sbr.rel target = $region74
        $region79: #{tpu_custom_call.1} parent=71 // loop_exit
          _
        %v5391 = vld [vmem:[#allocation3] sm:$0xff]
        %v5392 = vld [vmem:[#allocation3 + $0x8] sm:$0xff]
        %v5393 = vld [vmem:[#allocation3 + $0x10] sm:$0xff]
        %v5394 = vld [vmem:[#allocation3 + $0x18] sm:$0xff]
        %v5395 = vld [vmem:[#allocation3 + $0x20] sm:$0xff]
        %v5396 = vld [vmem:[#allocation3 + $0x28] sm:$0xff]
        %v5397 = vld [vmem:[#allocation3 + $0x30] sm:$0xff]
        %v5398 = vld [vmem:[#allocation3 + $0x38] sm:$0xff]
        %v5399 = vpack.c.bf16 %v5392, %v5391
        %v5400 = vpack.c.bf16 %v5394, %v5393
        %v5401 = vpack.c.bf16 %v5396, %v5395
        %v5402 = vpack.c.bf16 %v5398, %v5397
        %v5403 = vld [vmem:[%s10] sm:$0xf]
        %v5404 = vld [vmem:[%s10 + $0x4] sm:$0xf]
        %v5405 = vld [vmem:[%s11] sm:$0xf]
        %v5406 = vld [vmem:[%s11 + $0x4] sm:$0xf]
        %v5407 = vld [vmem:[%s11 + $0x8] sm:$0xf]
        %v5408 = vld [vmem:[%s11 + $0xc] sm:$0xf]
        %v5413 = vunpack.c.l.b16 %v5405
        %v5414 = vunpack.c.l.b16 %v5406
        %v5415 = vunpack.c.l.b16 %v5407
        %v5416 = vunpack.c.l.b16 %v5408
        %v5417 = vpack.c.b16 %v5414, %v5413
        %v5418 = vpack.c.b16 %v5416, %v5415
        %v5422 = vsel %vm573, %v5399, 0
        %v5425 = vsel %vm573, %v5400, 0
        %v5428 = vsel %vm573, %v5401, 0
        %v5431 = vsel %vm573, %v5402, 0
        %5433 = vmatpush.bf16.msra.mxu0 0
        %5434 = vmatpush.bf16.msra.mxu0 0
        %5435 = vmatpush.bf16.msra.mxu0 0
        %5436 = vmatpush.bf16.msra.mxu0 0
        %5437 = vmatpush.bf16.msra.mxu0 0
        %5438 = vmatpush.bf16.msra.mxu0 0
        %5439 = vmatpush.bf16.msra.mxu0 %v5418
        %5440 = vmatpush.bf16.msra.mxu0 %v5417
        %5441 = vmatmul.bf16.gmra.mxu0 %v5422
        %v5442 = vpop.f32.mrf.mxu0
        %v5443 = vadd.f32 0.0, %v5442
        %v5444 = vpop.f32.mrf.mxu0
        %v5445 = vadd.f32 0.0, %v5444
        %5446 = vmatmul.bf16.gmra.mxu0 %v5425
        %v5447 = vpop.f32.mrf.mxu0
        %v5448 = vadd.f32 0.0, %v5447
        %v5449 = vpop.f32.mrf.mxu0
        %v5450 = vadd.f32 0.0, %v5449
        %5451 = vmatmul.bf16.gmra.mxu0 %v5428
        %v5452 = vpop.f32.mrf.mxu0
        %v5453 = vadd.f32 0.0, %v5452
        %v5454 = vpop.f32.mrf.mxu0
        %v5455 = vadd.f32 0.0, %v5454
        %5456 = vmatmul.bf16.gmra.mxu0 %v5431
        %v5457 = vpop.f32.mrf.mxu0
        %v5458 = vadd.f32 0.0, %v5457
        %v5459 = vpop.f32.mrf.mxu0
        %v5460 = vadd.f32 0.0, %v5459
        %5461 = vdwg.mxu0
        %v5464 = vunpack.c.l.b16 %v5403
        %v5465 = vunpack.c.l.b16 %v5404
        %v5466 = vpack.c.b16 %v5465, %v5464
        %5468 = vmatpush.bf16.msra.mxu0 0
        %5469 = vmatpush.bf16.msra.mxu0 0
        %5470 = vmatpush.bf16.msra.mxu0 0
        %5471 = vmatpush.bf16.msra.mxu0 0
        %5472 = vmatpush.bf16.msra.mxu0 0
        %5473 = vmatpush.bf16.msra.mxu0 0
        %5474 = vmatpush.bf16.msra.mxu0 0
        %5475 = vmatpush.bf16.msra.mxu0 %v5466
        %5476 = vmatmul.bf16.gmra.mxu0 %v509
        %v5477 = vpop.f32.mrf.mxu0
        %v5478 = vadd.f32 %v5443, %v5477
        %v5479 = vpop.f32.mrf.mxu0
        %v5480 = vadd.f32 %v5445, %v5479
        %5481 = vmatmul.bf16.gmra.mxu0 %v512
        %v5482 = vpop.f32.mrf.mxu0
        %v5483 = vadd.f32 %v5448, %v5482
        %v5484 = vpop.f32.mrf.mxu0
        %v5485 = vadd.f32 %v5450, %v5484
        %5486 = vmatmul.bf16.gmra.mxu0 %v515
        %v5487 = vpop.f32.mrf.mxu0
        %v5488 = vadd.f32 %v5453, %v5487
        %v5489 = vpop.f32.mrf.mxu0
        %v5490 = vadd.f32 %v5455, %v5489
        %5491 = vmatmul.bf16.gmra.mxu0 %v518
        %v5492 = vpop.f32.mrf.mxu0
        %v5493 = vadd.f32 %v5458, %v5492
        %v5494 = vpop.f32.mrf.mxu0
        %v5495 = vadd.f32 %v5460, %v5494
        %5496 = vdwg.mxu0
        %v5497 = vld [vmem:[%s12] sm:$0x1]
        %v5499 = vperm.slane %v5497, 0
        %v5501 = vadd.f32 %v5478, %v5499
        %v5502 = vadd.f32 %v5480, %v5499
        %v5503 = vadd.f32 %v5483, %v5499
        %v5504 = vadd.f32 %v5485, %v5499
        %v5505 = vadd.f32 %v5488, %v5499
        %v5506 = vadd.f32 %v5490, %v5499
        %v5507 = vadd.f32 %v5493, %v5499
        %v5508 = vadd.f32 %v5495, %v5499
        %vm5509 = vcmp.ge.f32.partialorder %v5501, 0.0
        %vm5510 = vcmp.ge.f32.partialorder %v5502, 0.0
        %vm5511 = vcmp.ge.f32.partialorder %v5503, 0.0
        %vm5512 = vcmp.ge.f32.partialorder %v5504, 0.0
        %vm5513 = vcmp.ge.f32.partialorder %v5505, 0.0
        %vm5514 = vcmp.ge.f32.partialorder %v5506, 0.0
        %vm5515 = vcmp.ge.f32.partialorder %v5507, 0.0
        %vm5516 = vcmp.ge.f32.partialorder %v5508, 0.0
        %v5517 = vmul.f32 %v5501, 0.2
        %v5518 = vmul.f32 %v5502, 0.2
        %v5519 = vmul.f32 %v5503, 0.2
        %v5520 = vmul.f32 %v5504, 0.2
        %v5521 = vmul.f32 %v5505, 0.2
        %v5522 = vmul.f32 %v5506, 0.2
        %v5523 = vmul.f32 %v5507, 0.2
        %v5524 = vmul.f32 %v5508, 0.2
        %v5525 = vsel %vm5509, %v5501, %v5517
        %v5526 = vsel %vm5510, %v5502, %v5518
        %v5527 = vsel %vm5511, %v5503, %v5519
        %v5528 = vsel %vm5512, %v5504, %v5520
        %v5529 = vsel %vm5513, %v5505, %v5521
        %v5530 = vsel %vm5514, %v5506, %v5522
        %v5531 = vsel %vm5515, %v5507, %v5523
        %v5532 = vsel %vm5516, %v5508, %v5524
        %v5533 = vsel %vm573, %v5525, 0.0
        %v5534 = vrot.slane %v5533, 4
        %v5535 = vadd.f32 %v5533, %v5534
        %v5536 = vrot.slane %v5535, 2
        %v5537 = vadd.f32 %v5535, %v5536
        %v5538 = vrot.slane %v5537, 1
        %v5539 = vadd.f32 %v5537, %v5538
        %v5540 = vsel %vm573, %v5526, 0.0
        %v5541 = vrot.slane %v5540, 4
        %v5542 = vadd.f32 %v5540, %v5541
        %v5543 = vrot.slane %v5542, 2
        %v5544 = vadd.f32 %v5542, %v5543
        %v5545 = vrot.slane %v5544, 1
        %v5546 = vadd.f32 %v5544, %v5545
        %v5547 = vsel %vm573, %v5527, 0.0
        %v5548 = vrot.slane %v5547, 4
        %v5549 = vadd.f32 %v5547, %v5548
        %v5550 = vrot.slane %v5549, 2
        %v5551 = vadd.f32 %v5549, %v5550
        %v5552 = vrot.slane %v5551, 1
        %v5553 = vadd.f32 %v5551, %v5552
        %v5554 = vsel %vm573, %v5528, 0.0
        %v5555 = vrot.slane %v5554, 4
        %v5556 = vadd.f32 %v5554, %v5555
        %v5557 = vrot.slane %v5556, 2
        %v5558 = vadd.f32 %v5556, %v5557
        %v5559 = vrot.slane %v5558, 1
        %v5560 = vadd.f32 %v5558, %v5559
        %v5561 = vsel %vm573, %v5529, 0.0
        %v5562 = vrot.slane %v5561, 4
        %v5563 = vadd.f32 %v5561, %v5562
        %v5564 = vrot.slane %v5563, 2
        %v5565 = vadd.f32 %v5563, %v5564
        %v5566 = vrot.slane %v5565, 1
        %v5567 = vadd.f32 %v5565, %v5566
        %v5568 = vsel %vm573, %v5530, 0.0
        %v5569 = vrot.slane %v5568, 4
        %v5570 = vadd.f32 %v5568, %v5569
        %v5571 = vrot.slane %v5570, 2
        %v5572 = vadd.f32 %v5570, %v5571
        %v5573 = vrot.slane %v5572, 1
        %v5574 = vadd.f32 %v5572, %v5573
        %v5575 = vsel %vm573, %v5531, 0.0
        %v5576 = vrot.slane %v5575, 4
        %v5577 = vadd.f32 %v5575, %v5576
        %v5578 = vrot.slane %v5577, 2
        %v5579 = vadd.f32 %v5577, %v5578
        %v5580 = vrot.slane %v5579, 1
        %v5581 = vadd.f32 %v5579, %v5580
        %v5582 = vsel %vm573, %v5532, 0.0
        %v5583 = vrot.slane %v5582, 4
        %v5584 = vadd.f32 %v5582, %v5583
        %v5585 = vrot.slane %v5584, 2
        %v5586 = vadd.f32 %v5584, %v5585
        %v5587 = vrot.slane %v5586, 1
        %v5588 = vadd.f32 %v5586, %v5587
        %v5589 = vmul.f32 %v5539, 0.125
        %v5590 = vmul.f32 %v5546, 0.125
        %v5591 = vmul.f32 %v5553, 0.125
        %v5592 = vmul.f32 %v5560, 0.125
        %v5593 = vmul.f32 %v5567, 0.125
        %v5594 = vmul.f32 %v5574, 0.125
        %v5595 = vmul.f32 %v5581, 0.125
        %v5596 = vmul.f32 %v5588, 0.125
        %vm5605 = vcmask 1041409
        %v5606 = vsel %vm5605, %v5590, %v5589
        %vm5607 = vcmask 1042434
        %v5608 = vsel %vm5607, %v5591, %v5606
        %vm5609 = vcmask 1043459
        %v5610 = vsel %vm5609, %v5592, %v5608
        %vm5611 = vcmask 1044484
        %v5612 = vsel %vm5611, %v5593, %v5610
        %vm5613 = vcmask 1045509
        %v5614 = vsel %vm5613, %v5594, %v5612
        %vm5615 = vcmask 1046534
        %v5616 = vsel %vm5615, %v5595, %v5614
        %vm5617 = vcmask 1047559
        %v5618 = vsel %vm5617, %v5596, %v5616
        %5620 = vst.msk [vmem:[%s452] sm:$0xff] %vm573, %v5618
        %s5621 = sand.u32 %s318, 1
        %s5622 = scalar_lea.sflag [#allocation7], %s5621
        %s5623 = sand.u32 %s318, 1
        %s5624 = smul.addr %s5623, 8
        %s5625 = scalar_lea.vmem [#allocation6], %s5624
        // Predicated region
        $region80: #{tpu_custom_call.1} parent=71 // pred_check
          %p5626 = pneg %p328
        $region81: #{tpu_custom_call.1} parent=71 // pred_check_branch
          %5628 = sbr.rel (%p5626) target = $region83
        $region82: #{tpu_custom_call.1} parent=71 // pred_region
          %5630 = vsyncadd %s5622, 0
          %s5631 = smul.addr %s27, 8
          %s5632 = scalar_lea.hbm %s13, %s5631
          %s5634 = sshll.u32 %s5625, 4
          %s5635 = int_to_ptr.vmem [resolvable:$true] %s5634
          %s5636 = sshll.u32 %s5632, 4
          %s5637 = int_to_ptr.hbm [resolvable:$true] %s5636
          %5639 = dma.vmem_to_hbm [thread:$0]  %s5635, 128, %s5637, %s5622
        $region83: #{tpu_custom_call.1} parent=71 // pred_fallthru
          _
      $region72: #{tpu_custom_call.1} parent=5 // pred_fallthru
        _
      %p5640 = scmp.le.s32.totalorder 2, %s22
      // Predicated region
      $region84: #{tpu_custom_call.1} parent=5 // pred_check
        %p5641 = pneg %p5640
      $region85: #{tpu_custom_call.1} parent=5 // pred_check_branch
        %5643 = sbr.rel (%p5641) target = $region87
      $region86: #{tpu_custom_call.1} parent=5 // pred_region
        %s5644 = ssub.s32 %s22, 2
        // Predicated region
        $region88: #{tpu_custom_call.1} parent=86 // pred_check
          %p5645 = pneg %p334
        $region89: #{tpu_custom_call.1} parent=86 // pred_check_branch
          %5647 = sbr.rel (%p5645) target = $region91
        $region90: #{tpu_custom_call.1} parent=86 // pred_region
          %s5648 = sand.u32 %s319, 1
          %s5649 = scalar_lea.sflag [#allocation7], %s5648
          %s5650 = sand.u32 %s319, 1
          %s5651 = smul.addr %s5650, 8
          %s5652 = scalar_lea.vmem [#allocation6], %s5651
          %5654 = dma.done %s5649, 128
        $region91: #{tpu_custom_call.1} parent=86 // pred_fallthru
          _
      $region87: #{tpu_custom_call.1} parent=5 // pred_fallthru
        _
    $region6: #{tpu_custom_call.1} parent=1 // loop_footer
      %s26 = sadd.s32 1, %s22
    $region7: #{tpu_custom_call.1} parent=1 // loop_footer_branch
      %21 = sbr.rel target = $region3
    $region8: #{tpu_custom_call.1} parent=1 // loop_exit
      _
    %5655 = vsyncpa [#allocation7], 1
    %s5656 = scalar_lea.sflag [#allocation7], 1
    %5657 = vsyncpa %s5656, 1

</llo_original>
